<compile_context>
chip_gen: v6e
topology: v6e:2x2x1
jax: 0.10.0
libtpu: 0.0.40
codegen_flags: <defaults>
</compile_context>

<pallas_src>
import math
import functools

import jax
import jax.numpy as jnp
import numpy as np
from jax.experimental import pallas as pl
from jax.experimental.pallas import tpu as pltpu


# ----------------------------- in-kernel helpers -----------------------------

def _layernorm(v, gamma, beta, eps=1e-5):
    # matches the PyTorch LayerNorm in the module: mean / biased var over last dim
    mean = jnp.mean(v, axis=-1, keepdims=True)
    ctr = v - mean
    var = jnp.mean(ctr * ctr, axis=-1, keepdims=True)
    return ctr * jax.lax.rsqrt(var + eps) * gamma + beta


_SQRT_2_OVER_PI = math.sqrt(2.0 / math.pi)


def _gelu_tanh(x):
    # tanh-approximate GELU (tanh lowers to the EUP; within the 3e-2 tolerance of exact erf-GELU)
    return 0.5 * x * (1.0 + jnp.tanh(_SQRT_2_OVER_PI * (x + 0.044715 * x * x * x)))


# --------------------------------- kernel ------------------------------------

def prenorm_attn_kernel(x_ref,
                        g1_ref, b1_ref,
                        wqkv_ref, bqkv_ref,
                        wo_ref, bo_ref,
                        g2_ref, b2_ref,
                        w1_ref, bw1_ref, w2_ref, bw2_ref,
                        o_ref,
                        att_scr,
                        *, num_heads, head_size):
    bf16 = jnp.bfloat16
    bt, s, e = x_ref.shape
    r = bt * s

    x2 = x_ref[...].reshape(r, e)                      # (R, E) f32 rows

    # --- layer_norm_1 (f32) ---
    xn = _layernorm(x2, g1_ref[...], b1_ref[...])
    xb = xn.astype(bf16)                               # bf16 activations for the MXU

    # --- fused QKV projection: one (R,E)x(E,3E) MXU matmul.
    #     1/sqrt(head_size) is already folded into the Q columns/bias in the wrapper.
    qkv = (jnp.dot(xb, wqkv_ref[...], preferred_element_type=jnp.float32)
           + bqkv_ref[...]).astype(bf16)               # (R, 3E) bf16

    # --- per-head attention (mask=None); heads write into the merged-head scratch ---
    for h in range(num_heads):                         # static loop; static lane slices
        lo = h * head_size
        qh = qkv[:, lo:lo + head_size].reshape(bt, s, head_size)
        kh = qkv[:, e + lo:e + lo + head_size].reshape(bt, s, head_size)
        vh = qkv[:, 2 * e + lo:2 * e + lo + head_size].reshape(bt, s, head_size)

        sc = jnp.einsum("bqd,bkd->bqk", qh, kh,
                        preferred_element_type=jnp.float32)       # (Bt,S,S) f32
        p = jnp.exp(sc - jnp.max(sc, axis=-1, keepdims=True))     # unnormalized probs
        l = jnp.sum(p, axis=-1, keepdims=True)                    # (Bt,S,1) row sums

        att = jnp.einsum("bqk,bkd->bqd", p.astype(bf16), vh,
                         preferred_element_type=jnp.float32)      # (Bt,S,D) f32
        # normalize after AV: touches S*D elements instead of S*S
        att = att * pl.reciprocal(l, approx=True)

        # merge_heads: write at static lane offset h*D into the (R, E) scratch
        att_scr[:, lo:lo + head_size] = att.reshape(r, head_size).astype(bf16)

    # --- output projection: single full-depth (R,E)x(E,E) matmul ---
    attn_out = (jnp.dot(att_scr[...], wo_ref[...], preferred_element_type=jnp.float32)
                + bo_ref[...])
    attn_res = x2 + attn_out                           # residual 1 (f32)

    # --- layer_norm_2 + MLP (Linear -> GELU -> Linear; dropout = identity) ---
    hn = _layernorm(attn_res, g2_ref[...], b2_ref[...])
    h1 = jnp.dot(hn.astype(bf16), w1_ref[...], preferred_element_type=jnp.float32) + bw1_ref[...]
    h1 = _gelu_tanh(h1)                                # f32 elementwise (EUP tanh)
    h2 = jnp.dot(h1.astype(bf16), w2_ref[...], preferred_element_type=jnp.float32) + bw2_ref[...]

    o_ref[...] = (attn_res + h2).reshape(bt, s, e)     # residual 2


# --------------------------------- wrapper -----------------------------------

def _const_spec(shape, single_buffer):
    zeros = (0,) * len(shape)
    if single_buffer:
        # constant index map -> single-buffer the resident weights (halves their VMEM footprint)
        return pl.BlockSpec(shape, lambda b, _z=zeros: _z, pipeline_mode=pl.Buffered(1))
    return pl.BlockSpec(shape, lambda b, _z=zeros: _z)


def _pick_block_batch(B, S):
    # target ~512 rows per grid step (MXU M dim / HBM roofline), but keep grid length >= 2 so the
    # "parallel" batch axis can shard across both TensorCores on v7x (free on v5e/v6e).
    target_bt = max(1, 512 // max(S, 1))
    cap = max(1, B // 2)
    bt = 1
    for cand in range(1, B + 1):
        if B % cand == 0 and cand <= min(target_bt, cap):
            bt = cand
    return bt


def _vmem_limit_bytes():
    # generation-aware: ~80% of physical VMEM per core, never more than 112 MiB.
    try:
        cap = pltpu.get_tpu_info().vmem_capacity_bytes
    except Exception:
        cap = 64 * 1024 * 1024
    return min(int(cap * 0.8), 112 * 1024 * 1024)


def prenorm_attention_block(x, params, *, num_heads, block_batch=None):
    B, S, E = x.shape
    assert E % num_heads == 0
    D = E // num_heads
    H = params["w1"].shape[1]

    if block_batch is None:
        block_batch = _pick_block_batch(B, S)
    assert B % block_batch == 0
    Bt = block_batch

    # NOTE: for peak performance S should be a multiple of 8 and E, D, H multiples of 128
    # (lane-dense layouts, free (Bt,S,E)<->(R,E) reshapes). Smaller shapes stay correct
    # (Mosaic pads), just with masked partial stores.

    bf16 = jnp.bfloat16
    scale = 1.0 / math.sqrt(D)

    # Fused (E, 3E) QKV weight / (1, 3E) bias, with the attention scale folded into Q.
    wqkv = jnp.concatenate(
        [params["wq"] * scale, params["wk"], params["wv"]], axis=1).astype(bf16)
    bqkv = jnp.concatenate(
        [params["bq"] * scale, params["bk"], params["bv"]], axis=1).astype(jnp.float32)
    wo = params["wo"].astype(bf16)
    w1 = params["w1"].astype(bf16)
    w2 = params["w2"].astype(bf16)

    kernel = functools.partial(prenorm_attn_kernel, num_heads=num_heads, head_size=D)

    args = (x.astype(jnp.float32),
            params["g1"].astype(jnp.float32), params["b1"].astype(jnp.float32),
            wqkv, bqkv,
            wo, params["bo"].astype(jnp.float32),
            params["g2"].astype(jnp.float32), params["b2"].astype(jnp.float32),
            w1, params["bw1"].astype(jnp.float32),
            w2, params["bw2"].astype(jnp.float32))

    def build(single_buffer_weights):
        cs = functools.partial(_const_spec, single_buffer=single_buffer_weights)
        in_specs = [
            pl.BlockSpec((Bt, S, E), lambda b: (b, 0, 0)),   # x (pipelined over the batch grid)
            cs((1, E)), cs((1, E)),                          # LN1 gamma, beta
            cs((E, 3 * E)), cs((1, 3 * E)),                  # fused Wqkv, bqkv
            cs((E, E)), cs((1, E)),                          # Wo, bo
            cs((1, E)), cs((1, E)),                          # LN2 gamma, beta
            cs((E, H)), cs((1, H)),                          # MLP W1, b1
            cs((H, E)), cs((1, E)),                          # MLP W2, b2
        ]
        return pl.pallas_call(
            kernel,
            out_shape=jax.ShapeDtypeStruct((B, S, E), jnp.float32),
            grid_spec=pltpu.PrefetchScalarGridSpec(
                num_scalar_prefetch=0,
                grid=(B // Bt,),
                in_specs=in_specs,
                out_specs=pl.BlockSpec((Bt, S, E), lambda b: (b, 0, 0)),
                scratch_shapes=[pltpu.VMEM((Bt * S, E), bf16)],   # merged-head attention rows
            ),
            compiler_params=pltpu.CompilerParams(
                dimension_semantics=("parallel",),
                vmem_limit_bytes=_vmem_limit_bytes(),
            ),
        )

    try:
        return build(single_buffer_weights=True)(*args)
    except Exception:
        # this jax build does not accept pipeline_mode=pl.Buffered(1) on pallas_call BlockSpecs;
        # fall back to default (double-buffered) weight specs.
        return build(single_buffer_weights=False)(*args)


# ----------------------------- pure-JAX reference -----------------------------

def _reference(x, params, *, num_heads):
    B, S, E = x.shape
    D = E // num_heads

    def ln(v, g, b):
        m = jnp.mean(v, axis=-1, keepdims=True)
        var = jnp.mean((v - m) ** 2, axis=-1, keepdims=True)
        return (v - m) / jnp.sqrt(var + 1e-5) * g + b

    xn = ln(x, params["g1"], params["b1"])
    q = xn @ params["wq"] + params["bq"]
    k = xn @ params["wk"] + params["bk"]
    v = xn @ params["wv"] + params["bv"]
    split = lambda t: t.reshape(B, S, num_heads, D).transpose(0, 2, 1, 3)
    qh, kh, vh = split(q), split(k), split(v)
    s = jnp.einsum("bhqd,bhkd->bhqk", qh, kh) / math.sqrt(D)
    p = jax.nn.softmax(s, axis=-1)
    att = jnp.einsum("bhqk,bhkd->bhqd", p, vh).transpose(0, 2, 1, 3).reshape(B, S, E)
    attn_out = att @ params["wo"] + params["bo"]
    attn_res = x + attn_out
    hn = ln(attn_res, params["g2"], params["b2"])
    h1 = jax.nn.gelu(hn @ params["w1"] + params["bw1"], approximate=False)
    h2 = h1 @ params["w2"] + params["bw2"]
    return attn_res + h2


# ----------------------------------- main -------------------------------------

if __name__ == "__main__":
    B, S, E, H, NH = 2, 8, 32, 64, 4   # batch, seq, embed_dim, hidden_dim, num_heads

    key = jax.random.PRNGKey(0)
    keys = jax.random.split(key, 13)

    def lin(kw, kb, fan_in, fan_out):
        w = jax.random.normal(kw, (fan_in, fan_out), jnp.float32) * 0.05
        b = jax.random.normal(kb, (1, fan_out), jnp.float32) * 0.05
        return w, b

    wq, bq = lin(keys[0], keys[1], E, E)
    wk, bk = lin(keys[2], keys[3], E, E)
    wv, bv = lin(keys[4], keys[5], E, E)
    wo, bo = lin(keys[6], keys[7], E, E)
    w1, bw1 = lin(keys[8], keys[9], E, H)
    w2, bw2 = lin(keys[10], keys[11], H, E)

    params = dict(
        g1=jnp.ones((1, E), jnp.float32), b1=jnp.zeros((1, E), jnp.float32),
        g2=jnp.ones((1, E), jnp.float32), b2=jnp.zeros((1, E), jnp.float32),
        wq=wq, bq=bq, wk=wk, bk=bk, wv=wv, bv=bv, wo=wo, bo=bo,
        w1=w1, bw1=bw1, w2=w2, bw2=bw2,
    )

    x = jax.random.normal(keys[12], (B, S, E), jnp.float32)

    out = prenorm_attention_block(x, params, num_heads=NH)
    out = jax.block_until_ready(out)

    ref = _reference(x, params, num_heads=NH)
    np.testing.assert_allclose(np.asarray(out), np.asarray(ref), rtol=3e-2, atol=3e-2)

    print("KERNEL_OK")
</pallas_src>

<mosaic_0001>
module attributes {stable_mosaic.version = 11 : i64} {
  func.func @prenorm_attn_kernel(%arg0: i32, %arg1: memref<1x8x32xf32, #tpu.memory_space<vmem>>, %arg2: memref<1x32xf32, #tpu.memory_space<vmem>>, %arg3: memref<1x32xf32, #tpu.memory_space<vmem>>, %arg4: memref<32x96xbf16, #tpu.memory_space<vmem>>, %arg5: memref<1x96xf32, #tpu.memory_space<vmem>>, %arg6: memref<32x32xbf16, #tpu.memory_space<vmem>>, %arg7: memref<1x32xf32, #tpu.memory_space<vmem>>, %arg8: memref<1x32xf32, #tpu.memory_space<vmem>>, %arg9: memref<1x32xf32, #tpu.memory_space<vmem>>, %arg10: memref<32x64xbf16, #tpu.memory_space<vmem>>, %arg11: memref<1x64xf32, #tpu.memory_space<vmem>>, %arg12: memref<64x32xbf16, #tpu.memory_space<vmem>>, %arg13: memref<1x32xf32, #tpu.memory_space<vmem>>, %arg14: memref<1x8x32xf32, #tpu.memory_space<vmem>>, %arg15: memref<8x32xbf16, #tpu.memory_space<vmem>>) attributes {dimension_semantics = [#tpu.dimension_semantics<parallel>], iteration_bounds = array<i64: 2>, scalar_prefetch = 0 : i64, scratch_operands = 1 : i64, tpu.core_type = #tpu.core_type<tc>, window_params = [{transform_indices = @transform_0, window_bounds = array<i64: 1, 8, 32>}, {pipeline_mode = #tpu.pipeline_mode<synchronous>, transform_indices = @transform_1, window_bounds = array<i64: 1, 32>}, {pipeline_mode = #tpu.pipeline_mode<synchronous>, transform_indices = @transform_2, window_bounds = array<i64: 1, 32>}, {pipeline_mode = #tpu.pipeline_mode<synchronous>, transform_indices = @transform_3, window_bounds = array<i64: 32, 96>}, {pipeline_mode = #tpu.pipeline_mode<synchronous>, transform_indices = @transform_4, window_bounds = array<i64: 1, 96>}, {pipeline_mode = #tpu.pipeline_mode<synchronous>, transform_indices = @transform_5, window_bounds = array<i64: 32, 32>}, {pipeline_mode = #tpu.pipeline_mode<synchronous>, transform_indices = @transform_6, window_bounds = array<i64: 1, 32>}, {pipeline_mode = #tpu.pipeline_mode<synchronous>, transform_indices = @transform_7, window_bounds = array<i64: 1, 32>}, {pipeline_mode = #tpu.pipeline_mode<synchronous>, transform_indices = @transform_8, window_bounds = array<i64: 1, 32>}, {pipeline_mode = #tpu.pipeline_mode<synchronous>, transform_indices = @transform_9, window_bounds = array<i64: 32, 64>}, {pipeline_mode = #tpu.pipeline_mode<synchronous>, transform_indices = @transform_10, window_bounds = array<i64: 1, 64>}, {pipeline_mode = #tpu.pipeline_mode<synchronous>, transform_indices = @transform_11, window_bounds = array<i64: 64, 32>}, {pipeline_mode = #tpu.pipeline_mode<synchronous>, transform_indices = @transform_12, window_bounds = array<i64: 1, 32>}, {transform_indices = @transform_13, window_bounds = array<i64: 1, 8, 32>}]} {
    %c0 = arith.constant 0 : index
    %c0_0 = arith.constant 0 : index
    %c0_1 = arith.constant 0 : index
    %0 = vector.load %arg1[%c0, %c0_0, %c0_1] : memref<1x8x32xf32, #tpu.memory_space<vmem>>, vector<1x8x32xf32>
    %1 = vector.shape_cast %0 : vector<1x8x32xf32> to vector<8x32xf32>
    %c0_2 = arith.constant 0 : index
    %c0_3 = arith.constant 0 : index
    %2 = vector.load %arg2[%c0_2, %c0_3] : memref<1x32xf32, #tpu.memory_space<vmem>>, vector<1x32xf32>
    %c0_4 = arith.constant 0 : index
    %c0_5 = arith.constant 0 : index
    %3 = vector.load %arg3[%c0_4, %c0_5] : memref<1x32xf32, #tpu.memory_space<vmem>>, vector<1x32xf32>
    %cst = arith.constant dense<0.000000e+00> : vector<8xf32>
    %4 = vector.multi_reduction <add>, %1, %cst [1] : vector<8x32xf32> to vector<8xf32>
    %5 = vector.shape_cast %4 : vector<8xf32> to vector<8x1xf32>
    %cst_6 = arith.constant 3.200000e+01 : f32
    %6 = vector.broadcast %cst_6 : f32 to vector<8x1xf32>
    %7 = arith.divf %5, %6 : vector<8x1xf32>
    %8 = vector.broadcast %7 : vector<8x1xf32> to vector<8x32xf32>
    %9 = arith.subf %1, %8 : vector<8x32xf32>
    %10 = arith.mulf %9, %9 : vector<8x32xf32>
    %cst_7 = arith.constant dense<0.000000e+00> : vector<8xf32>
    %11 = vector.multi_reduction <add>, %10, %cst_7 [1] : vector<8x32xf32> to vector<8xf32>
    %12 = vector.shape_cast %11 : vector<8xf32> to vector<8x1xf32>
    %cst_8 = arith.constant 3.200000e+01 : f32
    %13 = vector.broadcast %cst_8 : f32 to vector<8x1xf32>
    %14 = arith.divf %12, %13 : vector<8x1xf32>
    %cst_9 = arith.constant 9.99999974E-6 : f32
    %15 = vector.broadcast %cst_9 : f32 to vector<8x1xf32>
    %16 = arith.addf %14, %15 : vector<8x1xf32>
    %17 = math.rsqrt %16 : vector<8x1xf32>
    %18 = vector.broadcast %17 : vector<8x1xf32> to vector<8x32xf32>
    %19 = arith.mulf %9, %18 : vector<8x32xf32>
    %20 = vector.broadcast %2 : vector<1x32xf32> to vector<8x32xf32>
    %21 = arith.mulf %19, %20 : vector<8x32xf32>
    %22 = vector.broadcast %3 : vector<1x32xf32> to vector<8x32xf32>
    %23 = arith.addf %21, %22 : vector<8x32xf32>
    %24 = arith.truncf %23 : vector<8x32xf32> to vector<8x32xbf16>
    %c0_10 = arith.constant 0 : index
    %c0_11 = arith.constant 0 : index
    %25 = vector.load %arg4[%c0_10, %c0_11] : memref<32x96xbf16, #tpu.memory_space<vmem>>, vector<32x96xbf16>
    %cst_12 = arith.constant dense<0.000000e+00> : vector<8x96xf32>
    %26 = tpu.matmul %24, %25, %cst_12 {dimension_numbers = #tpu.dot_dimension_numbers<[1], [0], [0], [1], [0, 0, 1, 1], [], []>} : vector<8x32xbf16>, vector<32x96xbf16>, vector<8x96xf32> -> vector<8x96xf32>
    %c0_13 = arith.constant 0 : index
    %c0_14 = arith.constant 0 : index
    %27 = vector.load %arg5[%c0_13, %c0_14] : memref<1x96xf32, #tpu.memory_space<vmem>>, vector<1x96xf32>
    %28 = vector.broadcast %27 : vector<1x96xf32> to vector<8x96xf32>
    %29 = arith.addf %26, %28 : vector<8x96xf32>
    %30 = arith.truncf %29 : vector<8x96xf32> to vector<8x96xbf16>
    %31 = vector.extract_strided_slice %30 {offsets = [0, 0], sizes = [8, 8], strides = [1, 1]} : vector<8x96xbf16> to vector<8x8xbf16>
    %32 = vector.shape_cast %31 : vector<8x8xbf16> to vector<1x8x8xbf16>
    %33 = vector.extract_strided_slice %30 {offsets = [0, 32], sizes = [8, 8], strides = [1, 1]} : vector<8x96xbf16> to vector<8x8xbf16>
    %34 = vector.shape_cast %33 : vector<8x8xbf16> to vector<1x8x8xbf16>
    %35 = vector.extract_strided_slice %30 {offsets = [0, 64], sizes = [8, 8], strides = [1, 1]} : vector<8x96xbf16> to vector<8x8xbf16>
    %36 = vector.shape_cast %35 : vector<8x8xbf16> to vector<1x8x8xbf16>
    "tpu.trace_start"() <{level = 10 : i32, message = "bqd,bkd->bqk"}> : () -> ()
    %cst_15 = arith.constant dense<0.000000e+00> : vector<1x8x8xf32>
    %37 = tpu.matmul %32, %34, %cst_15 {dimension_numbers = #tpu.dot_dimension_numbers<[2], [2], [1], [1], [0, 0, 0, 1, 1, 1], [0], [0]>} : vector<1x8x8xbf16>, vector<1x8x8xbf16>, vector<1x8x8xf32> -> vector<1x8x8xf32>
    "tpu.trace_stop"() : () -> ()
    %cst_16 = arith.constant dense<0xFF800000> : vector<1x8xf32>
    %38 = vector.multi_reduction <maximumf>, %37, %cst_16 [2] : vector<1x8x8xf32> to vector<1x8xf32>
    %39 = vector.shape_cast %38 : vector<1x8xf32> to vector<1x8x1xf32>
    %40 = vector.broadcast %39 : vector<1x8x1xf32> to vector<1x8x8xf32>
    %41 = arith.subf %37, %40 : vector<1x8x8xf32>
    %42 = math.exp %41 : vector<1x8x8xf32>
    %cst_17 = arith.constant dense<0.000000e+00> : vector<1x8xf32>
    %43 = vector.multi_reduction <add>, %42, %cst_17 [2] : vector<1x8x8xf32> to vector<1x8xf32>
    %44 = vector.shape_cast %43 : vector<1x8xf32> to vector<1x8x1xf32>
    %45 = arith.truncf %42 : vector<1x8x8xf32> to vector<1x8x8xbf16>
    "tpu.trace_start"() <{level = 10 : i32, message = "bqk,bkd->bqd"}> : () -> ()
    %cst_18 = arith.constant dense<0.000000e+00> : vector<1x8x8xf32>
    %46 = tpu.matmul %45, %36, %cst_18 {dimension_numbers = #tpu.dot_dimension_numbers<[2], [1], [1], [2], [0, 0, 0, 1, 1, 2], [0], [0]>} : vector<1x8x8xbf16>, vector<1x8x8xbf16>, vector<1x8x8xf32> -> vector<1x8x8xf32>
    "tpu.trace_stop"() : () -> ()
    %47 = tpu.reciprocal %44 {approx = true} : vector<1x8x1xf32> -> vector<1x8x1xf32>
    %48 = vector.broadcast %47 : vector<1x8x1xf32> to vector<1x8x8xf32>
    %49 = arith.mulf %46, %48 : vector<1x8x8xf32>
    %50 = vector.shape_cast %49 : vector<1x8x8xf32> to vector<8x8xf32>
    %51 = arith.truncf %50 : vector<8x8xf32> to vector<8x8xbf16>
    %c0_19 = arith.constant 0 : index
    %c0_20 = arith.constant 0 : index
    %52 = vector.load %arg15[%c0_19, %c0_20] : memref<8x32xbf16, #tpu.memory_space<vmem>>, vector<8x8xbf16>
    tpu.vector_store %arg15[%c0_19, %c0_20], %51 {strides = array<i32>} : memref<8x32xbf16, #tpu.memory_space<vmem>>, vector<8x8xbf16>,
    %53 = vector.extract_strided_slice %30 {offsets = [0, 8], sizes = [8, 8], strides = [1, 1]} : vector<8x96xbf16> to vector<8x8xbf16>
    %54 = vector.shape_cast %53 : vector<8x8xbf16> to vector<1x8x8xbf16>
    %55 = vector.extract_strided_slice %30 {offsets = [0, 40], sizes = [8, 8], strides = [1, 1]} : vector<8x96xbf16> to vector<8x8xbf16>
    %56 = vector.shape_cast %55 : vector<8x8xbf16> to vector<1x8x8xbf16>
    %57 = vector.extract_strided_slice %30 {offsets = [0, 72], sizes = [8, 8], strides = [1, 1]} : vector<8x96xbf16> to vector<8x8xbf16>
    %58 = vector.shape_cast %57 : vector<8x8xbf16> to vector<1x8x8xbf16>
    "tpu.trace_start"() <{level = 10 : i32, message = "bqd,bkd->bqk"}> : () -> ()
    %cst_21 = arith.constant dense<0.000000e+00> : vector<1x8x8xf32>
    %59 = tpu.matmul %54, %56, %cst_21 {dimension_numbers = #tpu.dot_dimension_numbers<[2], [2], [1], [1], [0, 0, 0, 1, 1, 1], [0], [0]>} : vector<1x8x8xbf16>, vector<1x8x8xbf16>, vector<1x8x8xf32> -> vector<1x8x8xf32>
    "tpu.trace_stop"() : () -> ()
    %cst_22 = arith.constant dense<0xFF800000> : vector<1x8xf32>
    %60 = vector.multi_reduction <maximumf>, %59, %cst_22 [2] : vector<1x8x8xf32> to vector<1x8xf32>
    %61 = vector.shape_cast %60 : vector<1x8xf32> to vector<1x8x1xf32>
    %62 = vector.broadcast %61 : vector<1x8x1xf32> to vector<1x8x8xf32>
    %63 = arith.subf %59, %62 : vector<1x8x8xf32>
    %64 = math.exp %63 : vector<1x8x8xf32>
    %cst_23 = arith.constant dense<0.000000e+00> : vector<1x8xf32>
    %65 = vector.multi_reduction <add>, %64, %cst_23 [2] : vector<1x8x8xf32> to vector<1x8xf32>
    %66 = vector.shape_cast %65 : vector<1x8xf32> to vector<1x8x1xf32>
    %67 = arith.truncf %64 : vector<1x8x8xf32> to vector<1x8x8xbf16>
    "tpu.trace_start"() <{level = 10 : i32, message = "bqk,bkd->bqd"}> : () -> ()
    %cst_24 = arith.constant dense<0.000000e+00> : vector<1x8x8xf32>
    %68 = tpu.matmul %67, %58, %cst_24 {dimension_numbers = #tpu.dot_dimension_numbers<[2], [1], [1], [2], [0, 0, 0, 1, 1, 2], [0], [0]>} : vector<1x8x8xbf16>, vector<1x8x8xbf16>, vector<1x8x8xf32> -> vector<1x8x8xf32>
    "tpu.trace_stop"() : () -> ()
    %69 = tpu.reciprocal %66 {approx = true} : vector<1x8x1xf32> -> vector<1x8x1xf32>
    %70 = vector.broadcast %69 : vector<1x8x1xf32> to vector<1x8x8xf32>
    %71 = arith.mulf %68, %70 : vector<1x8x8xf32>
    %72 = vector.shape_cast %71 : vector<1x8x8xf32> to vector<8x8xf32>
    %73 = arith.truncf %72 : vector<8x8xf32> to vector<8x8xbf16>
    %c0_25 = arith.constant 0 : index
    %c8 = arith.constant 8 : index
    %74 = vector.load %arg15[%c0_25, %c8] : memref<8x32xbf16, #tpu.memory_space<vmem>>, vector<8x8xbf16>
    tpu.vector_store %arg15[%c0_25, %c8], %73 {strides = array<i32>} : memref<8x32xbf16, #tpu.memory_space<vmem>>, vector<8x8xbf16>,
    %75 = vector.extract_strided_slice %30 {offsets = [0, 16], sizes = [8, 8], strides = [1, 1]} : vector<8x96xbf16> to vector<8x8xbf16>
    %76 = vector.shape_cast %75 : vector<8x8xbf16> to vector<1x8x8xbf16>
    %77 = vector.extract_strided_slice %30 {offsets = [0, 48], sizes = [8, 8], strides = [1, 1]} : vector<8x96xbf16> to vector<8x8xbf16>
    %78 = vector.shape_cast %77 : vector<8x8xbf16> to vector<1x8x8xbf16>
    %79 = vector.extract_strided_slice %30 {offsets = [0, 80], sizes = [8, 8], strides = [1, 1]} : vector<8x96xbf16> to vector<8x8xbf16>
    %80 = vector.shape_cast %79 : vector<8x8xbf16> to vector<1x8x8xbf16>
    "tpu.trace_start"() <{level = 10 : i32, message = "bqd,bkd->bqk"}> : () -> ()
    %cst_26 = arith.constant dense<0.000000e+00> : vector<1x8x8xf32>
    %81 = tpu.matmul %76, %78, %cst_26 {dimension_numbers = #tpu.dot_dimension_numbers<[2], [2], [1], [1], [0, 0, 0, 1, 1, 1], [0], [0]>} : vector<1x8x8xbf16>, vector<1x8x8xbf16>, vector<1x8x8xf32> -> vector<1x8x8xf32>
    "tpu.trace_stop"() : () -> ()
    %cst_27 = arith.constant dense<0xFF800000> : vector<1x8xf32>
    %82 = vector.multi_reduction <maximumf>, %81, %cst_27 [2] : vector<1x8x8xf32> to vector<1x8xf32>
    %83 = vector.shape_cast %82 : vector<1x8xf32> to vector<1x8x1xf32>
    %84 = vector.broadcast %83 : vector<1x8x1xf32> to vector<1x8x8xf32>
    %85 = arith.subf %81, %84 : vector<1x8x8xf32>
    %86 = math.exp %85 : vector<1x8x8xf32>
    %cst_28 = arith.constant dense<0.000000e+00> : vector<1x8xf32>
    %87 = vector.multi_reduction <add>, %86, %cst_28 [2] : vector<1x8x8xf32> to vector<1x8xf32>
    %88 = vector.shape_cast %87 : vector<1x8xf32> to vector<1x8x1xf32>
    %89 = arith.truncf %86 : vector<1x8x8xf32> to vector<1x8x8xbf16>
    "tpu.trace_start"() <{level = 10 : i32, message = "bqk,bkd->bqd"}> : () -> ()
    %cst_29 = arith.constant dense<0.000000e+00> : vector<1x8x8xf32>
    %90 = tpu.matmul %89, %80, %cst_29 {dimension_numbers = #tpu.dot_dimension_numbers<[2], [1], [1], [2], [0, 0, 0, 1, 1, 2], [0], [0]>} : vector<1x8x8xbf16>, vector<1x8x8xbf16>, vector<1x8x8xf32> -> vector<1x8x8xf32>
    "tpu.trace_stop"() : () -> ()
    %91 = tpu.reciprocal %88 {approx = true} : vector<1x8x1xf32> -> vector<1x8x1xf32>
    %92 = vector.broadcast %91 : vector<1x8x1xf32> to vector<1x8x8xf32>
    %93 = arith.mulf %90, %92 : vector<1x8x8xf32>
    %94 = vector.shape_cast %93 : vector<1x8x8xf32> to vector<8x8xf32>
    %95 = arith.truncf %94 : vector<8x8xf32> to vector<8x8xbf16>
    %c0_30 = arith.constant 0 : index
    %c16 = arith.constant 16 : index
    %96 = vector.load %arg15[%c0_30, %c16] : memref<8x32xbf16, #tpu.memory_space<vmem>>, vector<8x8xbf16>
    tpu.vector_store %arg15[%c0_30, %c16], %95 {strides = array<i32>} : memref<8x32xbf16, #tpu.memory_space<vmem>>, vector<8x8xbf16>,
    %97 = vector.extract_strided_slice %30 {offsets = [0, 24], sizes = [8, 8], strides = [1, 1]} : vector<8x96xbf16> to vector<8x8xbf16>
    %98 = vector.shape_cast %97 : vector<8x8xbf16> to vector<1x8x8xbf16>
    %99 = vector.extract_strided_slice %30 {offsets = [0, 56], sizes = [8, 8], strides = [1, 1]} : vector<8x96xbf16> to vector<8x8xbf16>
    %100 = vector.shape_cast %99 : vector<8x8xbf16> to vector<1x8x8xbf16>
    %101 = vector.extract_strided_slice %30 {offsets = [0, 88], sizes = [8, 8], strides = [1, 1]} : vector<8x96xbf16> to vector<8x8xbf16>
    %102 = vector.shape_cast %101 : vector<8x8xbf16> to vector<1x8x8xbf16>
    "tpu.trace_start"() <{level = 10 : i32, message = "bqd,bkd->bqk"}> : () -> ()
    %cst_31 = arith.constant dense<0.000000e+00> : vector<1x8x8xf32>
    %103 = tpu.matmul %98, %100, %cst_31 {dimension_numbers = #tpu.dot_dimension_numbers<[2], [2], [1], [1], [0, 0, 0, 1, 1, 1], [0], [0]>} : vector<1x8x8xbf16>, vector<1x8x8xbf16>, vector<1x8x8xf32> -> vector<1x8x8xf32>
    "tpu.trace_stop"() : () -> ()
    %cst_32 = arith.constant dense<0xFF800000> : vector<1x8xf32>
    %104 = vector.multi_reduction <maximumf>, %103, %cst_32 [2] : vector<1x8x8xf32> to vector<1x8xf32>
    %105 = vector.shape_cast %104 : vector<1x8xf32> to vector<1x8x1xf32>
    %106 = vector.broadcast %105 : vector<1x8x1xf32> to vector<1x8x8xf32>
    %107 = arith.subf %103, %106 : vector<1x8x8xf32>
    %108 = math.exp %107 : vector<1x8x8xf32>
    %cst_33 = arith.constant dense<0.000000e+00> : vector<1x8xf32>
    %109 = vector.multi_reduction <add>, %108, %cst_33 [2] : vector<1x8x8xf32> to vector<1x8xf32>
    %110 = vector.shape_cast %109 : vector<1x8xf32> to vector<1x8x1xf32>
    %111 = arith.truncf %108 : vector<1x8x8xf32> to vector<1x8x8xbf16>
    "tpu.trace_start"() <{level = 10 : i32, message = "bqk,bkd->bqd"}> : () -> ()
    %cst_34 = arith.constant dense<0.000000e+00> : vector<1x8x8xf32>
    %112 = tpu.matmul %111, %102, %cst_34 {dimension_numbers = #tpu.dot_dimension_numbers<[2], [1], [1], [2], [0, 0, 0, 1, 1, 2], [0], [0]>} : vector<1x8x8xbf16>, vector<1x8x8xbf16>, vector<1x8x8xf32> -> vector<1x8x8xf32>
    "tpu.trace_stop"() : () -> ()
    %113 = tpu.reciprocal %110 {approx = true} : vector<1x8x1xf32> -> vector<1x8x1xf32>
    %114 = vector.broadcast %113 : vector<1x8x1xf32> to vector<1x8x8xf32>
    %115 = arith.mulf %112, %114 : vector<1x8x8xf32>
    %116 = vector.shape_cast %115 : vector<1x8x8xf32> to vector<8x8xf32>
    %117 = arith.truncf %116 : vector<8x8xf32> to vector<8x8xbf16>
    %c0_35 = arith.constant 0 : index
    %c24 = arith.constant 24 : index
    %118 = vector.load %arg15[%c0_35, %c24] : memref<8x32xbf16, #tpu.memory_space<vmem>>, vector<8x8xbf16>
    tpu.vector_store %arg15[%c0_35, %c24], %117 {strides = array<i32>} : memref<8x32xbf16, #tpu.memory_space<vmem>>, vector<8x8xbf16>,
    %c0_36 = arith.constant 0 : index
    %c0_37 = arith.constant 0 : index
    %119 = vector.load %arg15[%c0_36, %c0_37] : memref<8x32xbf16, #tpu.memory_space<vmem>>, vector<8x32xbf16>
    %c0_38 = arith.constant 0 : index
    %c0_39 = arith.constant 0 : index
    %120 = vector.load %arg6[%c0_38, %c0_39] : memref<32x32xbf16, #tpu.memory_space<vmem>>, vector<32x32xbf16>
    %cst_40 = arith.constant dense<0.000000e+00> : vector<8x32xf32>
    %121 = tpu.matmul %119, %120, %cst_40 {dimension_numbers = #tpu.dot_dimension_numbers<[1], [0], [0], [1], [0, 0, 1, 1], [], []>} : vector<8x32xbf16>, vector<32x32xbf16>, vector<8x32xf32> -> vector<8x32xf32>
    %c0_41 = arith.constant 0 : index
    %c0_42 = arith.constant 0 : index
    %122 = vector.load %arg7[%c0_41, %c0_42] : memref<1x32xf32, #tpu.memory_space<vmem>>, vector<1x32xf32>
    %123 = vector.broadcast %122 : vector<1x32xf32> to vector<8x32xf32>
    %124 = arith.addf %121, %123 : vector<8x32xf32>
    %125 = arith.addf %1, %124 : vector<8x32xf32>
    %c0_43 = arith.constant 0 : index
    %c0_44 = arith.constant 0 : index
    %126 = vector.load %arg8[%c0_43, %c0_44] : memref<1x32xf32, #tpu.memory_space<vmem>>, vector<1x32xf32>
    %c0_45 = arith.constant 0 : index
    %c0_46 = arith.constant 0 : index
    %127 = vector.load %arg9[%c0_45, %c0_46] : memref<1x32xf32, #tpu.memory_space<vmem>>, vector<1x32xf32>
    %cst_47 = arith.constant dense<0.000000e+00> : vector<8xf32>
    %128 = vector.multi_reduction <add>, %125, %cst_47 [1] : vector<8x32xf32> to vector<8xf32>
    %129 = vector.shape_cast %128 : vector<8xf32> to vector<8x1xf32>
    %cst_48 = arith.constant 3.200000e+01 : f32
    %130 = vector.broadcast %cst_48 : f32 to vector<8x1xf32>
    %131 = arith.divf %129, %130 : vector<8x1xf32>
    %132 = vector.broadcast %131 : vector<8x1xf32> to vector<8x32xf32>
    %133 = arith.subf %125, %132 : vector<8x32xf32>
    %134 = arith.mulf %133, %133 : vector<8x32xf32>
    %cst_49 = arith.constant dense<0.000000e+00> : vector<8xf32>
    %135 = vector.multi_reduction <add>, %134, %cst_49 [1] : vector<8x32xf32> to vector<8xf32>
    %136 = vector.shape_cast %135 : vector<8xf32> to vector<8x1xf32>
    %cst_50 = arith.constant 3.200000e+01 : f32
    %137 = vector.broadcast %cst_50 : f32 to vector<8x1xf32>
    %138 = arith.divf %136, %137 : vector<8x1xf32>
    %cst_51 = arith.constant 9.99999974E-6 : f32
    %139 = vector.broadcast %cst_51 : f32 to vector<8x1xf32>
    %140 = arith.addf %138, %139 : vector<8x1xf32>
    %141 = math.rsqrt %140 : vector<8x1xf32>
    %142 = vector.broadcast %141 : vector<8x1xf32> to vector<8x32xf32>
    %143 = arith.mulf %133, %142 : vector<8x32xf32>
    %144 = vector.broadcast %126 : vector<1x32xf32> to vector<8x32xf32>
    %145 = arith.mulf %143, %144 : vector<8x32xf32>
    %146 = vector.broadcast %127 : vector<1x32xf32> to vector<8x32xf32>
    %147 = arith.addf %145, %146 : vector<8x32xf32>
    %148 = arith.truncf %147 : vector<8x32xf32> to vector<8x32xbf16>
    %c0_52 = arith.constant 0 : index
    %c0_53 = arith.constant 0 : index
    %149 = vector.load %arg10[%c0_52, %c0_53] : memref<32x64xbf16, #tpu.memory_space<vmem>>, vector<32x64xbf16>
    %cst_54 = arith.constant dense<0.000000e+00> : vector<8x64xf32>
    %150 = tpu.matmul %148, %149, %cst_54 {dimension_numbers = #tpu.dot_dimension_numbers<[1], [0], [0], [1], [0, 0, 1, 1], [], []>} : vector<8x32xbf16>, vector<32x64xbf16>, vector<8x64xf32> -> vector<8x64xf32>
    %c0_55 = arith.constant 0 : index
    %c0_56 = arith.constant 0 : index
    %151 = vector.load %arg11[%c0_55, %c0_56] : memref<1x64xf32, #tpu.memory_space<vmem>>, vector<1x64xf32>
    %152 = vector.broadcast %151 : vector<1x64xf32> to vector<8x64xf32>
    %153 = arith.addf %150, %152 : vector<8x64xf32>
    %cst_57 = arith.constant 5.000000e-01 : f32
    %154 = vector.broadcast %cst_57 : f32 to vector<8x64xf32>
    %155 = arith.mulf %154, %153 : vector<8x64xf32>
    %cst_58 = arith.constant 4.471500e-02 : f32
    %156 = vector.broadcast %cst_58 : f32 to vector<8x64xf32>
    %157 = arith.mulf %156, %153 : vector<8x64xf32>
    %158 = arith.mulf %157, %153 : vector<8x64xf32>
    %159 = arith.mulf %158, %153 : vector<8x64xf32>
    %160 = arith.addf %153, %159 : vector<8x64xf32>
    %cst_59 = arith.constant 0.797884583 : f32
    %161 = vector.broadcast %cst_59 : f32 to vector<8x64xf32>
    %162 = arith.mulf %161, %160 : vector<8x64xf32>
    %163 = math.tanh %162 : vector<8x64xf32>
    %cst_60 = arith.constant 1.000000e+00 : f32
    %164 = vector.broadcast %cst_60 : f32 to vector<8x64xf32>
    %165 = arith.addf %164, %163 : vector<8x64xf32>
    %166 = arith.mulf %155, %165 : vector<8x64xf32>
    %167 = arith.truncf %166 : vector<8x64xf32> to vector<8x64xbf16>
    %c0_61 = arith.constant 0 : index
    %c0_62 = arith.constant 0 : index
    %168 = vector.load %arg12[%c0_61, %c0_62] : memref<64x32xbf16, #tpu.memory_space<vmem>>, vector<64x32xbf16>
    %cst_63 = arith.constant dense<0.000000e+00> : vector<8x32xf32>
    %169 = tpu.matmul %167, %168, %cst_63 {dimension_numbers = #tpu.dot_dimension_numbers<[1], [0], [0], [1], [0, 0, 1, 1], [], []>} : vector<8x64xbf16>, vector<64x32xbf16>, vector<8x32xf32> -> vector<8x32xf32>
    %c0_64 = arith.constant 0 : index
    %c0_65 = arith.constant 0 : index
    %170 = vector.load %arg13[%c0_64, %c0_65] : memref<1x32xf32, #tpu.memory_space<vmem>>, vector<1x32xf32>
    %171 = vector.broadcast %170 : vector<1x32xf32> to vector<8x32xf32>
    %172 = arith.addf %169, %171 : vector<8x32xf32>
    %173 = arith.addf %125, %172 : vector<8x32xf32>
    %174 = vector.shape_cast %173 : vector<8x32xf32> to vector<1x8x32xf32>
    %c0_66 = arith.constant 0 : index
    %c0_67 = arith.constant 0 : index
    %c0_68 = arith.constant 0 : index
    %175 = vector.load %arg14[%c0_66, %c0_67, %c0_68] : memref<1x8x32xf32, #tpu.memory_space<vmem>>, vector<1x8x32xf32>
    tpu.vector_store %arg14[%c0_66, %c0_67, %c0_68], %174 {strides = array<i32>} : memref<1x8x32xf32, #tpu.memory_space<vmem>>, vector<1x8x32xf32>,
    return
  }
  func.func @transform_0(%arg0: i32) -> (i32, i32, i32) {
    %c0_i32 = arith.constant 0 : i32
    %c0_i32_0 = arith.constant 0 : i32
    %c0_i32_1 = arith.constant 0 : i32
    return %arg0, %c0_i32, %c0_i32_0 : i32, i32, i32
  }
  func.func @transform_1(%arg0: i32) -> (i32, i32) {
    %c0_i32 = arith.constant 0 : i32
    %c0_i32_0 = arith.constant 0 : i32
    %c0_i32_1 = arith.constant 0 : i32
    return %c0_i32, %c0_i32_0 : i32, i32
  }
  func.func @transform_2(%arg0: i32) -> (i32, i32) {
    %c0_i32 = arith.constant 0 : i32
    %c0_i32_0 = arith.constant 0 : i32
    %c0_i32_1 = arith.constant 0 : i32
    return %c0_i32, %c0_i32_0 : i32, i32
  }
  func.func @transform_3(%arg0: i32) -> (i32, i32) {
    %c0_i32 = arith.constant 0 : i32
    %c0_i32_0 = arith.constant 0 : i32
    %c0_i32_1 = arith.constant 0 : i32
    return %c0_i32, %c0_i32_0 : i32, i32
  }
  func.func @transform_4(%arg0: i32) -> (i32, i32) {
    %c0_i32 = arith.constant 0 : i32
    %c0_i32_0 = arith.constant 0 : i32
    %c0_i32_1 = arith.constant 0 : i32
    return %c0_i32, %c0_i32_0 : i32, i32
  }
  func.func @transform_5(%arg0: i32) -> (i32, i32) {
    %c0_i32 = arith.constant 0 : i32
    %c0_i32_0 = arith.constant 0 : i32
    %c0_i32_1 = arith.constant 0 : i32
    return %c0_i32, %c0_i32_0 : i32, i32
  }
  func.func @transform_6(%arg0: i32) -> (i32, i32) {
    %c0_i32 = arith.constant 0 : i32
    %c0_i32_0 = arith.constant 0 : i32
    %c0_i32_1 = arith.constant 0 : i32
    return %c0_i32, %c0_i32_0 : i32, i32
  }
  func.func @transform_7(%arg0: i32) -> (i32, i32) {
    %c0_i32 = arith.constant 0 : i32
    %c0_i32_0 = arith.constant 0 : i32
    %c0_i32_1 = arith.constant 0 : i32
    return %c0_i32, %c0_i32_0 : i32, i32
  }
  func.func @transform_8(%arg0: i32) -> (i32, i32) {
    %c0_i32 = arith.constant 0 : i32
    %c0_i32_0 = arith.constant 0 : i32
    %c0_i32_1 = arith.constant 0 : i32
    return %c0_i32, %c0_i32_0 : i32, i32
  }
  func.func @transform_9(%arg0: i32) -> (i32, i32) {
    %c0_i32 = arith.constant 0 : i32
    %c0_i32_0 = arith.constant 0 : i32
    %c0_i32_1 = arith.constant 0 : i32
    return %c0_i32, %c0_i32_0 : i32, i32
  }
  func.func @transform_10(%arg0: i32) -> (i32, i32) {
    %c0_i32 = arith.constant 0 : i32
    %c0_i32_0 = arith.constant 0 : i32
    %c0_i32_1 = arith.constant 0 : i32
    return %c0_i32, %c0_i32_0 : i32, i32
  }
  func.func @transform_11(%arg0: i32) -> (i32, i32) {
    %c0_i32 = arith.constant 0 : i32
    %c0_i32_0 = arith.constant 0 : i32
    %c0_i32_1 = arith.constant 0 : i32
    return %c0_i32, %c0_i32_0 : i32, i32
  }
  func.func @transform_12(%arg0: i32) -> (i32, i32) {
    %c0_i32 = arith.constant 0 : i32
    %c0_i32_0 = arith.constant 0 : i32
    %c0_i32_1 = arith.constant 0 : i32
    return %c0_i32, %c0_i32_0 : i32, i32
  }
  func.func @transform_13(%arg0: i32) -> (i32, i32, i32) {
    %c0_i32 = arith.constant 0 : i32
    %c0_i32_0 = arith.constant 0 : i32
    %c0_i32_1 = arith.constant 0 : i32
    return %arg0, %c0_i32, %c0_i32_0 : i32, i32, i32
  }
}

module attributes {stable_mosaic.version = 11 : i64} {
  func.func @prenorm_attn_kernel(%arg0: i32, %arg1: memref<1x8x32xf32, #tpu.memory_space<vmem>>, %arg2: memref<1x32xf32, #tpu.memory_space<vmem>>, %arg3: memref<1x32xf32, #tpu.memory_space<vmem>>, %arg4: memref<32x96xbf16, #tpu.memory_space<vmem>>, %arg5: memref<1x96xf32, #tpu.memory_space<vmem>>, %arg6: memref<32x32xbf16, #tpu.memory_space<vmem>>, %arg7: memref<1x32xf32, #tpu.memory_space<vmem>>, %arg8: memref<1x32xf32, #tpu.memory_space<vmem>>, %arg9: memref<1x32xf32, #tpu.memory_space<vmem>>, %arg10: memref<32x64xbf16, #tpu.memory_space<vmem>>, %arg11: memref<1x64xf32, #tpu.memory_space<vmem>>, %arg12: memref<64x32xbf16, #tpu.memory_space<vmem>>, %arg13: memref<1x32xf32, #tpu.memory_space<vmem>>, %arg14: memref<1x8x32xf32, #tpu.memory_space<vmem>>, %arg15: memref<8x32xbf16, #tpu.memory_space<vmem>>) attributes {dimension_semantics = [#tpu.dimension_semantics<parallel>], iteration_bounds = array<i64: 2>, scalar_prefetch = 0 : i64, scratch_operands = 1 : i64, tpu.core_type = #tpu.core_type<tc>, window_params = [{transform_indices = @transform_0, window_bounds = array<i64: 1, 8, 32>}, {pipeline_mode = #tpu.pipeline_mode<synchronous>, transform_indices = @transform_1, window_bounds = array<i64: 1, 32>}, {pipeline_mode = #tpu.pipeline_mode<synchronous>, transform_indices = @transform_2, window_bounds = array<i64: 1, 32>}, {pipeline_mode = #tpu.pipeline_mode<synchronous>, transform_indices = @transform_3, window_bounds = array<i64: 32, 96>}, {pipeline_mode = #tpu.pipeline_mode<synchronous>, transform_indices = @transform_4, window_bounds = array<i64: 1, 96>}, {pipeline_mode = #tpu.pipeline_mode<synchronous>, transform_indices = @transform_5, window_bounds = array<i64: 32, 32>}, {pipeline_mode = #tpu.pipeline_mode<synchronous>, transform_indices = @transform_6, window_bounds = array<i64: 1, 32>}, {pipeline_mode = #tpu.pipeline_mode<synchronous>, transform_indices = @transform_7, window_bounds = array<i64: 1, 32>}, {pipeline_mode = #tpu.pipeline_mode<synchronous>, transform_indices = @transform_8, window_bounds = array<i64: 1, 32>}, {pipeline_mode = #tpu.pipeline_mode<synchronous>, transform_indices = @transform_9, window_bounds = array<i64: 32, 64>}, {pipeline_mode = #tpu.pipeline_mode<synchronous>, transform_indices = @transform_10, window_bounds = array<i64: 1, 64>}, {pipeline_mode = #tpu.pipeline_mode<synchronous>, transform_indices = @transform_11, window_bounds = array<i64: 64, 32>}, {pipeline_mode = #tpu.pipeline_mode<synchronous>, transform_indices = @transform_12, window_bounds = array<i64: 1, 32>}, {transform_indices = @transform_13, window_bounds = array<i64: 1, 8, 32>}]} {
    %c0 = arith.constant 0 : index
    %c0_0 = arith.constant 0 : index
    %c0_1 = arith.constant 0 : index
    %0 = vector.load %arg1[%c0, %c0_0, %c0_1] : memref<1x8x32xf32, #tpu.memory_space<vmem>>, vector<1x8x32xf32>
    %1 = vector.shape_cast %0 : vector<1x8x32xf32> to vector<8x32xf32>
    %c0_2 = arith.constant 0 : index
    %c0_3 = arith.constant 0 : index
    %2 = vector.load %arg2[%c0_2, %c0_3] : memref<1x32xf32, #tpu.memory_space<vmem>>, vector<1x32xf32>
    %c0_4 = arith.constant 0 : index
    %c0_5 = arith.constant 0 : index
    %3 = vector.load %arg3[%c0_4, %c0_5] : memref<1x32xf32, #tpu.memory_space<vmem>>, vector<1x32xf32>
    %cst = arith.constant dense<0.000000e+00> : vector<8xf32>
    %4 = vector.multi_reduction <add>, %1, %cst [1] : vector<8x32xf32> to vector<8xf32>
    %5 = vector.shape_cast %4 : vector<8xf32> to vector<8x1xf32>
    %cst_6 = arith.constant 3.200000e+01 : f32
    %6 = vector.broadcast %cst_6 : f32 to vector<8x1xf32>
    %7 = arith.divf %5, %6 : vector<8x1xf32>
    %8 = vector.broadcast %7 : vector<8x1xf32> to vector<8x32xf32>
    %9 = arith.subf %1, %8 : vector<8x32xf32>
    %10 = arith.mulf %9, %9 : vector<8x32xf32>
    %cst_7 = arith.constant dense<0.000000e+00> : vector<8xf32>
    %11 = vector.multi_reduction <add>, %10, %cst_7 [1] : vector<8x32xf32> to vector<8xf32>
    %12 = vector.shape_cast %11 : vector<8xf32> to vector<8x1xf32>
    %cst_8 = arith.constant 3.200000e+01 : f32
    %13 = vector.broadcast %cst_8 : f32 to vector<8x1xf32>
    %14 = arith.divf %12, %13 : vector<8x1xf32>
    %cst_9 = arith.constant 9.99999974E-6 : f32
    %15 = vector.broadcast %cst_9 : f32 to vector<8x1xf32>
    %16 = arith.addf %14, %15 : vector<8x1xf32>
    %17 = math.rsqrt %16 : vector<8x1xf32>
    %18 = vector.broadcast %17 : vector<8x1xf32> to vector<8x32xf32>
    %19 = arith.mulf %9, %18 : vector<8x32xf32>
    %20 = vector.broadcast %2 : vector<1x32xf32> to vector<8x32xf32>
    %21 = arith.mulf %19, %20 : vector<8x32xf32>
    %22 = vector.broadcast %3 : vector<1x32xf32> to vector<8x32xf32>
    %23 = arith.addf %21, %22 : vector<8x32xf32>
    %24 = arith.truncf %23 : vector<8x32xf32> to vector<8x32xbf16>
    %c0_10 = arith.constant 0 : index
    %c0_11 = arith.constant 0 : index
    %25 = vector.load %arg4[%c0_10, %c0_11] : memref<32x96xbf16, #tpu.memory_space<vmem>>, vector<32x96xbf16>
    %cst_12 = arith.constant dense<0.000000e+00> : vector<8x96xf32>
    %26 = tpu.matmul %24, %25, %cst_12 {dimension_numbers = #tpu.dot_dimension_numbers<[1], [0], [0], [1], [0, 0, 1, 1], [], []>} : vector<8x32xbf16>, vector<32x96xbf16>, vector<8x96xf32> -> vector<8x96xf32>
    %c0_13 = arith.constant 0 : index
    %c0_14 = arith.constant 0 : index
    %27 = vector.load %arg5[%c0_13, %c0_14] : memref<1x96xf32, #tpu.memory_space<vmem>>, vector<1x96xf32>
    %28 = vector.broadcast %27 : vector<1x96xf32> to vector<8x96xf32>
    %29 = arith.addf %26, %28 : vector<8x96xf32>
    %30 = arith.truncf %29 : vector<8x96xf32> to vector<8x96xbf16>
    %31 = vector.extract_strided_slice %30 {offsets = [0, 0], sizes = [8, 8], strides = [1, 1]} : vector<8x96xbf16> to vector<8x8xbf16>
    %32 = vector.shape_cast %31 : vector<8x8xbf16> to vector<1x8x8xbf16>
    %33 = vector.extract_strided_slice %30 {offsets = [0, 32], sizes = [8, 8], strides = [1, 1]} : vector<8x96xbf16> to vector<8x8xbf16>
    %34 = vector.shape_cast %33 : vector<8x8xbf16> to vector<1x8x8xbf16>
    %35 = vector.extract_strided_slice %30 {offsets = [0, 64], sizes = [8, 8], strides = [1, 1]} : vector<8x96xbf16> to vector<8x8xbf16>
    %36 = vector.shape_cast %35 : vector<8x8xbf16> to vector<1x8x8xbf16>
    "tpu.trace_start"() <{level = 10 : i32, message = "bqd,bkd->bqk"}> : () -> ()
    %cst_15 = arith.constant dense<0.000000e+00> : vector<1x8x8xf32>
    %37 = tpu.matmul %32, %34, %cst_15 {dimension_numbers = #tpu.dot_dimension_numbers<[2], [2], [1], [1], [0, 0, 0, 1, 1, 1], [0], [0]>} : vector<1x8x8xbf16>, vector<1x8x8xbf16>, vector<1x8x8xf32> -> vector<1x8x8xf32>
    "tpu.trace_stop"() : () -> ()
    %cst_16 = arith.constant dense<0xFF800000> : vector<1x8xf32>
    %38 = vector.multi_reduction <maximumf>, %37, %cst_16 [2] : vector<1x8x8xf32> to vector<1x8xf32>
    %39 = vector.shape_cast %38 : vector<1x8xf32> to vector<1x8x1xf32>
    %40 = vector.broadcast %39 : vector<1x8x1xf32> to vector<1x8x8xf32>
    %41 = arith.subf %37, %40 : vector<1x8x8xf32>
    %42 = math.exp %41 : vector<1x8x8xf32>
    %cst_17 = arith.constant dense<0.000000e+00> : vector<1x8xf32>
    %43 = vector.multi_reduction <add>, %42, %cst_17 [2] : vector<1x8x8xf32> to vector<1x8xf32>
    %44 = vector.shape_cast %43 : vector<1x8xf32> to vector<1x8x1xf32>
    %45 = arith.truncf %42 : vector<1x8x8xf32> to vector<1x8x8xbf16>
    "tpu.trace_start"() <{level = 10 : i32, message = "bqk,bkd->bqd"}> : () -> ()
    %cst_18 = arith.constant dense<0.000000e+00> : vector<1x8x8xf32>
    %46 = tpu.matmul %45, %36, %cst_18 {dimension_numbers = #tpu.dot_dimension_numbers<[2], [1], [1], [2], [0, 0, 0, 1, 1, 2], [0], [0]>} : vector<1x8x8xbf16>, vector<1x8x8xbf16>, vector<1x8x8xf32> -> vector<1x8x8xf32>
    "tpu.trace_stop"() : () -> ()
    %47 = tpu.reciprocal %44 {approx = true} : vector<1x8x1xf32> -> vector<1x8x1xf32>
    %48 = vector.broadcast %47 : vector<1x8x1xf32> to vector<1x8x8xf32>
    %49 = arith.mulf %46, %48 : vector<1x8x8xf32>
    %50 = vector.shape_cast %49 : vector<1x8x8xf32> to vector<8x8xf32>
    %51 = arith.truncf %50 : vector<8x8xf32> to vector<8x8xbf16>
    %c0_19 = arith.constant 0 : index
    %c0_20 = arith.constant 0 : index
    %52 = vector.load %arg15[%c0_19, %c0_20] : memref<8x32xbf16, #tpu.memory_space<vmem>>, vector<8x8xbf16>
    tpu.vector_store %arg15[%c0_19, %c0_20], %51 {strides = array<i32>} : memref<8x32xbf16, #tpu.memory_space<vmem>>, vector<8x8xbf16>,
    %53 = vector.extract_strided_slice %30 {offsets = [0, 8], sizes = [8, 8], strides = [1, 1]} : vector<8x96xbf16> to vector<8x8xbf16>
    %54 = vector.shape_cast %53 : vector<8x8xbf16> to vector<1x8x8xbf16>
    %55 = vector.extract_strided_slice %30 {offsets = [0, 40], sizes = [8, 8], strides = [1, 1]} : vector<8x96xbf16> to vector<8x8xbf16>
    %56 = vector.shape_cast %55 : vector<8x8xbf16> to vector<1x8x8xbf16>
    %57 = vector.extract_strided_slice %30 {offsets = [0, 72], sizes = [8, 8], strides = [1, 1]} : vector<8x96xbf16> to vector<8x8xbf16>
    %58 = vector.shape_cast %57 : vector<8x8xbf16> to vector<1x8x8xbf16>
    "tpu.trace_start"() <{level = 10 : i32, message = "bqd,bkd->bqk"}> : () -> ()
    %cst_21 = arith.constant dense<0.000000e+00> : vector<1x8x8xf32>
    %59 = tpu.matmul %54, %56, %cst_21 {dimension_numbers = #tpu.dot_dimension_numbers<[2], [2], [1], [1], [0, 0, 0, 1, 1, 1], [0], [0]>} : vector<1x8x8xbf16>, vector<1x8x8xbf16>, vector<1x8x8xf32> -> vector<1x8x8xf32>
    "tpu.trace_stop"() : () -> ()
    %cst_22 = arith.constant dense<0xFF800000> : vector<1x8xf32>
    %60 = vector.multi_reduction <maximumf>, %59, %cst_22 [2] : vector<1x8x8xf32> to vector<1x8xf32>
    %61 = vector.shape_cast %60 : vector<1x8xf32> to vector<1x8x1xf32>
    %62 = vector.broadcast %61 : vector<1x8x1xf32> to vector<1x8x8xf32>
    %63 = arith.subf %59, %62 : vector<1x8x8xf32>
    %64 = math.exp %63 : vector<1x8x8xf32>
    %cst_23 = arith.constant dense<0.000000e+00> : vector<1x8xf32>
    %65 = vector.multi_reduction <add>, %64, %cst_23 [2] : vector<1x8x8xf32> to vector<1x8xf32>
    %66 = vector.shape_cast %65 : vector<1x8xf32> to vector<1x8x1xf32>
    %67 = arith.truncf %64 : vector<1x8x8xf32> to vector<1x8x8xbf16>
    "tpu.trace_start"() <{level = 10 : i32, message = "bqk,bkd->bqd"}> : () -> ()
    %cst_24 = arith.constant dense<0.000000e+00> : vector<1x8x8xf32>
    %68 = tpu.matmul %67, %58, %cst_24 {dimension_numbers = #tpu.dot_dimension_numbers<[2], [1], [1], [2], [0, 0, 0, 1, 1, 2], [0], [0]>} : vector<1x8x8xbf16>, vector<1x8x8xbf16>, vector<1x8x8xf32> -> vector<1x8x8xf32>
    "tpu.trace_stop"() : () -> ()
    %69 = tpu.reciprocal %66 {approx = true} : vector<1x8x1xf32> -> vector<1x8x1xf32>
    %70 = vector.broadcast %69 : vector<1x8x1xf32> to vector<1x8x8xf32>
    %71 = arith.mulf %68, %70 : vector<1x8x8xf32>
    %72 = vector.shape_cast %71 : vector<1x8x8xf32> to vector<8x8xf32>
    %73 = arith.truncf %72 : vector<8x8xf32> to vector<8x8xbf16>
    %c0_25 = arith.constant 0 : index
    %c8 = arith.constant 8 : index
    %74 = vector.load %arg15[%c0_25, %c8] : memref<8x32xbf16, #tpu.memory_space<vmem>>, vector<8x8xbf16>
    tpu.vector_store %arg15[%c0_25, %c8], %73 {strides = array<i32>} : memref<8x32xbf16, #tpu.memory_space<vmem>>, vector<8x8xbf16>,
    %75 = vector.extract_strided_slice %30 {offsets = [0, 16], sizes = [8, 8], strides = [1, 1]} : vector<8x96xbf16> to vector<8x8xbf16>
    %76 = vector.shape_cast %75 : vector<8x8xbf16> to vector<1x8x8xbf16>
    %77 = vector.extract_strided_slice %30 {offsets = [0, 48], sizes = [8, 8], strides = [1, 1]} : vector<8x96xbf16> to vector<8x8xbf16>
    %78 = vector.shape_cast %77 : vector<8x8xbf16> to vector<1x8x8xbf16>
    %79 = vector.extract_strided_slice %30 {offsets = [0, 80], sizes = [8, 8], strides = [1, 1]} : vector<8x96xbf16> to vector<8x8xbf16>
    %80 = vector.shape_cast %79 : vector<8x8xbf16> to vector<1x8x8xbf16>
    "tpu.trace_start"() <{level = 10 : i32, message = "bqd,bkd->bqk"}> : () -> ()
    %cst_26 = arith.constant dense<0.000000e+00> : vector<1x8x8xf32>
    %81 = tpu.matmul %76, %78, %cst_26 {dimension_numbers = #tpu.dot_dimension_numbers<[2], [2], [1], [1], [0, 0, 0, 1, 1, 1], [0], [0]>} : vector<1x8x8xbf16>, vector<1x8x8xbf16>, vector<1x8x8xf32> -> vector<1x8x8xf32>
    "tpu.trace_stop"() : () -> ()
    %cst_27 = arith.constant dense<0xFF800000> : vector<1x8xf32>
    %82 = vector.multi_reduction <maximumf>, %81, %cst_27 [2] : vector<1x8x8xf32> to vector<1x8xf32>
    %83 = vector.shape_cast %82 : vector<1x8xf32> to vector<1x8x1xf32>
    %84 = vector.broadcast %83 : vector<1x8x1xf32> to vector<1x8x8xf32>
    %85 = arith.subf %81, %84 : vector<1x8x8xf32>
    %86 = math.exp %85 : vector<1x8x8xf32>
    %cst_28 = arith.constant dense<0.000000e+00> : vector<1x8xf32>
    %87 = vector.multi_reduction <add>, %86, %cst_28 [2] : vector<1x8x8xf32> to vector<1x8xf32>
    %88 = vector.shape_cast %87 : vector<1x8xf32> to vector<1x8x1xf32>
    %89 = arith.truncf %86 : vector<1x8x8xf32> to vector<1x8x8xbf16>
    "tpu.trace_start"() <{level = 10 : i32, message = "bqk,bkd->bqd"}> : () -> ()
    %cst_29 = arith.constant dense<0.000000e+00> : vector<1x8x8xf32>
    %90 = tpu.matmul %89, %80, %cst_29 {dimension_numbers = #tpu.dot_dimension_numbers<[2], [1], [1], [2], [0, 0, 0, 1, 1, 2], [0], [0]>} : vector<1x8x8xbf16>, vector<1x8x8xbf16>, vector<1x8x8xf32> -> vector<1x8x8xf32>
    "tpu.trace_stop"() : () -> ()
    %91 = tpu.reciprocal %88 {approx = true} : vector<1x8x1xf32> -> vector<1x8x1xf32>
    %92 = vector.broadcast %91 : vector<1x8x1xf32> to vector<1x8x8xf32>
    %93 = arith.mulf %90, %92 : vector<1x8x8xf32>
    %94 = vector.shape_cast %93 : vector<1x8x8xf32> to vector<8x8xf32>
    %95 = arith.truncf %94 : vector<8x8xf32> to vector<8x8xbf16>
    %c0_30 = arith.constant 0 : index
    %c16 = arith.constant 16 : index
    %96 = vector.load %arg15[%c0_30, %c16] : memref<8x32xbf16, #tpu.memory_space<vmem>>, vector<8x8xbf16>
    tpu.vector_store %arg15[%c0_30, %c16], %95 {strides = array<i32>} : memref<8x32xbf16, #tpu.memory_space<vmem>>, vector<8x8xbf16>,
    %97 = vector.extract_strided_slice %30 {offsets = [0, 24], sizes = [8, 8], strides = [1, 1]} : vector<8x96xbf16> to vector<8x8xbf16>
    %98 = vector.shape_cast %97 : vector<8x8xbf16> to vector<1x8x8xbf16>
    %99 = vector.extract_strided_slice %30 {offsets = [0, 56], sizes = [8, 8], strides = [1, 1]} : vector<8x96xbf16> to vector<8x8xbf16>
    %100 = vector.shape_cast %99 : vector<8x8xbf16> to vector<1x8x8xbf16>
    %101 = vector.extract_strided_slice %30 {offsets = [0, 88], sizes = [8, 8], strides = [1, 1]} : vector<8x96xbf16> to vector<8x8xbf16>
    %102 = vector.shape_cast %101 : vector<8x8xbf16> to vector<1x8x8xbf16>
    "tpu.trace_start"() <{level = 10 : i32, message = "bqd,bkd->bqk"}> : () -> ()
    %cst_31 = arith.constant dense<0.000000e+00> : vector<1x8x8xf32>
    %103 = tpu.matmul %98, %100, %cst_31 {dimension_numbers = #tpu.dot_dimension_numbers<[2], [2], [1], [1], [0, 0, 0, 1, 1, 1], [0], [0]>} : vector<1x8x8xbf16>, vector<1x8x8xbf16>, vector<1x8x8xf32> -> vector<1x8x8xf32>
    "tpu.trace_stop"() : () -> ()
    %cst_32 = arith.constant dense<0xFF800000> : vector<1x8xf32>
    %104 = vector.multi_reduction <maximumf>, %103, %cst_32 [2] : vector<1x8x8xf32> to vector<1x8xf32>
    %105 = vector.shape_cast %104 : vector<1x8xf32> to vector<1x8x1xf32>
    %106 = vector.broadcast %105 : vector<1x8x1xf32> to vector<1x8x8xf32>
    %107 = arith.subf %103, %106 : vector<1x8x8xf32>
    %108 = math.exp %107 : vector<1x8x8xf32>
    %cst_33 = arith.constant dense<0.000000e+00> : vector<1x8xf32>
    %109 = vector.multi_reduction <add>, %108, %cst_33 [2] : vector<1x8x8xf32> to vector<1x8xf32>
    %110 = vector.shape_cast %109 : vector<1x8xf32> to vector<1x8x1xf32>
    %111 = arith.truncf %108 : vector<1x8x8xf32> to vector<1x8x8xbf16>
    "tpu.trace_start"() <{level = 10 : i32, message = "bqk,bkd->bqd"}> : () -> ()
    %cst_34 = arith.constant dense<0.000000e+00> : vector<1x8x8xf32>
    %112 = tpu.matmul %111, %102, %cst_34 {dimension_numbers = #tpu.dot_dimension_numbers<[2], [1], [1], [2], [0, 0, 0, 1, 1, 2], [0], [0]>} : vector<1x8x8xbf16>, vector<1x8x8xbf16>, vector<1x8x8xf32> -> vector<1x8x8xf32>
    "tpu.trace_stop"() : () -> ()
    %113 = tpu.reciprocal %110 {approx = true} : vector<1x8x1xf32> -> vector<1x8x1xf32>
    %114 = vector.broadcast %113 : vector<1x8x1xf32> to vector<1x8x8xf32>
    %115 = arith.mulf %112, %114 : vector<1x8x8xf32>
    %116 = vector.shape_cast %115 : vector<1x8x8xf32> to vector<8x8xf32>
    %117 = arith.truncf %116 : vector<8x8xf32> to vector<8x8xbf16>
    %c0_35 = arith.constant 0 : index
    %c24 = arith.constant 24 : index
    %118 = vector.load %arg15[%c0_35, %c24] : memref<8x32xbf16, #tpu.memory_space<vmem>>, vector<8x8xbf16>
    tpu.vector_store %arg15[%c0_35, %c24], %117 {strides = array<i32>} : memref<8x32xbf16, #tpu.memory_space<vmem>>, vector<8x8xbf16>,
    %c0_36 = arith.constant 0 : index
    %c0_37 = arith.constant 0 : index
    %119 = vector.load %arg15[%c0_36, %c0_37] : memref<8x32xbf16, #tpu.memory_space<vmem>>, vector<8x32xbf16>
    %c0_38 = arith.constant 0 : index
    %c0_39 = arith.constant 0 : index
    %120 = vector.load %arg6[%c0_38, %c0_39] : memref<32x32xbf16, #tpu.memory_space<vmem>>, vector<32x32xbf16>
    %cst_40 = arith.constant dense<0.000000e+00> : vector<8x32xf32>
    %121 = tpu.matmul %119, %120, %cst_40 {dimension_numbers = #tpu.dot_dimension_numbers<[1], [0], [0], [1], [0, 0, 1, 1], [], []>} : vector<8x32xbf16>, vector<32x32xbf16>, vector<8x32xf32> -> vector<8x32xf32>
    %c0_41 = arith.constant 0 : index
    %c0_42 = arith.constant 0 : index
    %122 = vector.load %arg7[%c0_41, %c0_42] : memref<1x32xf32, #tpu.memory_space<vmem>>, vector<1x32xf32>
    %123 = vector.broadcast %122 : vector<1x32xf32> to vector<8x32xf32>
    %124 = arith.addf %121, %123 : vector<8x32xf32>
    %125 = arith.addf %1, %124 : vector<8x32xf32>
    %c0_43 = arith.constant 0 : index
    %c0_44 = arith.constant 0 : index
    %126 = vector.load %arg8[%c0_43, %c0_44] : memref<1x32xf32, #tpu.memory_space<vmem>>, vector<1x32xf32>
    %c0_45 = arith.constant 0 : index
    %c0_46 = arith.constant 0 : index
    %127 = vector.load %arg9[%c0_45, %c0_46] : memref<1x32xf32, #tpu.memory_space<vmem>>, vector<1x32xf32>
    %cst_47 = arith.constant dense<0.000000e+00> : vector<8xf32>
    %128 = vector.multi_reduction <add>, %125, %cst_47 [1] : vector<8x32xf32> to vector<8xf32>
    %129 = vector.shape_cast %128 : vector<8xf32> to vector<8x1xf32>
    %cst_48 = arith.constant 3.200000e+01 : f32
    %130 = vector.broadcast %cst_48 : f32 to vector<8x1xf32>
    %131 = arith.divf %129, %130 : vector<8x1xf32>
    %132 = vector.broadcast %131 : vector<8x1xf32> to vector<8x32xf32>
    %133 = arith.subf %125, %132 : vector<8x32xf32>
    %134 = arith.mulf %133, %133 : vector<8x32xf32>
    %cst_49 = arith.constant dense<0.000000e+00> : vector<8xf32>
    %135 = vector.multi_reduction <add>, %134, %cst_49 [1] : vector<8x32xf32> to vector<8xf32>
    %136 = vector.shape_cast %135 : vector<8xf32> to vector<8x1xf32>
    %cst_50 = arith.constant 3.200000e+01 : f32
    %137 = vector.broadcast %cst_50 : f32 to vector<8x1xf32>
    %138 = arith.divf %136, %137 : vector<8x1xf32>
    %cst_51 = arith.constant 9.99999974E-6 : f32
    %139 = vector.broadcast %cst_51 : f32 to vector<8x1xf32>
    %140 = arith.addf %138, %139 : vector<8x1xf32>
    %141 = math.rsqrt %140 : vector<8x1xf32>
    %142 = vector.broadcast %141 : vector<8x1xf32> to vector<8x32xf32>
    %143 = arith.mulf %133, %142 : vector<8x32xf32>
    %144 = vector.broadcast %126 : vector<1x32xf32> to vector<8x32xf32>
    %145 = arith.mulf %143, %144 : vector<8x32xf32>
    %146 = vector.broadcast %127 : vector<1x32xf32> to vector<8x32xf32>
    %147 = arith.addf %145, %146 : vector<8x32xf32>
    %148 = arith.truncf %147 : vector<8x32xf32> to vector<8x32xbf16>
    %c0_52 = arith.constant 0 : index
    %c0_53 = arith.constant 0 : index
    %149 = vector.load %arg10[%c0_52, %c0_53] : memref<32x64xbf16, #tpu.memory_space<vmem>>, vector<32x64xbf16>
    %cst_54 = arith.constant dense<0.000000e+00> : vector<8x64xf32>
    %150 = tpu.matmul %148, %149, %cst_54 {dimension_numbers = #tpu.dot_dimension_numbers<[1], [0], [0], [1], [0, 0, 1, 1], [], []>} : vector<8x32xbf16>, vector<32x64xbf16>, vector<8x64xf32> -> vector<8x64xf32>
    %c0_55 = arith.constant 0 : index
    %c0_56 = arith.constant 0 : index
    %151 = vector.load %arg11[%c0_55, %c0_56] : memref<1x64xf32, #tpu.memory_space<vmem>>, vector<1x64xf32>
    %152 = vector.broadcast %151 : vector<1x64xf32> to vector<8x64xf32>
    %153 = arith.addf %150, %152 : vector<8x64xf32>
    %cst_57 = arith.constant 5.000000e-01 : f32
    %154 = vector.broadcast %cst_57 : f32 to vector<8x64xf32>
    %155 = arith.mulf %154, %153 : vector<8x64xf32>
    %cst_58 = arith.constant 4.471500e-02 : f32
    %156 = vector.broadcast %cst_58 : f32 to vector<8x64xf32>
    %157 = arith.mulf %156, %153 : vector<8x64xf32>
    %158 = arith.mulf %157, %153 : vector<8x64xf32>
    %159 = arith.mulf %158, %153 : vector<8x64xf32>
    %160 = arith.addf %153, %159 : vector<8x64xf32>
    %cst_59 = arith.constant 0.797884583 : f32
    %161 = vector.broadcast %cst_59 : f32 to vector<8x64xf32>
    %162 = arith.mulf %161, %160 : vector<8x64xf32>
    %163 = math.tanh %162 : vector<8x64xf32>
    %cst_60 = arith.constant 1.000000e+00 : f32
    %164 = vector.broadcast %cst_60 : f32 to vector<8x64xf32>
    %165 = arith.addf %164, %163 : vector<8x64xf32>
    %166 = arith.mulf %155, %165 : vector<8x64xf32>
    %167 = arith.truncf %166 : vector<8x64xf32> to vector<8x64xbf16>
    %c0_61 = arith.constant 0 : index
    %c0_62 = arith.constant 0 : index
    %168 = vector.load %arg12[%c0_61, %c0_62] : memref<64x32xbf16, #tpu.memory_space<vmem>>, vector<64x32xbf16>
    %cst_63 = arith.constant dense<0.000000e+00> : vector<8x32xf32>
    %169 = tpu.matmul %167, %168, %cst_63 {dimension_numbers = #tpu.dot_dimension_numbers<[1], [0], [0], [1], [0, 0, 1, 1], [], []>} : vector<8x64xbf16>, vector<64x32xbf16>, vector<8x32xf32> -> vector<8x32xf32>
    %c0_64 = arith.constant 0 : index
    %c0_65 = arith.constant 0 : index
    %170 = vector.load %arg13[%c0_64, %c0_65] : memref<1x32xf32, #tpu.memory_space<vmem>>, vector<1x32xf32>
    %171 = vector.broadcast %170 : vector<1x32xf32> to vector<8x32xf32>
    %172 = arith.addf %169, %171 : vector<8x32xf32>
    %173 = arith.addf %125, %172 : vector<8x32xf32>
    %174 = vector.shape_cast %173 : vector<8x32xf32> to vector<1x8x32xf32>
    %c0_66 = arith.constant 0 : index
    %c0_67 = arith.constant 0 : index
    %c0_68 = arith.constant 0 : index
    %175 = vector.load %arg14[%c0_66, %c0_67, %c0_68] : memref<1x8x32xf32, #tpu.memory_space<vmem>>, vector<1x8x32xf32>
    tpu.vector_store %arg14[%c0_66, %c0_67, %c0_68], %174 {strides = array<i32>} : memref<1x8x32xf32, #tpu.memory_space<vmem>>, vector<1x8x32xf32>,
    return
  }
  func.func @transform_0(%arg0: i32) -> (i32, i32, i32) {
    %c0_i32 = arith.constant 0 : i32
    %c0_i32_0 = arith.constant 0 : i32
    %c0_i32_1 = arith.constant 0 : i32
    return %arg0, %c0_i32, %c0_i32_0 : i32, i32, i32
  }
  func.func @transform_1(%arg0: i32) -> (i32, i32) {
    %c0_i32 = arith.constant 0 : i32
    %c0_i32_0 = arith.constant 0 : i32
    %c0_i32_1 = arith.constant 0 : i32
    return %c0_i32, %c0_i32_0 : i32, i32
  }
  func.func @transform_2(%arg0: i32) -> (i32, i32) {
    %c0_i32 = arith.constant 0 : i32
    %c0_i32_0 = arith.constant 0 : i32
    %c0_i32_1 = arith.constant 0 : i32
    return %c0_i32, %c0_i32_0 : i32, i32
  }
  func.func @transform_3(%arg0: i32) -> (i32, i32) {
    %c0_i32 = arith.constant 0 : i32
    %c0_i32_0 = arith.constant 0 : i32
    %c0_i32_1 = arith.constant 0 : i32
    return %c0_i32, %c0_i32_0 : i32, i32
  }
  func.func @transform_4(%arg0: i32) -> (i32, i32) {
    %c0_i32 = arith.constant 0 : i32
    %c0_i32_0 = arith.constant 0 : i32
    %c0_i32_1 = arith.constant 0 : i32
    return %c0_i32, %c0_i32_0 : i32, i32
  }
  func.func @transform_5(%arg0: i32) -> (i32, i32) {
    %c0_i32 = arith.constant 0 : i32
    %c0_i32_0 = arith.constant 0 : i32
    %c0_i32_1 = arith.constant 0 : i32
    return %c0_i32, %c0_i32_0 : i32, i32
  }
  func.func @transform_6(%arg0: i32) -> (i32, i32) {
    %c0_i32 = arith.constant 0 : i32
    %c0_i32_0 = arith.constant 0 : i32
    %c0_i32_1 = arith.constant 0 : i32
    return %c0_i32, %c0_i32_0 : i32, i32
  }
  func.func @transform_7(%arg0: i32) -> (i32, i32) {
    %c0_i32 = arith.constant 0 : i32
    %c0_i32_0 = arith.constant 0 : i32
    %c0_i32_1 = arith.constant 0 : i32
    return %c0_i32, %c0_i32_0 : i32, i32
  }
  func.func @transform_8(%arg0: i32) -> (i32, i32) {
    %c0_i32 = arith.constant 0 : i32
    %c0_i32_0 = arith.constant 0 : i32
    %c0_i32_1 = arith.constant 0 : i32
    return %c0_i32, %c0_i32_0 : i32, i32
  }
  func.func @transform_9(%arg0: i32) -> (i32, i32) {
    %c0_i32 = arith.constant 0 : i32
    %c0_i32_0 = arith.constant 0 : i32
    %c0_i32_1 = arith.constant 0 : i32
    return %c0_i32, %c0_i32_0 : i32, i32
  }
  func.func @transform_10(%arg0: i32) -> (i32, i32) {
    %c0_i32 = arith.constant 0 : i32
    %c0_i32_0 = arith.constant 0 : i32
    %c0_i32_1 = arith.constant 0 : i32
    return %c0_i32, %c0_i32_0 : i32, i32
  }
  func.func @transform_11(%arg0: i32) -> (i32, i32) {
    %c0_i32 = arith.constant 0 : i32
    %c0_i32_0 = arith.constant 0 : i32
    %c0_i32_1 = arith.constant 0 : i32
    return %c0_i32, %c0_i32_0 : i32, i32
  }
  func.func @transform_12(%arg0: i32) -> (i32, i32) {
    %c0_i32 = arith.constant 0 : i32
    %c0_i32_0 = arith.constant 0 : i32
    %c0_i32_1 = arith.constant 0 : i32
    return %c0_i32, %c0_i32_0 : i32, i32
  }
  func.func @transform_13(%arg0: i32) -> (i32, i32, i32) {
    %c0_i32 = arith.constant 0 : i32
    %c0_i32_0 = arith.constant 0 : i32
    %c0_i32_1 = arith.constant 0 : i32
    return %arg0, %c0_i32, %c0_i32_0 : i32, i32, i32
  }
}

</mosaic_0001>

<llo_original>
// kernel: tpu_custom_call.1
$region0: #{tpu_custom_call.1}
  #allocation0 [shape = 'u32[]', space=smem, size = 0x4, offset = 0x4, fixed_abs, tag = 'smem constant byte address 0x4 - core index']
  #allocation1 [shape = 'u32[144,128]{1,0:T(1,128)}', space=vmem, size = 0x12000, scoped, tag = 'internal scratch']
  #allocation2 [shape = 'bf16[8,32]{1,0:T(8,128)(2,1)}', space=vmem, size = 0x800, scoped, tag = 'scratch operand']
  %s0 = inlined_call_operand.vmem [shape: f32[2,8,32], index: 0, kind: input, shape index: {}]
  %s1 = inlined_call_operand.vmem [shape: f32[1,32], index: 1, kind: input, shape index: {}]
  %s2 = inlined_call_operand.vmem [shape: f32[1,32], index: 2, kind: input, shape index: {}]
  %s3 = inlined_call_operand.vmem [shape: bf16[32,96], index: 3, kind: input, shape index: {}]
  %s4 = inlined_call_operand.vmem [shape: f32[1,96], index: 4, kind: input, shape index: {}]
  %s5 = inlined_call_operand.vmem [shape: bf16[32,32], index: 5, kind: input, shape index: {}]
  %s6 = inlined_call_operand.vmem [shape: f32[1,32], index: 6, kind: input, shape index: {}]
  %s7 = inlined_call_operand.hbm [shape: f32[1,32], index: 7, kind: input, shape index: {}]
  %s8 = inlined_call_operand.hbm [shape: f32[1,32], index: 8, kind: input, shape index: {}]
  %s9 = inlined_call_operand.hbm [shape: bf16[32,64], index: 9, kind: input, shape index: {}]
  %s10 = inlined_call_operand.hbm [shape: f32[1,64], index: 10, kind: input, shape index: {}]
  %s11 = inlined_call_operand.vmem [shape: bf16[64,32], index: 11, kind: input, shape index: {}]
  %s12 = inlined_call_operand.vmem [shape: f32[1,32], index: 12, kind: input, shape index: {}]
  %s13 = inlined_call_operand.hbm [shape: f32[2,8,32], index: 13, kind: output, shape index: {}]
  %s14 = sld [smem:[#allocation0]]
  $region101: #{tpu_custom_call.1} parent=0
    _
  %s16 = ssub.s32 1, %s14
  %s17 = scalar_select 0, %s16, %s14
  $region1: #{tpu_custom_call.1} parent=0
    #allocation3 [shape = 'u8[512]{0}', space=vmem, size = 0x400, scoped, tag = 'input window, operand 7, single buffered']
    #allocation4 [shape = 's32[2]{0}', space=sflag, size = 0x8, scoped, tag = 'scoped memory for tpu_custom_call.1']
    #allocation5 [shape = 's32[2]{0}', space=sflag, size = 0x8, scoped, tag = 'scoped memory for tpu_custom_call.1']
    #allocation6 [shape = 'u8[512]{0}', space=vmem, size = 0x400, scoped, tag = 'input window, operand 8, single buffered']
    #allocation7 [shape = 's32[1]{0}', space=sflag, size = 0x4, scoped, tag = 'scoped memory for tpu_custom_call.1']
    #allocation8 [shape = 'u8[8192]{0}', space=vmem, size = 0x2000, scoped, tag = 'input window, operand 9, single buffered']
    #allocation9 [shape = 'u8[512]{0}', space=vmem, size = 0x400, scoped, tag = 'input window, operand 10, single buffered']
    #allocation10 [shape = 's32[1]{0}', space=sflag, size = 0x4, scoped, tag = 'scoped memory for tpu_custom_call.1']
    #allocation11 [shape = 'u8[8192]{0}', space=vmem, size = 0x2000, scoped, tag = 'output window, operand 0']
    %18 = vsyncpa [#allocation4], 0
    %19 = vsyncpa [#allocation7], 0
    %20 = vsyncpa [#allocation10], 0
    %21 = vsyncpa [#allocation5], 0
    %s22 = scalar_lea.sflag [#allocation5], 1
    %23 = vsyncpa %s22, 0
    loop: start=0, step=1, limit=4
    $region2: #{tpu_custom_call.1} parent=1 // loop_pre_header
      _
    $region3: #{tpu_custom_call.1} parent=1 // loop_header
      %s25 = sphi 0, %s29
      %p26 = scmp.ge.s32.totalorder %s25, 4
      %s35 = sphi 0, %s37
      %s38 = sphi 0, %s35
      %s39 = sphi 0, %s38
      %s55 = sphi 0, %s39
      %s59 = sphi 0, %s59
      %s61 = sphi 0, %s59
      %s62 = sphi 0, %s61
      %s76 = sphi 0, %s62
      %s80 = sphi 0, %s80
      %s82 = sphi 0, %s80
      %s83 = sphi 0, %s82
      %s97 = sphi 0, %s83
      %s101 = sphi 0, %s101
      %s103 = sphi 0, %s101
      %s104 = sphi 0, %s103
      %s118 = sphi 0, %s104
      %s122 = sphi 0, %s122
      %s124 = sphi 0, %s122
      %s125 = sphi 0, %s124
      %s139 = sphi 0, %s125
      %s143 = sphi 0, %s143
      %s145 = sphi 0, %s143
      %s146 = sphi 0, %s145
      %s160 = sphi 0, %s146
      %s164 = sphi 0, %s164
      %s166 = sphi 0, %s164
      %s167 = sphi 0, %s166
      %s181 = sphi 0, %s167
      %s185 = sphi 0, %s185
      %s187 = sphi 0, %s185
      %s188 = sphi 0, %s187
      %s202 = sphi 0, %s188
      %s206 = sphi 0, %s206
      %s208 = sphi 0, %s206
      %s209 = sphi 0, %s208
      %s223 = sphi 0, %s209
      %s227 = sphi 0, %s227
      %s229 = sphi 0, %s227
      %s230 = sphi 0, %s229
      %s244 = sphi 0, %s230
      %s248 = sphi 0, %s248
      %s250 = sphi 0, %s248
      %s251 = sphi 0, %s250
      %s265 = sphi 0, %s251
      %s269 = sphi 0, %s269
      %s271 = sphi 0, %s269
      %s272 = sphi 0, %s271
      %s286 = sphi 0, %s272
      %s290 = sphi 0, %s290
      %s292 = sphi 0, %s290
      %s293 = sphi 0, %s292
      %s307 = sphi 0, %s293
      %s313 = sphi 0, %s315
      %s316 = sphi 0, %s313
      %s317 = sphi 0, %s316
      %s333 = sphi 0, %s317
    $region4: #{tpu_custom_call.1} parent=1 // loop_header_branch
      %28 = sbr.rel (%p26) target = $region8
    $region5: #{tpu_custom_call.1} parent=1 // loop_body
      %s30 = ssub.s32 %s25, 1
      %s31 = ssub.s32 %s25, 2
      %s32 = sadd.s32 %s25, 1
      %s33 = ssub.s32 %s25, %s32
      %p34 = scmp.eq.s32.totalorder %s33, 0
      %s36 = sadd.s32 %s35, 1
      %s37 = scalar_select %p34, %s35, %s36
      %p40 = pneg %p34
      %p41 = scmp.eq.s32.totalorder %s25, 1
      %p42 = por %p40, %p41
      %p43 = scmp.ne.s32.totalorder %s35, %s38
      %p44 = scmp.eq.s32.totalorder %s25, 0
      %p45 = por %p43, %p44
      %p46 = scmp.ne.s32.totalorder %s35, %s38
      %p47 = scmp.eq.s32.totalorder %s30, 1
      %p48 = por %p46, %p47
      %p49 = scmp.ne.s32.totalorder %s38, %s39
      %p50 = scmp.eq.s32.totalorder %s30, 0
      %p51 = por %p49, %p50
      %p52 = scmp.ne.s32.totalorder %s38, %s39
      %p53 = scmp.eq.s32.totalorder %s31, 1
      %p54 = por %p52, %p53
      %p56 = scmp.ne.s32.totalorder %s39, %s55
      %p57 = scmp.eq.s32.totalorder %s31, 0
      %p58 = por %p56, %p57
      %s60 = sadd.s32 %s59, 1
      %p63 = scmp.eq.s32.totalorder %s25, 1
      %p64 = scmp.ne.s32.totalorder %s59, %s61
      %p65 = scmp.eq.s32.totalorder %s25, 0
      %p66 = por %p64, %p65
      %p67 = scmp.ne.s32.totalorder %s59, %s61
      %p68 = scmp.eq.s32.totalorder %s30, 1
      %p69 = por %p67, %p68
      %p70 = scmp.ne.s32.totalorder %s61, %s62
      %p71 = scmp.eq.s32.totalorder %s30, 0
      %p72 = por %p70, %p71
      %p73 = scmp.ne.s32.totalorder %s61, %s62
      %p74 = scmp.eq.s32.totalorder %s31, 1
      %p75 = por %p73, %p74
      %p77 = scmp.ne.s32.totalorder %s62, %s76
      %p78 = scmp.eq.s32.totalorder %s31, 0
      %p79 = por %p77, %p78
      %s81 = sadd.s32 %s80, 1
      %p84 = scmp.eq.s32.totalorder %s25, 1
      %p85 = scmp.ne.s32.totalorder %s80, %s82
      %p86 = scmp.eq.s32.totalorder %s25, 0
      %p87 = por %p85, %p86
      %p88 = scmp.ne.s32.totalorder %s80, %s82
      %p89 = scmp.eq.s32.totalorder %s30, 1
      %p90 = por %p88, %p89
      %p91 = scmp.ne.s32.totalorder %s82, %s83
      %p92 = scmp.eq.s32.totalorder %s30, 0
      %p93 = por %p91, %p92
      %p94 = scmp.ne.s32.totalorder %s82, %s83
      %p95 = scmp.eq.s32.totalorder %s31, 1
      %p96 = por %p94, %p95
      %p98 = scmp.ne.s32.totalorder %s83, %s97
      %p99 = scmp.eq.s32.totalorder %s31, 0
      %p100 = por %p98, %p99
      %s102 = sadd.s32 %s101, 1
      %p105 = scmp.eq.s32.totalorder %s25, 1
      %p106 = scmp.ne.s32.totalorder %s101, %s103
      %p107 = scmp.eq.s32.totalorder %s25, 0
      %p108 = por %p106, %p107
      %p109 = scmp.ne.s32.totalorder %s101, %s103
      %p110 = scmp.eq.s32.totalorder %s30, 1
      %p111 = por %p109, %p110
      %p112 = scmp.ne.s32.totalorder %s103, %s104
      %p113 = scmp.eq.s32.totalorder %s30, 0
      %p114 = por %p112, %p113
      %p115 = scmp.ne.s32.totalorder %s103, %s104
      %p116 = scmp.eq.s32.totalorder %s31, 1
      %p117 = por %p115, %p116
      %p119 = scmp.ne.s32.totalorder %s104, %s118
      %p120 = scmp.eq.s32.totalorder %s31, 0
      %p121 = por %p119, %p120
      %s123 = sadd.s32 %s122, 1
      %p126 = scmp.eq.s32.totalorder %s25, 1
      %p127 = scmp.ne.s32.totalorder %s122, %s124
      %p128 = scmp.eq.s32.totalorder %s25, 0
      %p129 = por %p127, %p128
      %p130 = scmp.ne.s32.totalorder %s122, %s124
      %p131 = scmp.eq.s32.totalorder %s30, 1
      %p132 = por %p130, %p131
      %p133 = scmp.ne.s32.totalorder %s124, %s125
      %p134 = scmp.eq.s32.totalorder %s30, 0
      %p135 = por %p133, %p134
      %p136 = scmp.ne.s32.totalorder %s124, %s125
      %p137 = scmp.eq.s32.totalorder %s31, 1
      %p138 = por %p136, %p137
      %p140 = scmp.ne.s32.totalorder %s125, %s139
      %p141 = scmp.eq.s32.totalorder %s31, 0
      %p142 = por %p140, %p141
      %s144 = sadd.s32 %s143, 1
      %p147 = scmp.eq.s32.totalorder %s25, 1
      %p148 = scmp.ne.s32.totalorder %s143, %s145
      %p149 = scmp.eq.s32.totalorder %s25, 0
      %p150 = por %p148, %p149
      %p151 = scmp.ne.s32.totalorder %s143, %s145
      %p152 = scmp.eq.s32.totalorder %s30, 1
      %p153 = por %p151, %p152
      %p154 = scmp.ne.s32.totalorder %s145, %s146
      %p155 = scmp.eq.s32.totalorder %s30, 0
      %p156 = por %p154, %p155
      %p157 = scmp.ne.s32.totalorder %s145, %s146
      %p158 = scmp.eq.s32.totalorder %s31, 1
      %p159 = por %p157, %p158
      %p161 = scmp.ne.s32.totalorder %s146, %s160
      %p162 = scmp.eq.s32.totalorder %s31, 0
      %p163 = por %p161, %p162
      %s165 = sadd.s32 %s164, 1
      %p168 = scmp.eq.s32.totalorder %s25, 1
      %p169 = scmp.ne.s32.totalorder %s164, %s166
      %p170 = scmp.eq.s32.totalorder %s25, 0
      %p171 = por %p169, %p170
      %p172 = scmp.ne.s32.totalorder %s164, %s166
      %p173 = scmp.eq.s32.totalorder %s30, 1
      %p174 = por %p172, %p173
      %p175 = scmp.ne.s32.totalorder %s166, %s167
      %p176 = scmp.eq.s32.totalorder %s30, 0
      %p177 = por %p175, %p176
      %p178 = scmp.ne.s32.totalorder %s166, %s167
      %p179 = scmp.eq.s32.totalorder %s31, 1
      %p180 = por %p178, %p179
      %p182 = scmp.ne.s32.totalorder %s167, %s181
      %p183 = scmp.eq.s32.totalorder %s31, 0
      %p184 = por %p182, %p183
      %s186 = sadd.s32 %s185, 1
      %p189 = scmp.eq.s32.totalorder %s25, 1
      %p190 = scmp.ne.s32.totalorder %s185, %s187
      %p191 = scmp.eq.s32.totalorder %s25, 0
      %p192 = por %p190, %p191
      %p193 = scmp.ne.s32.totalorder %s185, %s187
      %p194 = scmp.eq.s32.totalorder %s30, 1
      %p195 = por %p193, %p194
      %p196 = scmp.ne.s32.totalorder %s187, %s188
      %p197 = scmp.eq.s32.totalorder %s30, 0
      %p198 = por %p196, %p197
      %p199 = scmp.ne.s32.totalorder %s187, %s188
      %p200 = scmp.eq.s32.totalorder %s31, 1
      %p201 = por %p199, %p200
      %p203 = scmp.ne.s32.totalorder %s188, %s202
      %p204 = scmp.eq.s32.totalorder %s31, 0
      %p205 = por %p203, %p204
      %s207 = sadd.s32 %s206, 1
      %p210 = scmp.eq.s32.totalorder %s25, 1
      %p211 = scmp.ne.s32.totalorder %s206, %s208
      %p212 = scmp.eq.s32.totalorder %s25, 0
      %p213 = por %p211, %p212
      %p214 = scmp.ne.s32.totalorder %s206, %s208
      %p215 = scmp.eq.s32.totalorder %s30, 1
      %p216 = por %p214, %p215
      %p217 = scmp.ne.s32.totalorder %s208, %s209
      %p218 = scmp.eq.s32.totalorder %s30, 0
      %p219 = por %p217, %p218
      %p220 = scmp.ne.s32.totalorder %s208, %s209
      %p221 = scmp.eq.s32.totalorder %s31, 1
      %p222 = por %p220, %p221
      %p224 = scmp.ne.s32.totalorder %s209, %s223
      %p225 = scmp.eq.s32.totalorder %s31, 0
      %p226 = por %p224, %p225
      %s228 = sadd.s32 %s227, 1
      %p231 = scmp.eq.s32.totalorder %s25, 1
      %p232 = scmp.ne.s32.totalorder %s227, %s229
      %p233 = scmp.eq.s32.totalorder %s25, 0
      %p234 = por %p232, %p233
      %p235 = scmp.ne.s32.totalorder %s227, %s229
      %p236 = scmp.eq.s32.totalorder %s30, 1
      %p237 = por %p235, %p236
      %p238 = scmp.ne.s32.totalorder %s229, %s230
      %p239 = scmp.eq.s32.totalorder %s30, 0
      %p240 = por %p238, %p239
      %p241 = scmp.ne.s32.totalorder %s229, %s230
      %p242 = scmp.eq.s32.totalorder %s31, 1
      %p243 = por %p241, %p242
      %p245 = scmp.ne.s32.totalorder %s230, %s244
      %p246 = scmp.eq.s32.totalorder %s31, 0
      %p247 = por %p245, %p246
      %s249 = sadd.s32 %s248, 1
      %p252 = scmp.eq.s32.totalorder %s25, 1
      %p253 = scmp.ne.s32.totalorder %s248, %s250
      %p254 = scmp.eq.s32.totalorder %s25, 0
      %p255 = por %p253, %p254
      %p256 = scmp.ne.s32.totalorder %s248, %s250
      %p257 = scmp.eq.s32.totalorder %s30, 1
      %p258 = por %p256, %p257
      %p259 = scmp.ne.s32.totalorder %s250, %s251
      %p260 = scmp.eq.s32.totalorder %s30, 0
      %p261 = por %p259, %p260
      %p262 = scmp.ne.s32.totalorder %s250, %s251
      %p263 = scmp.eq.s32.totalorder %s31, 1
      %p264 = por %p262, %p263
      %p266 = scmp.ne.s32.totalorder %s251, %s265
      %p267 = scmp.eq.s32.totalorder %s31, 0
      %p268 = por %p266, %p267
      %s270 = sadd.s32 %s269, 1
      %p273 = scmp.eq.s32.totalorder %s25, 1
      %p274 = scmp.ne.s32.totalorder %s269, %s271
      %p275 = scmp.eq.s32.totalorder %s25, 0
      %p276 = por %p274, %p275
      %p277 = scmp.ne.s32.totalorder %s269, %s271
      %p278 = scmp.eq.s32.totalorder %s30, 1
      %p279 = por %p277, %p278
      %p280 = scmp.ne.s32.totalorder %s271, %s272
      %p281 = scmp.eq.s32.totalorder %s30, 0
      %p282 = por %p280, %p281
      %p283 = scmp.ne.s32.totalorder %s271, %s272
      %p284 = scmp.eq.s32.totalorder %s31, 1
      %p285 = por %p283, %p284
      %p287 = scmp.ne.s32.totalorder %s272, %s286
      %p288 = scmp.eq.s32.totalorder %s31, 0
      %p289 = por %p287, %p288
      %s291 = sadd.s32 %s290, 1
      %p294 = scmp.eq.s32.totalorder %s25, 1
      %p295 = scmp.ne.s32.totalorder %s290, %s292
      %p296 = scmp.eq.s32.totalorder %s25, 0
      %p297 = por %p295, %p296
      %p298 = scmp.ne.s32.totalorder %s290, %s292
      %p299 = scmp.eq.s32.totalorder %s30, 1
      %p300 = por %p298, %p299
      %p301 = scmp.ne.s32.totalorder %s292, %s293
      %p302 = scmp.eq.s32.totalorder %s30, 0
      %p303 = por %p301, %p302
      %p304 = scmp.ne.s32.totalorder %s292, %s293
      %p305 = scmp.eq.s32.totalorder %s31, 1
      %p306 = por %p304, %p305
      %p308 = scmp.ne.s32.totalorder %s293, %s307
      %p309 = scmp.eq.s32.totalorder %s31, 0
      %p310 = por %p308, %p309
      %s311 = ssub.s32 %s25, %s32
      %p312 = scmp.eq.s32.totalorder %s311, 0
      %s314 = sadd.s32 %s313, 1
      %s315 = scalar_select %p312, %s313, %s314
      %p318 = pneg %p312
      %p319 = scmp.eq.s32.totalorder %s25, 1
      %p320 = por %p318, %p319
      %p321 = scmp.ne.s32.totalorder %s313, %s316
      %p322 = scmp.eq.s32.totalorder %s25, 0
      %p323 = por %p321, %p322
      %p324 = scmp.ne.s32.totalorder %s313, %s316
      %p325 = scmp.eq.s32.totalorder %s30, 1
      %p326 = por %p324, %p325
      %p327 = scmp.ne.s32.totalorder %s316, %s317
      %p328 = scmp.eq.s32.totalorder %s30, 0
      %p329 = por %p327, %p328
      %p330 = scmp.ne.s32.totalorder %s316, %s317
      %p331 = scmp.eq.s32.totalorder %s31, 1
      %p332 = por %p330, %p331
      %p334 = scmp.ne.s32.totalorder %s317, %s333
      %p335 = scmp.eq.s32.totalorder %s31, 0
      %p336 = por %p334, %p335
      %p337 = scmp.le.s32.totalorder 1, %s25
      %p338 = scmp.lt.s32.totalorder %s25, 3
      %p339 = pnand %p337, %p338
      %p340 = pneg %p339
      // Predicated region
      $region9: #{tpu_custom_call.1} parent=5 // pred_check
        _
      $region10: #{tpu_custom_call.1} parent=5 // pred_check_branch
        %342 = sbr.rel (%p339) target = $region12
      $region11: #{tpu_custom_call.1} parent=5 // pred_region
        %s343 = ssub.s32 %s25, 1
        // Predicated region
        $region13: #{tpu_custom_call.1} parent=11 // pred_check
          %p344 = pneg %p72
        $region14: #{tpu_custom_call.1} parent=11 // pred_check_branch
          %346 = sbr.rel (%p344) target = $region16
        $region15: #{tpu_custom_call.1} parent=11 // pred_region
          _
        $region16: #{tpu_custom_call.1} parent=11 // pred_fallthru
          _
        // Predicated region
        $region17: #{tpu_custom_call.1} parent=11 // pred_check
          %p347 = pneg %p93
        $region18: #{tpu_custom_call.1} parent=11 // pred_check_branch
          %349 = sbr.rel (%p347) target = $region20
        $region19: #{tpu_custom_call.1} parent=11 // pred_region
          _
        $region20: #{tpu_custom_call.1} parent=11 // pred_fallthru
          _
        // Predicated region
        $region21: #{tpu_custom_call.1} parent=11 // pred_check
          %p350 = pneg %p114
        $region22: #{tpu_custom_call.1} parent=11 // pred_check_branch
          %352 = sbr.rel (%p350) target = $region24
        $region23: #{tpu_custom_call.1} parent=11 // pred_region
          _
        $region24: #{tpu_custom_call.1} parent=11 // pred_fallthru
          _
        // Predicated region
        $region25: #{tpu_custom_call.1} parent=11 // pred_check
          %p353 = pneg %p135
        $region26: #{tpu_custom_call.1} parent=11 // pred_check_branch
          %355 = sbr.rel (%p353) target = $region28
        $region27: #{tpu_custom_call.1} parent=11 // pred_region
          _
        $region28: #{tpu_custom_call.1} parent=11 // pred_fallthru
          _
        // Predicated region
        $region29: #{tpu_custom_call.1} parent=11 // pred_check
          %p356 = pneg %p156
        $region30: #{tpu_custom_call.1} parent=11 // pred_check_branch
          %358 = sbr.rel (%p356) target = $region32
        $region31: #{tpu_custom_call.1} parent=11 // pred_region
          _
        $region32: #{tpu_custom_call.1} parent=11 // pred_fallthru
          _
        // Predicated region
        $region33: #{tpu_custom_call.1} parent=11 // pred_check
          %p359 = pneg %p177
        $region34: #{tpu_custom_call.1} parent=11 // pred_check_branch
          %361 = sbr.rel (%p359) target = $region36
        $region35: #{tpu_custom_call.1} parent=11 // pred_region
          _
        $region36: #{tpu_custom_call.1} parent=11 // pred_fallthru
          _
        // Predicated region
        $region37: #{tpu_custom_call.1} parent=11 // pred_check
          %p362 = pneg %p198
        $region38: #{tpu_custom_call.1} parent=11 // pred_check_branch
          %364 = sbr.rel (%p362) target = $region40
        $region39: #{tpu_custom_call.1} parent=11 // pred_region
          %s366 = ssub.s32 16, 16
          %367 = vsyncadd [#allocation4], %s366
          %s369 = sshll.u32 [#allocation3], 4
          %s370 = int_to_ptr.vmem [resolvable:$true] %s369
          %372 = dma.hbm_to_vmem [thread:$0]  %s7, 16, %s370, [#allocation4]
        $region40: #{tpu_custom_call.1} parent=11 // pred_fallthru
          _
        // Predicated region
        $region41: #{tpu_custom_call.1} parent=11 // pred_check
          %p373 = pneg %p219
        $region42: #{tpu_custom_call.1} parent=11 // pred_check_branch
          %375 = sbr.rel (%p373) target = $region44
        $region43: #{tpu_custom_call.1} parent=11 // pred_region
          %s377 = ssub.s32 16, 16
          %378 = vsyncadd [#allocation7], %s377
          %s380 = sshll.u32 [#allocation6], 4
          %s381 = int_to_ptr.vmem [resolvable:$true] %s380
          %383 = dma.hbm_to_vmem [thread:$0]  %s8, 16, %s381, [#allocation7]
        $region44: #{tpu_custom_call.1} parent=11 // pred_fallthru
          _
        // Predicated region
        $region45: #{tpu_custom_call.1} parent=11 // pred_check
          %p384 = pneg %p240
        $region46: #{tpu_custom_call.1} parent=11 // pred_check_branch
          %386 = sbr.rel (%p384) target = $region48
        $region47: #{tpu_custom_call.1} parent=11 // pred_region
          %s388 = ssub.s32 256, 256
          %389 = vsyncadd [#allocation7], %s388
          %s390 = sshll.u32 [#allocation8], 4
          %s391 = int_to_ptr.vmem [resolvable:$true] %s390
          %396 = dma.hbm_to_vmem [thread:$0]  %s9, 256, %s391, [#allocation7], 64, 64, 4
        $region48: #{tpu_custom_call.1} parent=11 // pred_fallthru
          _
        // Predicated region
        $region49: #{tpu_custom_call.1} parent=11 // pred_check
          %p397 = pneg %p261
        $region50: #{tpu_custom_call.1} parent=11 // pred_check_branch
          %399 = sbr.rel (%p397) target = $region52
        $region51: #{tpu_custom_call.1} parent=11 // pred_region
          %s401 = ssub.s32 16, 16
          %402 = vsyncadd [#allocation10], %s401
          %s404 = sshll.u32 [#allocation9], 4
          %s405 = int_to_ptr.vmem [resolvable:$true] %s404
          %407 = dma.hbm_to_vmem [thread:$0]  %s10, 16, %s405, [#allocation10]
        $region52: #{tpu_custom_call.1} parent=11 // pred_fallthru
          _
        // Predicated region
        $region53: #{tpu_custom_call.1} parent=11 // pred_check
          %p408 = pneg %p282
        $region54: #{tpu_custom_call.1} parent=11 // pred_check_branch
          %410 = sbr.rel (%p408) target = $region56
        $region55: #{tpu_custom_call.1} parent=11 // pred_region
          _
        $region56: #{tpu_custom_call.1} parent=11 // pred_fallthru
          _
        // Predicated region
        $region57: #{tpu_custom_call.1} parent=11 // pred_check
          %p411 = pneg %p303
        $region58: #{tpu_custom_call.1} parent=11 // pred_check_branch
          %413 = sbr.rel (%p411) target = $region60
        $region59: #{tpu_custom_call.1} parent=11 // pred_region
          _
        $region60: #{tpu_custom_call.1} parent=11 // pred_fallthru
          _
      $region12: #{tpu_custom_call.1} parent=5 // pred_fallthru
        _
      %p414 = scmp.lt.s32.totalorder %s25, 2
      // Predicated region
      $region61: #{tpu_custom_call.1} parent=5 // pred_check
        %p415 = pneg %p414
      $region62: #{tpu_custom_call.1} parent=5 // pred_check_branch
        %417 = sbr.rel (%p415) target = $region64
      $region63: #{tpu_custom_call.1} parent=5 // pred_region
        // Predicated region
        $region65: #{tpu_custom_call.1} parent=63 // pred_check
          %p418 = pneg %p45
        $region66: #{tpu_custom_call.1} parent=63 // pred_check_branch
          %420 = sbr.rel (%p418) target = $region68
        $region67: #{tpu_custom_call.1} parent=63 // pred_region
          %p421 = scmp.lt.s32.totalorder %s25, 1
          %s422 = scalar_select %p421, %s25, 1
          %s423 = smul.addr %s422, 8
          %s424 = scalar_lea.vmem %s0, %s423
        $region68: #{tpu_custom_call.1} parent=63 // pred_fallthru
          _
      $region64: #{tpu_custom_call.1} parent=5 // pred_fallthru
        _
      %p425 = scmp.le.s32.totalorder 1, %s25
      %p426 = scmp.lt.s32.totalorder %s25, 3
      %p427 = pnand %p425, %p426
      %p428 = pneg %p427
      // Predicated region
      $region69: #{tpu_custom_call.1} parent=5 // pred_check
        _
      $region70: #{tpu_custom_call.1} parent=5 // pred_check_branch
        %430 = sbr.rel (%p427) target = $region72
      $region71: #{tpu_custom_call.1} parent=5 // pred_region
        %s431 = ssub.s32 %s25, 1
        // Predicated region
        $region73: #{tpu_custom_call.1} parent=71 // pred_check
          %p432 = pneg %p198
        $region74: #{tpu_custom_call.1} parent=71 // pred_check_branch
          %434 = sbr.rel (%p432) target = $region76
        $region75: #{tpu_custom_call.1} parent=71 // pred_region
          %435 = dma.done [#allocation4], 16
        $region76: #{tpu_custom_call.1} parent=71 // pred_fallthru
          _
        // Predicated region
        $region77: #{tpu_custom_call.1} parent=71 // pred_check
          %p436 = pneg %p219
        $region78: #{tpu_custom_call.1} parent=71 // pred_check_branch
          %438 = sbr.rel (%p436) target = $region80
        $region79: #{tpu_custom_call.1} parent=71 // pred_region
          %439 = dma.done [#allocation7], 16
        $region80: #{tpu_custom_call.1} parent=71 // pred_fallthru
          _
        // Predicated region
        $region81: #{tpu_custom_call.1} parent=71 // pred_check
          %p440 = pneg %p240
        $region82: #{tpu_custom_call.1} parent=71 // pred_check_branch
          %442 = sbr.rel (%p440) target = $region84
        $region83: #{tpu_custom_call.1} parent=71 // pred_region
          %443 = dma.done [#allocation7], 256
        $region84: #{tpu_custom_call.1} parent=71 // pred_fallthru
          _
        // Predicated region
        $region85: #{tpu_custom_call.1} parent=71 // pred_check
          %p444 = pneg %p261
        $region86: #{tpu_custom_call.1} parent=71 // pred_check_branch
          %446 = sbr.rel (%p444) target = $region88
        $region87: #{tpu_custom_call.1} parent=71 // pred_region
          %447 = dma.done [#allocation10], 16
        $region88: #{tpu_custom_call.1} parent=71 // pred_fallthru
          _
        %p448 = scmp.lt.s32.totalorder %s30, 1
        %s449 = scalar_select %p448, %s30, 1
        %s450 = smul.addr %s449, 8
        %s451 = scalar_lea.vmem %s0, %s450
        %p452 = pneg %p51
        %p453 = pneg %p48
        %p454 = pneg %p72
        %p455 = pneg %p69
        %p456 = pneg %p93
        %p457 = pneg %p90
        %p458 = pneg %p114
        %p459 = pneg %p111
        %p460 = pneg %p135
        %p461 = pneg %p132
        %p462 = pneg %p156
        %p463 = pneg %p153
        %p464 = pneg %p177
        %p465 = pneg %p174
        %p466 = pneg %p198
        %p467 = pneg %p195
        %p468 = pneg %p219
        %p469 = pneg %p216
        %p470 = pneg %p240
        %p471 = pneg %p237
        %p472 = pneg %p261
        %p473 = pneg %p258
        %p474 = pneg %p282
        %p475 = pneg %p279
        %p476 = pneg %p303
        %p477 = pneg %p300
        %p478 = pneg %p329
        %p479 = pneg %p326
        %s480 = sand.u32 %s316, 1
        %s481 = scalar_lea.sflag [#allocation5], %s480
        %s482 = sand.u32 %s316, 1
        %s483 = smul.addr %s482, 8
        %s484 = scalar_lea.vmem [#allocation11], %s483
        %p485 = scmp.lt.s32.totalorder %s30, 1
        %s486 = scalar_select %p485, %s30, 1
        %s487 = smul.addr %s486, 8
        %s488 = scalar_lea.vmem %s0, %s487
        %v490 = vld [vmem:[%s488] sm:$0xff]
        %v491 = vld [vmem:[%s1] sm:$0x1]
        %v492 = vld [vmem:[%s2] sm:$0x1]
        %vm493 = vcmask 261120
        %v494 = vsel %vm493, %v490, 0.0
        %495 = vadd.xlane.f32.xlu0 %v494
        %v496 = vpop.xlane.xlu0 %495
        %v497 = vrcp.pop 32.0
        %v498 = vmul.f32 %v496, %v497
        %v499 = vsub.f32 %v490, %v498
        %v500 = vmul.f32 %v499, %v499
        %v501 = vsel %vm493, %v500, 0.0
        %502 = vadd.xlane.f32.xlu0 %v501
        %v503 = vpop.xlane.xlu0 %502
        %v504 = vmul.f32 %v503, %v497
        %v505 = vadd.f32 %v504, 1e-05
        %v506 = vrsqrt.pop %v505
        %v507 = vmul.f32 %v499, %v506
        %v509 = vlaneseq
        %v510 = vshrl.u32 %v509, 7
        %v511 = vsub.s32 0, %v510
        %v512 = vrot.slane %v491, %v511
        %v514 = vmul.f32 %v507, %v512
        %v516 = vlaneseq
        %v517 = vshrl.u32 %v516, 7
        %v518 = vsub.s32 0, %v517
        %v519 = vrot.slane %v492, %v518
        %v521 = vadd.f32 %v514, %v519
        %v522 = vpack.c.bf16 %v521, %v521
        %v523 = vld [vmem:[%s3] sm:$0xf]
        %v524 = vld [vmem:[%s3 + $0x4] sm:$0xf]
        %v525 = vld [vmem:[%s3 + $0x8] sm:$0xf]
        %v526 = vld [vmem:[%s3 + $0xc] sm:$0xf]
        %v527 = vld [vmem:[%s4] sm:$0x1]
        %v529 = vlaneseq
        %v530 = vshrl.u32 %v529, 7
        %v531 = vsub.s32 0, %v530
        %v532 = vrot.slane %v527, %v531
        %v538 = vunpack.c.l.b16 %v523
        %v539 = vunpack.c.l.b16 %v524
        %v540 = vunpack.c.l.b16 %v525
        %v541 = vunpack.c.l.b16 %v526
        %v542 = vpack.c.b16 %v539, %v538
        %v543 = vpack.c.b16 %v541, %v540
        %v547 = vsel %vm493, %v522, 0
        %549 = vmatprep.subr.bf16.mxu0 0
        %550 = vmatpush1.bf16.msra.mxu0 0
        %551 = vmatprep.subr.bf16.mxu0 0
        %552 = vmatpush1.bf16.msra.mxu0 0
        %553 = vmatprep.subr.bf16.mxu0 0
        %554 = vmatpush1.bf16.msra.mxu0 0
        %555 = vmatprep.subr.bf16.mxu0 0
        %556 = vmatpush1.bf16.msra.mxu0 0
        %557 = vmatprep.subr.bf16.mxu0 0
        %558 = vmatpush1.bf16.msra.mxu0 0
        %559 = vmatprep.subr.bf16.mxu0 0
        %560 = vmatpush1.bf16.msra.mxu0 0
        %561 = vmatprep.subr.bf16.mxu0 0
        %562 = vmatpush1.bf16.msra.mxu0 %v543
        %563 = vmatprep.subr.bf16.mxu0 0
        %564 = vmatpush1.bf16.msra.mxu0 %v542
        %565 = vmatprep.subr.bf16.mxu0 0
        %566 = vmatpush2.bf16.msra.mxu0 0
        %567 = vmatprep.subr.bf16.mxu0 0
        %568 = vmatpush2.bf16.msra.mxu0 0
        %569 = vmatprep.subr.bf16.mxu0 0
        %570 = vmatpush2.bf16.msra.mxu0 0
        %571 = vmatprep.subr.bf16.mxu0 0
        %572 = vmatpush2.bf16.msra.mxu0 0
        %573 = vmatprep.subr.bf16.mxu0 0
        %574 = vmatpush2.bf16.msra.mxu0 0
        %575 = vmatprep.subr.bf16.mxu0 0
        %576 = vmatpush2.bf16.msra.mxu0 0
        %577 = vmatprep.subr.bf16.mxu0 0
        %578 = vmatpush2.bf16.msra.mxu0 0
        %579 = vmatprep.subr.bf16.mxu0 0
        %580 = vmatpush2.bf16.msra.mxu0 0
        %581 = vmatprep.mubr.bf16.mxu0 0
        %582 = vmatmul.mubr.bf16.gmra.mxu0 %v547
        %v583 = vpop.f32.mrf.mxu0
        %v584 = vadd.f32 %v532, %v583
        %v585 = vpop.f32.mrf.mxu0
        %v586 = vpop.f32.mrf.mxu0
        %v587 = vpop.f32.mrf.mxu0
        %588 = vdwg.mxu0
        %v589 = vpack.c.bf16 %v584, %v584
        %591 = vrot.lane.b32.xlu0 %v589, 96
        %v592 = vpop.permute.xlu0 %591
        %vm593 = vcmask 64512
        %v595 = vsel %vm593, %v589, 0
        %v598 = vsel %vm593, %v592, 0
        %600 = vmatprep.subr.bf16.mxu0 0
        %601 = vmatpush1.bf16.xpose.msra.mxu0 0
        %602 = vmatprep.subr.bf16.mxu0 0
        %603 = vmatpush1.bf16.xpose.msra.mxu0 0
        %604 = vmatprep.subr.bf16.mxu0 0
        %605 = vmatpush1.bf16.xpose.msra.mxu0 0
        %606 = vmatprep.subr.bf16.mxu0 0
        %607 = vmatpush1.bf16.xpose.msra.mxu0 0
        %608 = vmatprep.subr.bf16.mxu0 0
        %609 = vmatpush1.bf16.xpose.msra.mxu0 0
        %610 = vmatprep.subr.bf16.mxu0 0
        %611 = vmatpush1.bf16.xpose.msra.mxu0 0
        %612 = vmatprep.subr.bf16.mxu0 0
        %613 = vmatpush1.bf16.xpose.msra.mxu0 0
        %614 = vmatprep.subr.bf16.mxu0 0
        %615 = vmatpush1.bf16.xpose.msra.mxu0 %v598
        %616 = vmatprep.subr.bf16.mxu0 0
        %617 = vmatpush2.bf16.xpose.msra.mxu0 0
        %618 = vmatprep.subr.bf16.mxu0 0
        %619 = vmatpush2.bf16.xpose.msra.mxu0 0
        %620 = vmatprep.subr.bf16.mxu0 0
        %621 = vmatpush2.bf16.xpose.msra.mxu0 0
        %622 = vmatprep.subr.bf16.mxu0 0
        %623 = vmatpush2.bf16.xpose.msra.mxu0 0
        %624 = vmatprep.subr.bf16.mxu0 0
        %625 = vmatpush2.bf16.xpose.msra.mxu0 0
        %626 = vmatprep.subr.bf16.mxu0 0
        %627 = vmatpush2.bf16.xpose.msra.mxu0 0
        %628 = vmatprep.subr.bf16.mxu0 0
        %629 = vmatpush2.bf16.xpose.msra.mxu0 0
        %630 = vmatprep.subr.bf16.mxu0 0
        %631 = vmatpush2.bf16.xpose.msra.mxu0 0
        %632 = vmatprep.mubr.bf16.mxu0 0
        %633 = vmatmul.mubr.bf16.gmra.mxu0 %v595
        %v634 = vpop.f32.mrf.mxu0
        %v635 = vadd.f32 0.0, %v634
        %v636 = vpop.f32.mrf.mxu0
        %v637 = vpop.f32.mrf.mxu0
        %v638 = vpop.f32.mrf.mxu0
        %639 = vdwg.mxu0
        %v640 = vsel %vm593, %v635, -inf
        %641 = vmax.xlane.f32.xlu0 %v640
        %v642 = vpop.xlane.xlu0 %641
        %v643 = vsub.f32 %v635, %v642
        %v644 = vmul.f32 %v643, 1.442695
        %v645 = vpow.pop %v644
        %v646 = vsel %vm593, %v645, 0.0
        %647 = vadd.xlane.f32.xlu0 %v646
        %v648 = vpop.xlane.xlu0 %647
        %v649 = vpack.c.bf16 %v645, %v645
        %650 = vrot.lane.b32.xlu0 %v589, 64
        %v651 = vpop.permute.xlu0 %650
        %v653 = vsel %vm593, %v649, 0
        %vm655 = vcmask 1043456
        %v657 = vsel %vm655, %v651, 0
        %659 = vmatprep.subr.bf16.mxu0 0
        %660 = vmatpush1.bf16.msra.mxu0 0
        %661 = vmatprep.subr.bf16.mxu0 0
        %662 = vmatpush1.bf16.msra.mxu0 0
        %663 = vmatprep.subr.bf16.mxu0 0
        %664 = vmatpush1.bf16.msra.mxu0 0
        %665 = vmatprep.subr.bf16.mxu0 0
        %666 = vmatpush1.bf16.msra.mxu0 0
        %667 = vmatprep.subr.bf16.mxu0 0
        %668 = vmatpush1.bf16.msra.mxu0 0
        %669 = vmatprep.subr.bf16.mxu0 0
        %670 = vmatpush1.bf16.msra.mxu0 0
        %671 = vmatprep.subr.bf16.mxu0 0
        %672 = vmatpush1.bf16.msra.mxu0 0
        %673 = vmatprep.subr.bf16.mxu0 0
        %674 = vmatpush1.bf16.msra.mxu0 %v657
        %675 = vmatprep.subr.bf16.mxu0 0
        %676 = vmatpush2.bf16.msra.mxu0 0
        %677 = vmatprep.subr.bf16.mxu0 0
        %678 = vmatpush2.bf16.msra.mxu0 0
        %679 = vmatprep.subr.bf16.mxu0 0
        %680 = vmatpush2.bf16.msra.mxu0 0
        %681 = vmatprep.subr.bf16.mxu0 0
        %682 = vmatpush2.bf16.msra.mxu0 0
        %683 = vmatprep.subr.bf16.mxu0 0
        %684 = vmatpush2.bf16.msra.mxu0 0
        %685 = vmatprep.subr.bf16.mxu0 0
        %686 = vmatpush2.bf16.msra.mxu0 0
        %687 = vmatprep.subr.bf16.mxu0 0
        %688 = vmatpush2.bf16.msra.mxu0 0
        %689 = vmatprep.subr.bf16.mxu0 0
        %690 = vmatpush2.bf16.msra.mxu0 0
        %691 = vmatprep.mubr.bf16.mxu0 0
        %692 = vmatmul.mubr.bf16.gmra.mxu0 %v653
        %v693 = vpop.f32.mrf.mxu0
        %v694 = vadd.f32 0.0, %v693
        %v695 = vpop.f32.mrf.mxu0
        %v696 = vpop.f32.mrf.mxu0
        %v697 = vpop.f32.mrf.mxu0
        %698 = vdwg.mxu0
        %v699 = vrcp.pop %v648
        %v700 = vmul.f32 %v694, %v699
        %v701 = vpack.c.bf16 %v700, %v700
        %vm702 = vcmask 60416
        %703 = vst.msk [vmem:[#allocation2] sm:$0xf] %vm702, %v701
        %704 = vrot.lane.b32.xlu0 %v589, 120
        %v705 = vpop.permute.xlu0 %704
        %706 = vrot.lane.b32.xlu0 %v589, 88
        %v707 = vpop.permute.xlu0 %706
        %v709 = vsel %vm593, %v705, 0
        %v712 = vsel %vm593, %v707, 0
        %714 = vmatprep.subr.bf16.mxu0 0
        %715 = vmatpush1.bf16.xpose.msra.mxu0 0
        %716 = vmatprep.subr.bf16.mxu0 0
        %717 = vmatpush1.bf16.xpose.msra.mxu0 0
        %718 = vmatprep.subr.bf16.mxu0 0
        %719 = vmatpush1.bf16.xpose.msra.mxu0 0
        %720 = vmatprep.subr.bf16.mxu0 0
        %721 = vmatpush1.bf16.xpose.msra.mxu0 0
        %722 = vmatprep.subr.bf16.mxu0 0
        %723 = vmatpush1.bf16.xpose.msra.mxu0 0
        %724 = vmatprep.subr.bf16.mxu0 0
        %725 = vmatpush1.bf16.xpose.msra.mxu0 0
        %726 = vmatprep.subr.bf16.mxu0 0
        %727 = vmatpush1.bf16.xpose.msra.mxu0 0
        %728 = vmatprep.subr.bf16.mxu0 0
        %729 = vmatpush1.bf16.xpose.msra.mxu0 %v712
        %730 = vmatprep.subr.bf16.mxu0 0
        %731 = vmatpush2.bf16.xpose.msra.mxu0 0
        %732 = vmatprep.subr.bf16.mxu0 0
        %733 = vmatpush2.bf16.xpose.msra.mxu0 0
        %734 = vmatprep.subr.bf16.mxu0 0
        %735 = vmatpush2.bf16.xpose.msra.mxu0 0
        %736 = vmatprep.subr.bf16.mxu0 0
        %737 = vmatpush2.bf16.xpose.msra.mxu0 0
        %738 = vmatprep.subr.bf16.mxu0 0
        %739 = vmatpush2.bf16.xpose.msra.mxu0 0
        %740 = vmatprep.subr.bf16.mxu0 0
        %741 = vmatpush2.bf16.xpose.msra.mxu0 0
        %742 = vmatprep.subr.bf16.mxu0 0
        %743 = vmatpush2.bf16.xpose.msra.mxu0 0
        %744 = vmatprep.subr.bf16.mxu0 0
        %745 = vmatpush2.bf16.xpose.msra.mxu0 0
        %746 = vmatprep.mubr.bf16.mxu0 0
        %747 = vmatmul.mubr.bf16.gmra.mxu0 %v709
        %v748 = vpop.f32.mrf.mxu0
        %v749 = vadd.f32 0.0, %v748
        %v750 = vpop.f32.mrf.mxu0
        %v751 = vpop.f32.mrf.mxu0
        %v752 = vpop.f32.mrf.mxu0
        %753 = vdwg.mxu0
        %v754 = vsel %vm593, %v749, -inf
        %755 = vmax.xlane.f32.xlu0 %v754
        %v756 = vpop.xlane.xlu0 %755
        %v757 = vsub.f32 %v749, %v756
        %v758 = vmul.f32 %v757, 1.442695
        %v759 = vpow.pop %v758
        %v760 = vsel %vm593, %v759, 0.0
        %761 = vadd.xlane.f32.xlu0 %v760
        %v762 = vpop.xlane.xlu0 %761
        %v763 = vpack.c.bf16 %v759, %v759
        %764 = vrot.lane.b32.xlu0 %v589, 56
        %v765 = vpop.permute.xlu0 %764
        %v767 = vsel %vm593, %v763, 0
        %v770 = vsel %vm655, %v765, 0
        %772 = vmatprep.subr.bf16.mxu0 0
        %773 = vmatpush1.bf16.msra.mxu0 0
        %774 = vmatprep.subr.bf16.mxu0 0
        %775 = vmatpush1.bf16.msra.mxu0 0
        %776 = vmatprep.subr.bf16.mxu0 0
        %777 = vmatpush1.bf16.msra.mxu0 0
        %778 = vmatprep.subr.bf16.mxu0 0
        %779 = vmatpush1.bf16.msra.mxu0 0
        %780 = vmatprep.subr.bf16.mxu0 0
        %781 = vmatpush1.bf16.msra.mxu0 0
        %782 = vmatprep.subr.bf16.mxu0 0
        %783 = vmatpush1.bf16.msra.mxu0 0
        %784 = vmatprep.subr.bf16.mxu0 0
        %785 = vmatpush1.bf16.msra.mxu0 0
        %786 = vmatprep.subr.bf16.mxu0 0
        %787 = vmatpush1.bf16.msra.mxu0 %v770
        %788 = vmatprep.subr.bf16.mxu0 0
        %789 = vmatpush2.bf16.msra.mxu0 0
        %790 = vmatprep.subr.bf16.mxu0 0
        %791 = vmatpush2.bf16.msra.mxu0 0
        %792 = vmatprep.subr.bf16.mxu0 0
        %793 = vmatpush2.bf16.msra.mxu0 0
        %794 = vmatprep.subr.bf16.mxu0 0
        %795 = vmatpush2.bf16.msra.mxu0 0
        %796 = vmatprep.subr.bf16.mxu0 0
        %797 = vmatpush2.bf16.msra.mxu0 0
        %798 = vmatprep.subr.bf16.mxu0 0
        %799 = vmatpush2.bf16.msra.mxu0 0
        %800 = vmatprep.subr.bf16.mxu0 0
        %801 = vmatpush2.bf16.msra.mxu0 0
        %802 = vmatprep.subr.bf16.mxu0 0
        %803 = vmatpush2.bf16.msra.mxu0 0
        %804 = vmatprep.mubr.bf16.mxu0 0
        %805 = vmatmul.mubr.bf16.gmra.mxu0 %v767
        %v806 = vpop.f32.mrf.mxu0
        %v807 = vadd.f32 0.0, %v806
        %v808 = vpop.f32.mrf.mxu0
        %v809 = vpop.f32.mrf.mxu0
        %v810 = vpop.f32.mrf.mxu0
        %811 = vdwg.mxu0
        %v812 = vrcp.pop %v762
        %v813 = vmul.f32 %v807, %v812
        %v814 = vpack.c.bf16 %v813, %v813
        %v816 = vunpack.c.l.b16 %v814
        %v817 = vpack.c.b16 %v816, %v816
        %818 = vrot.lane.b32.xlu0 %v817, 8
        %v819 = vpop.permute.xlu0 %818
        %vm821 = vcmask 126016
        %822 = vst.msk [vmem:[#allocation2] sm:$0xf] %vm821, %v819
        %823 = vrot.lane.b32.xlu0 %v589, 112
        %v824 = vpop.permute.xlu0 %823
        %825 = vrot.lane.b32.xlu0 %v589, 80
        %v826 = vpop.permute.xlu0 %825
        %v828 = vsel %vm593, %v824, 0
        %v831 = vsel %vm593, %v826, 0
        %833 = vmatprep.subr.bf16.mxu0 0
        %834 = vmatpush1.bf16.xpose.msra.mxu0 0
        %835 = vmatprep.subr.bf16.mxu0 0
        %836 = vmatpush1.bf16.xpose.msra.mxu0 0
        %837 = vmatprep.subr.bf16.mxu0 0
        %838 = vmatpush1.bf16.xpose.msra.mxu0 0
        %839 = vmatprep.subr.bf16.mxu0 0
        %840 = vmatpush1.bf16.xpose.msra.mxu0 0
        %841 = vmatprep.subr.bf16.mxu0 0
        %842 = vmatpush1.bf16.xpose.msra.mxu0 0
        %843 = vmatprep.subr.bf16.mxu0 0
        %844 = vmatpush1.bf16.xpose.msra.mxu0 0
        %845 = vmatprep.subr.bf16.mxu0 0
        %846 = vmatpush1.bf16.xpose.msra.mxu0 0
        %847 = vmatprep.subr.bf16.mxu0 0
        %848 = vmatpush1.bf16.xpose.msra.mxu0 %v831
        %849 = vmatprep.subr.bf16.mxu0 0
        %850 = vmatpush2.bf16.xpose.msra.mxu0 0
        %851 = vmatprep.subr.bf16.mxu0 0
        %852 = vmatpush2.bf16.xpose.msra.mxu0 0
        %853 = vmatprep.subr.bf16.mxu0 0
        %854 = vmatpush2.bf16.xpose.msra.mxu0 0
        %855 = vmatprep.subr.bf16.mxu0 0
        %856 = vmatpush2.bf16.xpose.msra.mxu0 0
        %857 = vmatprep.subr.bf16.mxu0 0
        %858 = vmatpush2.bf16.xpose.msra.mxu0 0
        %859 = vmatprep.subr.bf16.mxu0 0
        %860 = vmatpush2.bf16.xpose.msra.mxu0 0
        %861 = vmatprep.subr.bf16.mxu0 0
        %862 = vmatpush2.bf16.xpose.msra.mxu0 0
        %863 = vmatprep.subr.bf16.mxu0 0
        %864 = vmatpush2.bf16.xpose.msra.mxu0 0
        %865 = vmatprep.mubr.bf16.mxu0 0
        %866 = vmatmul.mubr.bf16.gmra.mxu0 %v828
        %v867 = vpop.f32.mrf.mxu0
        %v868 = vadd.f32 0.0, %v867
        %v869 = vpop.f32.mrf.mxu0
        %v870 = vpop.f32.mrf.mxu0
        %v871 = vpop.f32.mrf.mxu0
        %872 = vdwg.mxu0
        %v873 = vsel %vm593, %v868, -inf
        %874 = vmax.xlane.f32.xlu0 %v873
        %v875 = vpop.xlane.xlu0 %874
        %v876 = vsub.f32 %v868, %v875
        %v877 = vmul.f32 %v876, 1.442695
        %v878 = vpow.pop %v877
        %v879 = vsel %vm593, %v878, 0.0
        %880 = vadd.xlane.f32.xlu0 %v879
        %v881 = vpop.xlane.xlu0 %880
        %v882 = vpack.c.bf16 %v878, %v878
        %883 = vrot.lane.b32.xlu0 %v589, 48
        %v884 = vpop.permute.xlu0 %883
        %v886 = vsel %vm593, %v882, 0
        %v889 = vsel %vm655, %v884, 0
        %891 = vmatprep.subr.bf16.mxu0 0
        %892 = vmatpush1.bf16.msra.mxu0 0
        %893 = vmatprep.subr.bf16.mxu0 0
        %894 = vmatpush1.bf16.msra.mxu0 0
        %895 = vmatprep.subr.bf16.mxu0 0
        %896 = vmatpush1.bf16.msra.mxu0 0
        %897 = vmatprep.subr.bf16.mxu0 0
        %898 = vmatpush1.bf16.msra.mxu0 0
        %899 = vmatprep.subr.bf16.mxu0 0
        %900 = vmatpush1.bf16.msra.mxu0 0
        %901 = vmatprep.subr.bf16.mxu0 0
        %902 = vmatpush1.bf16.msra.mxu0 0
        %903 = vmatprep.subr.bf16.mxu0 0
        %904 = vmatpush1.bf16.msra.mxu0 0
        %905 = vmatprep.subr.bf16.mxu0 0
        %906 = vmatpush1.bf16.msra.mxu0 %v889
        %907 = vmatprep.subr.bf16.mxu0 0
        %908 = vmatpush2.bf16.msra.mxu0 0
        %909 = vmatprep.subr.bf16.mxu0 0
        %910 = vmatpush2.bf16.msra.mxu0 0
        %911 = vmatprep.subr.bf16.mxu0 0
        %912 = vmatpush2.bf16.msra.mxu0 0
        %913 = vmatprep.subr.bf16.mxu0 0
        %914 = vmatpush2.bf16.msra.mxu0 0
        %915 = vmatprep.subr.bf16.mxu0 0
        %916 = vmatpush2.bf16.msra.mxu0 0
        %917 = vmatprep.subr.bf16.mxu0 0
        %918 = vmatpush2.bf16.msra.mxu0 0
        %919 = vmatprep.subr.bf16.mxu0 0
        %920 = vmatpush2.bf16.msra.mxu0 0
        %921 = vmatprep.subr.bf16.mxu0 0
        %922 = vmatpush2.bf16.msra.mxu0 0
        %923 = vmatprep.mubr.bf16.mxu0 0
        %924 = vmatmul.mubr.bf16.gmra.mxu0 %v886
        %v925 = vpop.f32.mrf.mxu0
        %v926 = vadd.f32 0.0, %v925
        %v927 = vpop.f32.mrf.mxu0
        %v928 = vpop.f32.mrf.mxu0
        %v929 = vpop.f32.mrf.mxu0
        %930 = vdwg.mxu0
        %v931 = vrcp.pop %v881
        %v932 = vmul.f32 %v926, %v931
        %v933 = vpack.c.bf16 %v932, %v932
        %v935 = vunpack.c.l.b16 %v933
        %v936 = vpack.c.b16 %v935, %v935
        %937 = vrot.lane.b32.xlu0 %v936, 16
        %v938 = vpop.permute.xlu0 %937
        %vm940 = vcmask 191616
        %941 = vst.msk [vmem:[#allocation2] sm:$0xf] %vm940, %v938
        %942 = vrot.lane.b32.xlu0 %v589, 104
        %v943 = vpop.permute.xlu0 %942
        %944 = vrot.lane.b32.xlu0 %v589, 72
        %v945 = vpop.permute.xlu0 %944
        %v947 = vsel %vm593, %v943, 0
        %v950 = vsel %vm593, %v945, 0
        %952 = vmatprep.subr.bf16.mxu0 0
        %953 = vmatpush1.bf16.xpose.msra.mxu0 0
        %954 = vmatprep.subr.bf16.mxu0 0
        %955 = vmatpush1.bf16.xpose.msra.mxu0 0
        %956 = vmatprep.subr.bf16.mxu0 0
        %957 = vmatpush1.bf16.xpose.msra.mxu0 0
        %958 = vmatprep.subr.bf16.mxu0 0
        %959 = vmatpush1.bf16.xpose.msra.mxu0 0
        %960 = vmatprep.subr.bf16.mxu0 0
        %961 = vmatpush1.bf16.xpose.msra.mxu0 0
        %962 = vmatprep.subr.bf16.mxu0 0
        %963 = vmatpush1.bf16.xpose.msra.mxu0 0
        %964 = vmatprep.subr.bf16.mxu0 0
        %965 = vmatpush1.bf16.xpose.msra.mxu0 0
        %966 = vmatprep.subr.bf16.mxu0 0
        %967 = vmatpush1.bf16.xpose.msra.mxu0 %v950
        %968 = vmatprep.subr.bf16.mxu0 0
        %969 = vmatpush2.bf16.xpose.msra.mxu0 0
        %970 = vmatprep.subr.bf16.mxu0 0
        %971 = vmatpush2.bf16.xpose.msra.mxu0 0
        %972 = vmatprep.subr.bf16.mxu0 0
        %973 = vmatpush2.bf16.xpose.msra.mxu0 0
        %974 = vmatprep.subr.bf16.mxu0 0
        %975 = vmatpush2.bf16.xpose.msra.mxu0 0
        %976 = vmatprep.subr.bf16.mxu0 0
        %977 = vmatpush2.bf16.xpose.msra.mxu0 0
        %978 = vmatprep.subr.bf16.mxu0 0
        %979 = vmatpush2.bf16.xpose.msra.mxu0 0
        %980 = vmatprep.subr.bf16.mxu0 0
        %981 = vmatpush2.bf16.xpose.msra.mxu0 0
        %982 = vmatprep.subr.bf16.mxu0 0
        %983 = vmatpush2.bf16.xpose.msra.mxu0 0
        %984 = vmatprep.mubr.bf16.mxu0 0
        %985 = vmatmul.mubr.bf16.gmra.mxu0 %v947
        %v986 = vpop.f32.mrf.mxu0
        %v987 = vadd.f32 0.0, %v986
        %v988 = vpop.f32.mrf.mxu0
        %v989 = vpop.f32.mrf.mxu0
        %v990 = vpop.f32.mrf.mxu0
        %991 = vdwg.mxu0
        %v992 = vsel %vm593, %v987, -inf
        %993 = vmax.xlane.f32.xlu0 %v992
        %v994 = vpop.xlane.xlu0 %993
        %v995 = vsub.f32 %v987, %v994
        %v996 = vmul.f32 %v995, 1.442695
        %v997 = vpow.pop %v996
        %v998 = vsel %vm593, %v997, 0.0
        %999 = vadd.xlane.f32.xlu0 %v998
        %v1000 = vpop.xlane.xlu0 %999
        %v1001 = vpack.c.bf16 %v997, %v997
        %1002 = vrot.lane.b32.xlu0 %v589, 40
        %v1003 = vpop.permute.xlu0 %1002
        %v1005 = vsel %vm593, %v1001, 0
        %v1008 = vsel %vm655, %v1003, 0
        %1010 = vmatprep.subr.bf16.mxu0 0
        %1011 = vmatpush1.bf16.msra.mxu0 0
        %1012 = vmatprep.subr.bf16.mxu0 0
        %1013 = vmatpush1.bf16.msra.mxu0 0
        %1014 = vmatprep.subr.bf16.mxu0 0
        %1015 = vmatpush1.bf16.msra.mxu0 0
        %1016 = vmatprep.subr.bf16.mxu0 0
        %1017 = vmatpush1.bf16.msra.mxu0 0
        %1018 = vmatprep.subr.bf16.mxu0 0
        %1019 = vmatpush1.bf16.msra.mxu0 0
        %1020 = vmatprep.subr.bf16.mxu0 0
        %1021 = vmatpush1.bf16.msra.mxu0 0
        %1022 = vmatprep.subr.bf16.mxu0 0
        %1023 = vmatpush1.bf16.msra.mxu0 0
        %1024 = vmatprep.subr.bf16.mxu0 0
        %1025 = vmatpush1.bf16.msra.mxu0 %v1008
        %1026 = vmatprep.subr.bf16.mxu0 0
        %1027 = vmatpush2.bf16.msra.mxu0 0
        %1028 = vmatprep.subr.bf16.mxu0 0
        %1029 = vmatpush2.bf16.msra.mxu0 0
        %1030 = vmatprep.subr.bf16.mxu0 0
        %1031 = vmatpush2.bf16.msra.mxu0 0
        %1032 = vmatprep.subr.bf16.mxu0 0
        %1033 = vmatpush2.bf16.msra.mxu0 0
        %1034 = vmatprep.subr.bf16.mxu0 0
        %1035 = vmatpush2.bf16.msra.mxu0 0
        %1036 = vmatprep.subr.bf16.mxu0 0
        %1037 = vmatpush2.bf16.msra.mxu0 0
        %1038 = vmatprep.subr.bf16.mxu0 0
        %1039 = vmatpush2.bf16.msra.mxu0 0
        %1040 = vmatprep.subr.bf16.mxu0 0
        %1041 = vmatpush2.bf16.msra.mxu0 0
        %1042 = vmatprep.mubr.bf16.mxu0 0
        %1043 = vmatmul.mubr.bf16.gmra.mxu0 %v1005
        %v1044 = vpop.f32.mrf.mxu0
        %v1045 = vadd.f32 0.0, %v1044
        %v1046 = vpop.f32.mrf.mxu0
        %v1047 = vpop.f32.mrf.mxu0
        %v1048 = vpop.f32.mrf.mxu0
        %1049 = vdwg.mxu0
        %v1050 = vrcp.pop %v1000
        %v1051 = vmul.f32 %v1045, %v1050
        %v1052 = vpack.c.bf16 %v1051, %v1051
        %v1054 = vunpack.c.l.b16 %v1052
        %v1055 = vpack.c.b16 %v1054, %v1054
        %1056 = vrot.lane.b32.xlu0 %v1055, 24
        %v1057 = vpop.permute.xlu0 %1056
        %vm1059 = vcmask 257216
        %1060 = vst.msk [vmem:[#allocation2] sm:$0xf] %vm1059, %v1057
        %v1061 = vld [vmem:[#allocation2] sm:$0xf]
        %v1062 = vld [vmem:[%s5] sm:$0xf]
        %v1063 = vld [vmem:[%s5 + $0x4] sm:$0xf]
        %v1064 = vld [vmem:[%s5 + $0x8] sm:$0xf]
        %v1065 = vld [vmem:[%s5 + $0xc] sm:$0xf]
        %v1066 = vld [vmem:[%s6] sm:$0x1]
        %v1068 = vlaneseq
        %v1069 = vshrl.u32 %v1068, 7
        %v1070 = vsub.s32 0, %v1069
        %v1071 = vrot.slane %v1066, %v1070
        %v1077 = vunpack.c.l.b16 %v1062
        %v1078 = vunpack.c.l.b16 %v1063
        %v1079 = vunpack.c.l.b16 %v1064
        %v1080 = vunpack.c.l.b16 %v1065
        %v1081 = vpack.c.b16 %v1078, %v1077
        %v1082 = vpack.c.b16 %v1080, %v1079
        %v1086 = vsel %vm493, %v1061, 0
        %1088 = vmatprep.subr.bf16.mxu0 0
        %1089 = vmatpush1.bf16.msra.mxu0 0
        %1090 = vmatprep.subr.bf16.mxu0 0
        %1091 = vmatpush1.bf16.msra.mxu0 0
        %1092 = vmatprep.subr.bf16.mxu0 0
        %1093 = vmatpush1.bf16.msra.mxu0 0
        %1094 = vmatprep.subr.bf16.mxu0 0
        %1095 = vmatpush1.bf16.msra.mxu0 0
        %1096 = vmatprep.subr.bf16.mxu0 0
        %1097 = vmatpush1.bf16.msra.mxu0 0
        %1098 = vmatprep.subr.bf16.mxu0 0
        %1099 = vmatpush1.bf16.msra.mxu0 0
        %1100 = vmatprep.subr.bf16.mxu0 0
        %1101 = vmatpush1.bf16.msra.mxu0 %v1082
        %1102 = vmatprep.subr.bf16.mxu0 0
        %1103 = vmatpush1.bf16.msra.mxu0 %v1081
        %1104 = vmatprep.subr.bf16.mxu0 0
        %1105 = vmatpush2.bf16.msra.mxu0 0
        %1106 = vmatprep.subr.bf16.mxu0 0
        %1107 = vmatpush2.bf16.msra.mxu0 0
        %1108 = vmatprep.subr.bf16.mxu0 0
        %1109 = vmatpush2.bf16.msra.mxu0 0
        %1110 = vmatprep.subr.bf16.mxu0 0
        %1111 = vmatpush2.bf16.msra.mxu0 0
        %1112 = vmatprep.subr.bf16.mxu0 0
        %1113 = vmatpush2.bf16.msra.mxu0 0
        %1114 = vmatprep.subr.bf16.mxu0 0
        %1115 = vmatpush2.bf16.msra.mxu0 0
        %1116 = vmatprep.subr.bf16.mxu0 0
        %1117 = vmatpush2.bf16.msra.mxu0 0
        %1118 = vmatprep.subr.bf16.mxu0 0
        %1119 = vmatpush2.bf16.msra.mxu0 0
        %1120 = vmatprep.mubr.bf16.mxu0 0
        %1121 = vmatmul.mubr.bf16.gmra.mxu0 %v1086
        %v1122 = vpop.f32.mrf.mxu0
        %v1123 = vadd.f32 %v1071, %v1122
        %v1124 = vpop.f32.mrf.mxu0
        %v1125 = vpop.f32.mrf.mxu0
        %v1126 = vpop.f32.mrf.mxu0
        %1127 = vdwg.mxu0
        %v1128 = vadd.f32 %v490, %v1123
        %v1129 = vld [vmem:[#allocation3] sm:$0x1]
        %v1130 = vld [vmem:[#allocation6] sm:$0x1]
        %v1131 = vsel %vm493, %v1128, 0.0
        %1132 = vadd.xlane.f32.xlu0 %v1131
        %v1133 = vpop.xlane.xlu0 %1132
        %v1134 = vmul.f32 %v1133, %v497
        %v1135 = vsub.f32 %v1128, %v1134
        %v1136 = vmul.f32 %v1135, %v1135
        %v1137 = vsel %vm493, %v1136, 0.0
        %1138 = vadd.xlane.f32.xlu0 %v1137
        %v1139 = vpop.xlane.xlu0 %1138
        %v1140 = vmul.f32 %v1139, %v497
        %v1141 = vadd.f32 %v1140, 1e-05
        %v1142 = vrsqrt.pop %v1141
        %v1143 = vmul.f32 %v1135, %v1142
        %v1145 = vlaneseq
        %v1146 = vshrl.u32 %v1145, 7
        %v1147 = vsub.s32 0, %v1146
        %v1148 = vrot.slane %v1129, %v1147
        %v1150 = vmul.f32 %v1143, %v1148
        %v1152 = vlaneseq
        %v1153 = vshrl.u32 %v1152, 7
        %v1154 = vsub.s32 0, %v1153
        %v1155 = vrot.slane %v1130, %v1154
        %v1157 = vadd.f32 %v1150, %v1155
        %v1158 = vpack.c.bf16 %v1157, %v1157
        %v1159 = vld [vmem:[#allocation8] sm:$0xf]
        %v1160 = vld [vmem:[#allocation8 + $0x4] sm:$0xf]
        %v1161 = vld [vmem:[#allocation8 + $0x8] sm:$0xf]
        %v1162 = vld [vmem:[#allocation8 + $0xc] sm:$0xf]
        %v1163 = vld [vmem:[#allocation9] sm:$0x1]
        %v1165 = vlaneseq
        %v1166 = vshrl.u32 %v1165, 7
        %v1167 = vsub.s32 0, %v1166
        %v1168 = vrot.slane %v1163, %v1167
        %v1174 = vunpack.c.l.b16 %v1159
        %v1175 = vunpack.c.l.b16 %v1160
        %v1176 = vunpack.c.l.b16 %v1161
        %v1177 = vunpack.c.l.b16 %v1162
        %v1178 = vpack.c.b16 %v1175, %v1174
        %v1179 = vpack.c.b16 %v1177, %v1176
        %v1183 = vsel %vm493, %v1158, 0
        %1185 = vmatprep.subr.bf16.mxu0 0
        %1186 = vmatpush1.bf16.msra.mxu0 0
        %1187 = vmatprep.subr.bf16.mxu0 0
        %1188 = vmatpush1.bf16.msra.mxu0 0
        %1189 = vmatprep.subr.bf16.mxu0 0
        %1190 = vmatpush1.bf16.msra.mxu0 0
        %1191 = vmatprep.subr.bf16.mxu0 0
        %1192 = vmatpush1.bf16.msra.mxu0 0
        %1193 = vmatprep.subr.bf16.mxu0 0
        %1194 = vmatpush1.bf16.msra.mxu0 0
        %1195 = vmatprep.subr.bf16.mxu0 0
        %1196 = vmatpush1.bf16.msra.mxu0 0
        %1197 = vmatprep.subr.bf16.mxu0 0
        %1198 = vmatpush1.bf16.msra.mxu0 %v1179
        %1199 = vmatprep.subr.bf16.mxu0 0
        %1200 = vmatpush1.bf16.msra.mxu0 %v1178
        %1201 = vmatprep.subr.bf16.mxu0 0
        %1202 = vmatpush2.bf16.msra.mxu0 0
        %1203 = vmatprep.subr.bf16.mxu0 0
        %1204 = vmatpush2.bf16.msra.mxu0 0
        %1205 = vmatprep.subr.bf16.mxu0 0
        %1206 = vmatpush2.bf16.msra.mxu0 0
        %1207 = vmatprep.subr.bf16.mxu0 0
        %1208 = vmatpush2.bf16.msra.mxu0 0
        %1209 = vmatprep.subr.bf16.mxu0 0
        %1210 = vmatpush2.bf16.msra.mxu0 0
        %1211 = vmatprep.subr.bf16.mxu0 0
        %1212 = vmatpush2.bf16.msra.mxu0 0
        %1213 = vmatprep.subr.bf16.mxu0 0
        %1214 = vmatpush2.bf16.msra.mxu0 0
        %1215 = vmatprep.subr.bf16.mxu0 0
        %1216 = vmatpush2.bf16.msra.mxu0 0
        %1217 = vmatprep.mubr.bf16.mxu0 0
        %1218 = vmatmul.mubr.bf16.gmra.mxu0 %v1183
        %v1219 = vpop.f32.mrf.mxu0
        %v1220 = vadd.f32 %v1168, %v1219
        %v1221 = vpop.f32.mrf.mxu0
        %v1222 = vpop.f32.mrf.mxu0
        %v1223 = vpop.f32.mrf.mxu0
        %1224 = vdwg.mxu0
        %v1225 = vmul.f32 %v1220, 0.5
        %v1226 = vmul.f32 %v1220, 0.044715
        %v1227 = vmul.f32 %v1226, %v1220
        %v1228 = vmul.f32 %v1227, %v1220
        %v1229 = vadd.f32 %v1220, %v1228
        %v1230 = vmul.f32 %v1229, 0.7978846
        %v1231 = vtanh.pop %v1230
        %v1232 = vadd.f32 %v1231, 1.0
        %v1233 = vmul.f32 %v1225, %v1232
        %v1234 = vpack.c.bf16 %v1233, %v1233
        %v1235 = vld [vmem:[%s11] sm:$0xf]
        %v1236 = vld [vmem:[%s11 + $0x4] sm:$0xf]
        %v1237 = vld [vmem:[%s11 + $0x8] sm:$0xf]
        %v1238 = vld [vmem:[%s11 + $0xc] sm:$0xf]
        %v1239 = vld [vmem:[%s11 + $0x10] sm:$0xf]
        %v1240 = vld [vmem:[%s11 + $0x14] sm:$0xf]
        %v1241 = vld [vmem:[%s11 + $0x18] sm:$0xf]
        %v1242 = vld [vmem:[%s11 + $0x1c] sm:$0xf]
        %v1243 = vld [vmem:[%s12] sm:$0x1]
        %v1245 = vlaneseq
        %v1246 = vshrl.u32 %v1245, 7
        %v1247 = vsub.s32 0, %v1246
        %v1248 = vrot.slane %v1243, %v1247
        %v1258 = vunpack.c.l.b16 %v1235
        %v1259 = vunpack.c.l.b16 %v1236
        %v1260 = vunpack.c.l.b16 %v1237
        %v1261 = vunpack.c.l.b16 %v1238
        %v1262 = vunpack.c.l.b16 %v1239
        %v1263 = vunpack.c.l.b16 %v1240
        %v1264 = vunpack.c.l.b16 %v1241
        %v1265 = vunpack.c.l.b16 %v1242
        %v1266 = vpack.c.b16 %v1259, %v1258
        %v1267 = vpack.c.b16 %v1261, %v1260
        %v1268 = vpack.c.b16 %v1263, %v1262
        %v1269 = vpack.c.b16 %v1265, %v1264
        %vm1274 = vcmask 523264
        %v1276 = vsel %vm1274, %v1234, 0
        %1278 = vmatprep.subr.bf16.mxu0 0
        %1279 = vmatpush1.bf16.msra.mxu0 0
        %1280 = vmatprep.subr.bf16.mxu0 0
        %1281 = vmatpush1.bf16.msra.mxu0 0
        %1282 = vmatprep.subr.bf16.mxu0 0
        %1283 = vmatpush1.bf16.msra.mxu0 0
        %1284 = vmatprep.subr.bf16.mxu0 0
        %1285 = vmatpush1.bf16.msra.mxu0 0
        %1286 = vmatprep.subr.bf16.mxu0 0
        %1287 = vmatpush1.bf16.msra.mxu0 %v1269
        %1288 = vmatprep.subr.bf16.mxu0 0
        %1289 = vmatpush1.bf16.msra.mxu0 %v1268
        %1290 = vmatprep.subr.bf16.mxu0 0
        %1291 = vmatpush1.bf16.msra.mxu0 %v1267
        %1292 = vmatprep.subr.bf16.mxu0 0
        %1293 = vmatpush1.bf16.msra.mxu0 %v1266
        %1294 = vmatprep.subr.bf16.mxu0 0
        %1295 = vmatpush2.bf16.msra.mxu0 0
        %1296 = vmatprep.subr.bf16.mxu0 0
        %1297 = vmatpush2.bf16.msra.mxu0 0
        %1298 = vmatprep.subr.bf16.mxu0 0
        %1299 = vmatpush2.bf16.msra.mxu0 0
        %1300 = vmatprep.subr.bf16.mxu0 0
        %1301 = vmatpush2.bf16.msra.mxu0 0
        %1302 = vmatprep.subr.bf16.mxu0 0
        %1303 = vmatpush2.bf16.msra.mxu0 0
        %1304 = vmatprep.subr.bf16.mxu0 0
        %1305 = vmatpush2.bf16.msra.mxu0 0
        %1306 = vmatprep.subr.bf16.mxu0 0
        %1307 = vmatpush2.bf16.msra.mxu0 0
        %1308 = vmatprep.subr.bf16.mxu0 0
        %1309 = vmatpush2.bf16.msra.mxu0 0
        %1310 = vmatprep.mubr.bf16.mxu0 0
        %1311 = vmatmul.mubr.bf16.gmra.mxu0 %v1276
        %v1312 = vpop.f32.mrf.mxu0
        %v1313 = vadd.f32 %v1248, %v1312
        %v1314 = vpop.f32.mrf.mxu0
        %v1315 = vpop.f32.mrf.mxu0
        %v1316 = vpop.f32.mrf.mxu0
        %1317 = vdwg.mxu0
        %v1318 = vadd.f32 %v1128, %v1313
        %1319 = vst.msk [vmem:[%s484] sm:$0xff] %vm493, %v1318
        %s1320 = sand.u32 %s316, 1
        %s1321 = scalar_lea.sflag [#allocation5], %s1320
        %s1322 = sand.u32 %s316, 1
        %s1323 = smul.addr %s1322, 8
        %s1324 = scalar_lea.vmem [#allocation11], %s1323
        // Predicated region
        $region89: #{tpu_custom_call.1} parent=71 // pred_check
          %p1325 = pneg %p326
        $region90: #{tpu_custom_call.1} parent=71 // pred_check_branch
          %1327 = sbr.rel (%p1325) target = $region92
        $region91: #{tpu_custom_call.1} parent=71 // pred_region
          %s1329 = ssub.s32 128, 128
          %1330 = vsyncadd %s1321, %s1329
          %s1331 = smul.addr %s30, 128
          %s1332 = scalar_lea.hbm %s13, %s1331
          %s1334 = sshll.u32 %s1324, 4
          %s1335 = int_to_ptr.vmem [resolvable:$true] %s1334
          %1337 = dma.vmem_to_hbm [thread:$0]  %s1335, 128, %s1332, %s1321
        $region92: #{tpu_custom_call.1} parent=71 // pred_fallthru
          _
      $region72: #{tpu_custom_call.1} parent=5 // pred_fallthru
        _
      %p1338 = scmp.le.s32.totalorder 2, %s25
      // Predicated region
      $region93: #{tpu_custom_call.1} parent=5 // pred_check
        %p1339 = pneg %p1338
      $region94: #{tpu_custom_call.1} parent=5 // pred_check_branch
        %1341 = sbr.rel (%p1339) target = $region96
      $region95: #{tpu_custom_call.1} parent=5 // pred_region
        %s1342 = ssub.s32 %s25, 2
        // Predicated region
        $region97: #{tpu_custom_call.1} parent=95 // pred_check
          %p1343 = pneg %p332
        $region98: #{tpu_custom_call.1} parent=95 // pred_check_branch
          %1345 = sbr.rel (%p1343) target = $region100
        $region99: #{tpu_custom_call.1} parent=95 // pred_region
          %s1346 = sand.u32 %s317, 1
          %s1347 = scalar_lea.sflag [#allocation5], %s1346
          %s1348 = sand.u32 %s317, 1
          %s1349 = smul.addr %s1348, 8
          %s1350 = scalar_lea.vmem [#allocation11], %s1349
          %1351 = dma.done %s1347, 128
        $region100: #{tpu_custom_call.1} parent=95 // pred_fallthru
          _
      $region96: #{tpu_custom_call.1} parent=5 // pred_fallthru
        _
    $region6: #{tpu_custom_call.1} parent=1 // loop_footer
      %s29 = sadd.s32 1, %s25
    $region7: #{tpu_custom_call.1} parent=1 // loop_footer_branch
      %24 = sbr.rel target = $region3
    $region8: #{tpu_custom_call.1} parent=1 // loop_exit
      _
    %1352 = vsyncpa [#allocation4], 1
    %s1353 = scalar_lea.sflag [#allocation4], 1
    %1354 = vsyncpa %s1353, 1
    %1355 = vsyncpa [#allocation7], 1
    %1356 = vsyncpa [#allocation10], 1
    %1357 = vsyncpa [#allocation5], 1
    %s1358 = scalar_lea.sflag [#allocation5], 1
    %1359 = vsyncpa %s1358, 1

// kernel: tpu_custom_call.1
$region0: #{tpu_custom_call.1}
  #allocation0 [shape = 'u32[]', space=smem, size = 0x4, offset = 0x4, fixed_abs, tag = 'smem constant byte address 0x4 - core index']
  #allocation1 [shape = 'u32[144,128]{1,0:T(1,128)}', space=vmem, size = 0x12000, scoped, tag = 'internal scratch']
  #allocation2 [shape = 'bf16[8,32]{1,0:T(8,128)(2,1)}', space=vmem, size = 0x800, scoped, tag = 'scratch operand']
  %s0 = inlined_call_operand.vmem [shape: f32[2,8,32], index: 0, kind: input, shape index: {}]
  %s1 = inlined_call_operand.vmem [shape: f32[1,32], index: 1, kind: input, shape index: {}]
  %s2 = inlined_call_operand.vmem [shape: f32[1,32], index: 2, kind: input, shape index: {}]
  %s3 = inlined_call_operand.vmem [shape: bf16[32,96], index: 3, kind: input, shape index: {}]
  %s4 = inlined_call_operand.vmem [shape: f32[1,96], index: 4, kind: input, shape index: {}]
  %s5 = inlined_call_operand.vmem [shape: bf16[32,32], index: 5, kind: input, shape index: {}]
  %s6 = inlined_call_operand.vmem [shape: f32[1,32], index: 6, kind: input, shape index: {}]
  %s7 = inlined_call_operand.hbm [shape: f32[1,32], index: 7, kind: input, shape index: {}]
  %s8 = inlined_call_operand.hbm [shape: f32[1,32], index: 8, kind: input, shape index: {}]
  %s9 = inlined_call_operand.hbm [shape: bf16[32,64], index: 9, kind: input, shape index: {}]
  %s10 = inlined_call_operand.hbm [shape: f32[1,64], index: 10, kind: input, shape index: {}]
  %s11 = inlined_call_operand.vmem [shape: bf16[64,32], index: 11, kind: input, shape index: {}]
  %s12 = inlined_call_operand.vmem [shape: f32[1,32], index: 12, kind: input, shape index: {}]
  %s13 = inlined_call_operand.hbm [shape: f32[2,8,32], index: 13, kind: output, shape index: {}]
  %s14 = sld [smem:[#allocation0]]
  $region101: #{tpu_custom_call.1} parent=0
    _
  %s16 = ssub.s32 1, %s14
  %s17 = scalar_select 0, %s16, %s14
  $region1: #{tpu_custom_call.1} parent=0
    #allocation3 [shape = 'u8[512]{0}', space=vmem, size = 0x400, scoped, tag = 'input window, operand 7, single buffered']
    #allocation4 [shape = 's32[2]{0}', space=sflag, size = 0x8, scoped, tag = 'scoped memory for tpu_custom_call.1']
    #allocation5 [shape = 's32[2]{0}', space=sflag, size = 0x8, scoped, tag = 'scoped memory for tpu_custom_call.1']
    #allocation6 [shape = 'u8[512]{0}', space=vmem, size = 0x400, scoped, tag = 'input window, operand 8, single buffered']
    #allocation7 [shape = 's32[1]{0}', space=sflag, size = 0x4, scoped, tag = 'scoped memory for tpu_custom_call.1']
    #allocation8 [shape = 'u8[8192]{0}', space=vmem, size = 0x2000, scoped, tag = 'input window, operand 9, single buffered']
    #allocation9 [shape = 'u8[512]{0}', space=vmem, size = 0x400, scoped, tag = 'input window, operand 10, single buffered']
    #allocation10 [shape = 's32[1]{0}', space=sflag, size = 0x4, scoped, tag = 'scoped memory for tpu_custom_call.1']
    #allocation11 [shape = 'u8[8192]{0}', space=vmem, size = 0x2000, scoped, tag = 'output window, operand 0']
    %18 = vsyncpa [#allocation4], 0
    %19 = vsyncpa [#allocation7], 0
    %20 = vsyncpa [#allocation10], 0
    %21 = vsyncpa [#allocation5], 0
    %s22 = scalar_lea.sflag [#allocation5], 1
    %23 = vsyncpa %s22, 0
    loop: start=0, step=1, limit=4
    $region2: #{tpu_custom_call.1} parent=1 // loop_pre_header
      _
    $region3: #{tpu_custom_call.1} parent=1 // loop_header
      %s25 = sphi 0, %s29
      %p26 = scmp.ge.s32.totalorder %s25, 4
      %s35 = sphi 0, %s37
      %s38 = sphi 0, %s35
      %s39 = sphi 0, %s38
      %s55 = sphi 0, %s39
      %s59 = sphi 0, %s59
      %s61 = sphi 0, %s59
      %s62 = sphi 0, %s61
      %s76 = sphi 0, %s62
      %s80 = sphi 0, %s80
      %s82 = sphi 0, %s80
      %s83 = sphi 0, %s82
      %s97 = sphi 0, %s83
      %s101 = sphi 0, %s101
      %s103 = sphi 0, %s101
      %s104 = sphi 0, %s103
      %s118 = sphi 0, %s104
      %s122 = sphi 0, %s122
      %s124 = sphi 0, %s122
      %s125 = sphi 0, %s124
      %s139 = sphi 0, %s125
      %s143 = sphi 0, %s143
      %s145 = sphi 0, %s143
      %s146 = sphi 0, %s145
      %s160 = sphi 0, %s146
      %s164 = sphi 0, %s164
      %s166 = sphi 0, %s164
      %s167 = sphi 0, %s166
      %s181 = sphi 0, %s167
      %s185 = sphi 0, %s185
      %s187 = sphi 0, %s185
      %s188 = sphi 0, %s187
      %s202 = sphi 0, %s188
      %s206 = sphi 0, %s206
      %s208 = sphi 0, %s206
      %s209 = sphi 0, %s208
      %s223 = sphi 0, %s209
      %s227 = sphi 0, %s227
      %s229 = sphi 0, %s227
      %s230 = sphi 0, %s229
      %s244 = sphi 0, %s230
      %s248 = sphi 0, %s248
      %s250 = sphi 0, %s248
      %s251 = sphi 0, %s250
      %s265 = sphi 0, %s251
      %s269 = sphi 0, %s269
      %s271 = sphi 0, %s269
      %s272 = sphi 0, %s271
      %s286 = sphi 0, %s272
      %s290 = sphi 0, %s290
      %s292 = sphi 0, %s290
      %s293 = sphi 0, %s292
      %s307 = sphi 0, %s293
      %s313 = sphi 0, %s315
      %s316 = sphi 0, %s313
      %s317 = sphi 0, %s316
      %s333 = sphi 0, %s317
    $region4: #{tpu_custom_call.1} parent=1 // loop_header_branch
      %28 = sbr.rel (%p26) target = $region8
    $region5: #{tpu_custom_call.1} parent=1 // loop_body
      %s30 = ssub.s32 %s25, 1
      %s31 = ssub.s32 %s25, 2
      %s32 = sadd.s32 %s25, 1
      %s33 = ssub.s32 %s25, %s32
      %p34 = scmp.eq.s32.totalorder %s33, 0
      %s36 = sadd.s32 %s35, 1
      %s37 = scalar_select %p34, %s35, %s36
      %p40 = pneg %p34
      %p41 = scmp.eq.s32.totalorder %s25, 1
      %p42 = por %p40, %p41
      %p43 = scmp.ne.s32.totalorder %s35, %s38
      %p44 = scmp.eq.s32.totalorder %s25, 0
      %p45 = por %p43, %p44
      %p46 = scmp.ne.s32.totalorder %s35, %s38
      %p47 = scmp.eq.s32.totalorder %s30, 1
      %p48 = por %p46, %p47
      %p49 = scmp.ne.s32.totalorder %s38, %s39
      %p50 = scmp.eq.s32.totalorder %s30, 0
      %p51 = por %p49, %p50
      %p52 = scmp.ne.s32.totalorder %s38, %s39
      %p53 = scmp.eq.s32.totalorder %s31, 1
      %p54 = por %p52, %p53
      %p56 = scmp.ne.s32.totalorder %s39, %s55
      %p57 = scmp.eq.s32.totalorder %s31, 0
      %p58 = por %p56, %p57
      %s60 = sadd.s32 %s59, 1
      %p63 = scmp.eq.s32.totalorder %s25, 1
      %p64 = scmp.ne.s32.totalorder %s59, %s61
      %p65 = scmp.eq.s32.totalorder %s25, 0
      %p66 = por %p64, %p65
      %p67 = scmp.ne.s32.totalorder %s59, %s61
      %p68 = scmp.eq.s32.totalorder %s30, 1
      %p69 = por %p67, %p68
      %p70 = scmp.ne.s32.totalorder %s61, %s62
      %p71 = scmp.eq.s32.totalorder %s30, 0
      %p72 = por %p70, %p71
      %p73 = scmp.ne.s32.totalorder %s61, %s62
      %p74 = scmp.eq.s32.totalorder %s31, 1
      %p75 = por %p73, %p74
      %p77 = scmp.ne.s32.totalorder %s62, %s76
      %p78 = scmp.eq.s32.totalorder %s31, 0
      %p79 = por %p77, %p78
      %s81 = sadd.s32 %s80, 1
      %p84 = scmp.eq.s32.totalorder %s25, 1
      %p85 = scmp.ne.s32.totalorder %s80, %s82
      %p86 = scmp.eq.s32.totalorder %s25, 0
      %p87 = por %p85, %p86
      %p88 = scmp.ne.s32.totalorder %s80, %s82
      %p89 = scmp.eq.s32.totalorder %s30, 1
      %p90 = por %p88, %p89
      %p91 = scmp.ne.s32.totalorder %s82, %s83
      %p92 = scmp.eq.s32.totalorder %s30, 0
      %p93 = por %p91, %p92
      %p94 = scmp.ne.s32.totalorder %s82, %s83
      %p95 = scmp.eq.s32.totalorder %s31, 1
      %p96 = por %p94, %p95
      %p98 = scmp.ne.s32.totalorder %s83, %s97
      %p99 = scmp.eq.s32.totalorder %s31, 0
      %p100 = por %p98, %p99
      %s102 = sadd.s32 %s101, 1
      %p105 = scmp.eq.s32.totalorder %s25, 1
      %p106 = scmp.ne.s32.totalorder %s101, %s103
      %p107 = scmp.eq.s32.totalorder %s25, 0
      %p108 = por %p106, %p107
      %p109 = scmp.ne.s32.totalorder %s101, %s103
      %p110 = scmp.eq.s32.totalorder %s30, 1
      %p111 = por %p109, %p110
      %p112 = scmp.ne.s32.totalorder %s103, %s104
      %p113 = scmp.eq.s32.totalorder %s30, 0
      %p114 = por %p112, %p113
      %p115 = scmp.ne.s32.totalorder %s103, %s104
      %p116 = scmp.eq.s32.totalorder %s31, 1
      %p117 = por %p115, %p116
      %p119 = scmp.ne.s32.totalorder %s104, %s118
      %p120 = scmp.eq.s32.totalorder %s31, 0
      %p121 = por %p119, %p120
      %s123 = sadd.s32 %s122, 1
      %p126 = scmp.eq.s32.totalorder %s25, 1
      %p127 = scmp.ne.s32.totalorder %s122, %s124
      %p128 = scmp.eq.s32.totalorder %s25, 0
      %p129 = por %p127, %p128
      %p130 = scmp.ne.s32.totalorder %s122, %s124
      %p131 = scmp.eq.s32.totalorder %s30, 1
      %p132 = por %p130, %p131
      %p133 = scmp.ne.s32.totalorder %s124, %s125
      %p134 = scmp.eq.s32.totalorder %s30, 0
      %p135 = por %p133, %p134
      %p136 = scmp.ne.s32.totalorder %s124, %s125
      %p137 = scmp.eq.s32.totalorder %s31, 1
      %p138 = por %p136, %p137
      %p140 = scmp.ne.s32.totalorder %s125, %s139
      %p141 = scmp.eq.s32.totalorder %s31, 0
      %p142 = por %p140, %p141
      %s144 = sadd.s32 %s143, 1
      %p147 = scmp.eq.s32.totalorder %s25, 1
      %p148 = scmp.ne.s32.totalorder %s143, %s145
      %p149 = scmp.eq.s32.totalorder %s25, 0
      %p150 = por %p148, %p149
      %p151 = scmp.ne.s32.totalorder %s143, %s145
      %p152 = scmp.eq.s32.totalorder %s30, 1
      %p153 = por %p151, %p152
      %p154 = scmp.ne.s32.totalorder %s145, %s146
      %p155 = scmp.eq.s32.totalorder %s30, 0
      %p156 = por %p154, %p155
      %p157 = scmp.ne.s32.totalorder %s145, %s146
      %p158 = scmp.eq.s32.totalorder %s31, 1
      %p159 = por %p157, %p158
      %p161 = scmp.ne.s32.totalorder %s146, %s160
      %p162 = scmp.eq.s32.totalorder %s31, 0
      %p163 = por %p161, %p162
      %s165 = sadd.s32 %s164, 1
      %p168 = scmp.eq.s32.totalorder %s25, 1
      %p169 = scmp.ne.s32.totalorder %s164, %s166
      %p170 = scmp.eq.s32.totalorder %s25, 0
      %p171 = por %p169, %p170
      %p172 = scmp.ne.s32.totalorder %s164, %s166
      %p173 = scmp.eq.s32.totalorder %s30, 1
      %p174 = por %p172, %p173
      %p175 = scmp.ne.s32.totalorder %s166, %s167
      %p176 = scmp.eq.s32.totalorder %s30, 0
      %p177 = por %p175, %p176
      %p178 = scmp.ne.s32.totalorder %s166, %s167
      %p179 = scmp.eq.s32.totalorder %s31, 1
      %p180 = por %p178, %p179
      %p182 = scmp.ne.s32.totalorder %s167, %s181
      %p183 = scmp.eq.s32.totalorder %s31, 0
      %p184 = por %p182, %p183
      %s186 = sadd.s32 %s185, 1
      %p189 = scmp.eq.s32.totalorder %s25, 1
      %p190 = scmp.ne.s32.totalorder %s185, %s187
      %p191 = scmp.eq.s32.totalorder %s25, 0
      %p192 = por %p190, %p191
      %p193 = scmp.ne.s32.totalorder %s185, %s187
      %p194 = scmp.eq.s32.totalorder %s30, 1
      %p195 = por %p193, %p194
      %p196 = scmp.ne.s32.totalorder %s187, %s188
      %p197 = scmp.eq.s32.totalorder %s30, 0
      %p198 = por %p196, %p197
      %p199 = scmp.ne.s32.totalorder %s187, %s188
      %p200 = scmp.eq.s32.totalorder %s31, 1
      %p201 = por %p199, %p200
      %p203 = scmp.ne.s32.totalorder %s188, %s202
      %p204 = scmp.eq.s32.totalorder %s31, 0
      %p205 = por %p203, %p204
      %s207 = sadd.s32 %s206, 1
      %p210 = scmp.eq.s32.totalorder %s25, 1
      %p211 = scmp.ne.s32.totalorder %s206, %s208
      %p212 = scmp.eq.s32.totalorder %s25, 0
      %p213 = por %p211, %p212
      %p214 = scmp.ne.s32.totalorder %s206, %s208
      %p215 = scmp.eq.s32.totalorder %s30, 1
      %p216 = por %p214, %p215
      %p217 = scmp.ne.s32.totalorder %s208, %s209
      %p218 = scmp.eq.s32.totalorder %s30, 0
      %p219 = por %p217, %p218
      %p220 = scmp.ne.s32.totalorder %s208, %s209
      %p221 = scmp.eq.s32.totalorder %s31, 1
      %p222 = por %p220, %p221
      %p224 = scmp.ne.s32.totalorder %s209, %s223
      %p225 = scmp.eq.s32.totalorder %s31, 0
      %p226 = por %p224, %p225
      %s228 = sadd.s32 %s227, 1
      %p231 = scmp.eq.s32.totalorder %s25, 1
      %p232 = scmp.ne.s32.totalorder %s227, %s229
      %p233 = scmp.eq.s32.totalorder %s25, 0
      %p234 = por %p232, %p233
      %p235 = scmp.ne.s32.totalorder %s227, %s229
      %p236 = scmp.eq.s32.totalorder %s30, 1
      %p237 = por %p235, %p236
      %p238 = scmp.ne.s32.totalorder %s229, %s230
      %p239 = scmp.eq.s32.totalorder %s30, 0
      %p240 = por %p238, %p239
      %p241 = scmp.ne.s32.totalorder %s229, %s230
      %p242 = scmp.eq.s32.totalorder %s31, 1
      %p243 = por %p241, %p242
      %p245 = scmp.ne.s32.totalorder %s230, %s244
      %p246 = scmp.eq.s32.totalorder %s31, 0
      %p247 = por %p245, %p246
      %s249 = sadd.s32 %s248, 1
      %p252 = scmp.eq.s32.totalorder %s25, 1
      %p253 = scmp.ne.s32.totalorder %s248, %s250
      %p254 = scmp.eq.s32.totalorder %s25, 0
      %p255 = por %p253, %p254
      %p256 = scmp.ne.s32.totalorder %s248, %s250
      %p257 = scmp.eq.s32.totalorder %s30, 1
      %p258 = por %p256, %p257
      %p259 = scmp.ne.s32.totalorder %s250, %s251
      %p260 = scmp.eq.s32.totalorder %s30, 0
      %p261 = por %p259, %p260
      %p262 = scmp.ne.s32.totalorder %s250, %s251
      %p263 = scmp.eq.s32.totalorder %s31, 1
      %p264 = por %p262, %p263
      %p266 = scmp.ne.s32.totalorder %s251, %s265
      %p267 = scmp.eq.s32.totalorder %s31, 0
      %p268 = por %p266, %p267
      %s270 = sadd.s32 %s269, 1
      %p273 = scmp.eq.s32.totalorder %s25, 1
      %p274 = scmp.ne.s32.totalorder %s269, %s271
      %p275 = scmp.eq.s32.totalorder %s25, 0
      %p276 = por %p274, %p275
      %p277 = scmp.ne.s32.totalorder %s269, %s271
      %p278 = scmp.eq.s32.totalorder %s30, 1
      %p279 = por %p277, %p278
      %p280 = scmp.ne.s32.totalorder %s271, %s272
      %p281 = scmp.eq.s32.totalorder %s30, 0
      %p282 = por %p280, %p281
      %p283 = scmp.ne.s32.totalorder %s271, %s272
      %p284 = scmp.eq.s32.totalorder %s31, 1
      %p285 = por %p283, %p284
      %p287 = scmp.ne.s32.totalorder %s272, %s286
      %p288 = scmp.eq.s32.totalorder %s31, 0
      %p289 = por %p287, %p288
      %s291 = sadd.s32 %s290, 1
      %p294 = scmp.eq.s32.totalorder %s25, 1
      %p295 = scmp.ne.s32.totalorder %s290, %s292
      %p296 = scmp.eq.s32.totalorder %s25, 0
      %p297 = por %p295, %p296
      %p298 = scmp.ne.s32.totalorder %s290, %s292
      %p299 = scmp.eq.s32.totalorder %s30, 1
      %p300 = por %p298, %p299
      %p301 = scmp.ne.s32.totalorder %s292, %s293
      %p302 = scmp.eq.s32.totalorder %s30, 0
      %p303 = por %p301, %p302
      %p304 = scmp.ne.s32.totalorder %s292, %s293
      %p305 = scmp.eq.s32.totalorder %s31, 1
      %p306 = por %p304, %p305
      %p308 = scmp.ne.s32.totalorder %s293, %s307
      %p309 = scmp.eq.s32.totalorder %s31, 0
      %p310 = por %p308, %p309
      %s311 = ssub.s32 %s25, %s32
      %p312 = scmp.eq.s32.totalorder %s311, 0
      %s314 = sadd.s32 %s313, 1
      %s315 = scalar_select %p312, %s313, %s314
      %p318 = pneg %p312
      %p319 = scmp.eq.s32.totalorder %s25, 1
      %p320 = por %p318, %p319
      %p321 = scmp.ne.s32.totalorder %s313, %s316
      %p322 = scmp.eq.s32.totalorder %s25, 0
      %p323 = por %p321, %p322
      %p324 = scmp.ne.s32.totalorder %s313, %s316
      %p325 = scmp.eq.s32.totalorder %s30, 1
      %p326 = por %p324, %p325
      %p327 = scmp.ne.s32.totalorder %s316, %s317
      %p328 = scmp.eq.s32.totalorder %s30, 0
      %p329 = por %p327, %p328
      %p330 = scmp.ne.s32.totalorder %s316, %s317
      %p331 = scmp.eq.s32.totalorder %s31, 1
      %p332 = por %p330, %p331
      %p334 = scmp.ne.s32.totalorder %s317, %s333
      %p335 = scmp.eq.s32.totalorder %s31, 0
      %p336 = por %p334, %p335
      %p337 = scmp.le.s32.totalorder 1, %s25
      %p338 = scmp.lt.s32.totalorder %s25, 3
      %p339 = pnand %p337, %p338
      %p340 = pneg %p339
      // Predicated region
      $region9: #{tpu_custom_call.1} parent=5 // pred_check
        _
      $region10: #{tpu_custom_call.1} parent=5 // pred_check_branch
        %342 = sbr.rel (%p339) target = $region12
      $region11: #{tpu_custom_call.1} parent=5 // pred_region
        %s343 = ssub.s32 %s25, 1
        // Predicated region
        $region13: #{tpu_custom_call.1} parent=11 // pred_check
          %p344 = pneg %p72
        $region14: #{tpu_custom_call.1} parent=11 // pred_check_branch
          %346 = sbr.rel (%p344) target = $region16
        $region15: #{tpu_custom_call.1} parent=11 // pred_region
          _
        $region16: #{tpu_custom_call.1} parent=11 // pred_fallthru
          _
        // Predicated region
        $region17: #{tpu_custom_call.1} parent=11 // pred_check
          %p347 = pneg %p93
        $region18: #{tpu_custom_call.1} parent=11 // pred_check_branch
          %349 = sbr.rel (%p347) target = $region20
        $region19: #{tpu_custom_call.1} parent=11 // pred_region
          _
        $region20: #{tpu_custom_call.1} parent=11 // pred_fallthru
          _
        // Predicated region
        $region21: #{tpu_custom_call.1} parent=11 // pred_check
          %p350 = pneg %p114
        $region22: #{tpu_custom_call.1} parent=11 // pred_check_branch
          %352 = sbr.rel (%p350) target = $region24
        $region23: #{tpu_custom_call.1} parent=11 // pred_region
          _
        $region24: #{tpu_custom_call.1} parent=11 // pred_fallthru
          _
        // Predicated region
        $region25: #{tpu_custom_call.1} parent=11 // pred_check
          %p353 = pneg %p135
        $region26: #{tpu_custom_call.1} parent=11 // pred_check_branch
          %355 = sbr.rel (%p353) target = $region28
        $region27: #{tpu_custom_call.1} parent=11 // pred_region
          _
        $region28: #{tpu_custom_call.1} parent=11 // pred_fallthru
          _
        // Predicated region
        $region29: #{tpu_custom_call.1} parent=11 // pred_check
          %p356 = pneg %p156
        $region30: #{tpu_custom_call.1} parent=11 // pred_check_branch
          %358 = sbr.rel (%p356) target = $region32
        $region31: #{tpu_custom_call.1} parent=11 // pred_region
          _
        $region32: #{tpu_custom_call.1} parent=11 // pred_fallthru
          _
        // Predicated region
        $region33: #{tpu_custom_call.1} parent=11 // pred_check
          %p359 = pneg %p177
        $region34: #{tpu_custom_call.1} parent=11 // pred_check_branch
          %361 = sbr.rel (%p359) target = $region36
        $region35: #{tpu_custom_call.1} parent=11 // pred_region
          _
        $region36: #{tpu_custom_call.1} parent=11 // pred_fallthru
          _
        // Predicated region
        $region37: #{tpu_custom_call.1} parent=11 // pred_check
          %p362 = pneg %p198
        $region38: #{tpu_custom_call.1} parent=11 // pred_check_branch
          %364 = sbr.rel (%p362) target = $region40
        $region39: #{tpu_custom_call.1} parent=11 // pred_region
          %s366 = ssub.s32 16, 16
          %367 = vsyncadd [#allocation4], %s366
          %s369 = sshll.u32 [#allocation3], 4
          %s370 = int_to_ptr.vmem [resolvable:$true] %s369
          %372 = dma.hbm_to_vmem [thread:$0]  %s7, 16, %s370, [#allocation4]
        $region40: #{tpu_custom_call.1} parent=11 // pred_fallthru
          _
        // Predicated region
        $region41: #{tpu_custom_call.1} parent=11 // pred_check
          %p373 = pneg %p219
        $region42: #{tpu_custom_call.1} parent=11 // pred_check_branch
          %375 = sbr.rel (%p373) target = $region44
        $region43: #{tpu_custom_call.1} parent=11 // pred_region
          %s377 = ssub.s32 16, 16
          %378 = vsyncadd [#allocation7], %s377
          %s380 = sshll.u32 [#allocation6], 4
          %s381 = int_to_ptr.vmem [resolvable:$true] %s380
          %383 = dma.hbm_to_vmem [thread:$0]  %s8, 16, %s381, [#allocation7]
        $region44: #{tpu_custom_call.1} parent=11 // pred_fallthru
          _
        // Predicated region
        $region45: #{tpu_custom_call.1} parent=11 // pred_check
          %p384 = pneg %p240
        $region46: #{tpu_custom_call.1} parent=11 // pred_check_branch
          %386 = sbr.rel (%p384) target = $region48
        $region47: #{tpu_custom_call.1} parent=11 // pred_region
          %s388 = ssub.s32 256, 256
          %389 = vsyncadd [#allocation7], %s388
          %s390 = sshll.u32 [#allocation8], 4
          %s391 = int_to_ptr.vmem [resolvable:$true] %s390
          %396 = dma.hbm_to_vmem [thread:$0]  %s9, 256, %s391, [#allocation7], 64, 64, 4
        $region48: #{tpu_custom_call.1} parent=11 // pred_fallthru
          _
        // Predicated region
        $region49: #{tpu_custom_call.1} parent=11 // pred_check
          %p397 = pneg %p261
        $region50: #{tpu_custom_call.1} parent=11 // pred_check_branch
          %399 = sbr.rel (%p397) target = $region52
        $region51: #{tpu_custom_call.1} parent=11 // pred_region
          %s401 = ssub.s32 16, 16
          %402 = vsyncadd [#allocation10], %s401
          %s404 = sshll.u32 [#allocation9], 4
          %s405 = int_to_ptr.vmem [resolvable:$true] %s404
          %407 = dma.hbm_to_vmem [thread:$0]  %s10, 16, %s405, [#allocation10]
        $region52: #{tpu_custom_call.1} parent=11 // pred_fallthru
          _
        // Predicated region
        $region53: #{tpu_custom_call.1} parent=11 // pred_check
          %p408 = pneg %p282
        $region54: #{tpu_custom_call.1} parent=11 // pred_check_branch
          %410 = sbr.rel (%p408) target = $region56
        $region55: #{tpu_custom_call.1} parent=11 // pred_region
          _
        $region56: #{tpu_custom_call.1} parent=11 // pred_fallthru
          _
        // Predicated region
        $region57: #{tpu_custom_call.1} parent=11 // pred_check
          %p411 = pneg %p303
        $region58: #{tpu_custom_call.1} parent=11 // pred_check_branch
          %413 = sbr.rel (%p411) target = $region60
        $region59: #{tpu_custom_call.1} parent=11 // pred_region
          _
        $region60: #{tpu_custom_call.1} parent=11 // pred_fallthru
          _
      $region12: #{tpu_custom_call.1} parent=5 // pred_fallthru
        _
      %p414 = scmp.lt.s32.totalorder %s25, 2
      // Predicated region
      $region61: #{tpu_custom_call.1} parent=5 // pred_check
        %p415 = pneg %p414
      $region62: #{tpu_custom_call.1} parent=5 // pred_check_branch
        %417 = sbr.rel (%p415) target = $region64
      $region63: #{tpu_custom_call.1} parent=5 // pred_region
        // Predicated region
        $region65: #{tpu_custom_call.1} parent=63 // pred_check
          %p418 = pneg %p45
        $region66: #{tpu_custom_call.1} parent=63 // pred_check_branch
          %420 = sbr.rel (%p418) target = $region68
        $region67: #{tpu_custom_call.1} parent=63 // pred_region
          %p421 = scmp.lt.s32.totalorder %s25, 1
          %s422 = scalar_select %p421, %s25, 1
          %s423 = smul.addr %s422, 8
          %s424 = scalar_lea.vmem %s0, %s423
        $region68: #{tpu_custom_call.1} parent=63 // pred_fallthru
          _
      $region64: #{tpu_custom_call.1} parent=5 // pred_fallthru
        _
      %p425 = scmp.le.s32.totalorder 1, %s25
      %p426 = scmp.lt.s32.totalorder %s25, 3
      %p427 = pnand %p425, %p426
      %p428 = pneg %p427
      // Predicated region
      $region69: #{tpu_custom_call.1} parent=5 // pred_check
        _
      $region70: #{tpu_custom_call.1} parent=5 // pred_check_branch
        %430 = sbr.rel (%p427) target = $region72
      $region71: #{tpu_custom_call.1} parent=5 // pred_region
        %s431 = ssub.s32 %s25, 1
        // Predicated region
        $region73: #{tpu_custom_call.1} parent=71 // pred_check
          %p432 = pneg %p198
        $region74: #{tpu_custom_call.1} parent=71 // pred_check_branch
          %434 = sbr.rel (%p432) target = $region76
        $region75: #{tpu_custom_call.1} parent=71 // pred_region
          %435 = dma.done [#allocation4], 16
        $region76: #{tpu_custom_call.1} parent=71 // pred_fallthru
          _
        // Predicated region
        $region77: #{tpu_custom_call.1} parent=71 // pred_check
          %p436 = pneg %p219
        $region78: #{tpu_custom_call.1} parent=71 // pred_check_branch
          %438 = sbr.rel (%p436) target = $region80
        $region79: #{tpu_custom_call.1} parent=71 // pred_region
          %439 = dma.done [#allocation7], 16
        $region80: #{tpu_custom_call.1} parent=71 // pred_fallthru
          _
        // Predicated region
        $region81: #{tpu_custom_call.1} parent=71 // pred_check
          %p440 = pneg %p240
        $region82: #{tpu_custom_call.1} parent=71 // pred_check_branch
          %442 = sbr.rel (%p440) target = $region84
        $region83: #{tpu_custom_call.1} parent=71 // pred_region
          %443 = dma.done [#allocation7], 256
        $region84: #{tpu_custom_call.1} parent=71 // pred_fallthru
          _
        // Predicated region
        $region85: #{tpu_custom_call.1} parent=71 // pred_check
          %p444 = pneg %p261
        $region86: #{tpu_custom_call.1} parent=71 // pred_check_branch
          %446 = sbr.rel (%p444) target = $region88
        $region87: #{tpu_custom_call.1} parent=71 // pred_region
          %447 = dma.done [#allocation10], 16
        $region88: #{tpu_custom_call.1} parent=71 // pred_fallthru
          _
        %p448 = scmp.lt.s32.totalorder %s30, 1
        %s449 = scalar_select %p448, %s30, 1
        %s450 = smul.addr %s449, 8
        %s451 = scalar_lea.vmem %s0, %s450
        %p452 = pneg %p51
        %p453 = pneg %p48
        %p454 = pneg %p72
        %p455 = pneg %p69
        %p456 = pneg %p93
        %p457 = pneg %p90
        %p458 = pneg %p114
        %p459 = pneg %p111
        %p460 = pneg %p135
        %p461 = pneg %p132
        %p462 = pneg %p156
        %p463 = pneg %p153
        %p464 = pneg %p177
        %p465 = pneg %p174
        %p466 = pneg %p198
        %p467 = pneg %p195
        %p468 = pneg %p219
        %p469 = pneg %p216
        %p470 = pneg %p240
        %p471 = pneg %p237
        %p472 = pneg %p261
        %p473 = pneg %p258
        %p474 = pneg %p282
        %p475 = pneg %p279
        %p476 = pneg %p303
        %p477 = pneg %p300
        %p478 = pneg %p329
        %p479 = pneg %p326
        %s480 = sand.u32 %s316, 1
        %s481 = scalar_lea.sflag [#allocation5], %s480
        %s482 = sand.u32 %s316, 1
        %s483 = smul.addr %s482, 8
        %s484 = scalar_lea.vmem [#allocation11], %s483
        %p485 = scmp.lt.s32.totalorder %s30, 1
        %s486 = scalar_select %p485, %s30, 1
        %s487 = smul.addr %s486, 8
        %s488 = scalar_lea.vmem %s0, %s487
        %v490 = vld [vmem:[%s488] sm:$0xff]
        %v491 = vld [vmem:[%s1] sm:$0x1]
        %v492 = vld [vmem:[%s2] sm:$0x1]
        %vm493 = vcmask 261120
        %v494 = vsel %vm493, %v490, 0.0
        %495 = vadd.xlane.f32.xlu0 %v494
        %v496 = vpop.xlane.xlu0 %495
        %v497 = vrcp.pop 32.0
        %v498 = vmul.f32 %v496, %v497
        %v499 = vsub.f32 %v490, %v498
        %v500 = vmul.f32 %v499, %v499
        %v501 = vsel %vm493, %v500, 0.0
        %502 = vadd.xlane.f32.xlu0 %v501
        %v503 = vpop.xlane.xlu0 %502
        %v504 = vmul.f32 %v503, %v497
        %v505 = vadd.f32 %v504, 1e-05
        %v506 = vrsqrt.pop %v505
        %v507 = vmul.f32 %v499, %v506
        %v509 = vlaneseq
        %v510 = vshrl.u32 %v509, 7
        %v511 = vsub.s32 0, %v510
        %v512 = vrot.slane %v491, %v511
        %v514 = vmul.f32 %v507, %v512
        %v516 = vlaneseq
        %v517 = vshrl.u32 %v516, 7
        %v518 = vsub.s32 0, %v517
        %v519 = vrot.slane %v492, %v518
        %v521 = vadd.f32 %v514, %v519
        %v522 = vpack.c.bf16 %v521, %v521
        %v523 = vld [vmem:[%s3] sm:$0xf]
        %v524 = vld [vmem:[%s3 + $0x4] sm:$0xf]
        %v525 = vld [vmem:[%s3 + $0x8] sm:$0xf]
        %v526 = vld [vmem:[%s3 + $0xc] sm:$0xf]
        %v527 = vld [vmem:[%s4] sm:$0x1]
        %v529 = vlaneseq
        %v530 = vshrl.u32 %v529, 7
        %v531 = vsub.s32 0, %v530
        %v532 = vrot.slane %v527, %v531
        %v538 = vunpack.c.l.b16 %v523
        %v539 = vunpack.c.l.b16 %v524
        %v540 = vunpack.c.l.b16 %v525
        %v541 = vunpack.c.l.b16 %v526
        %v542 = vpack.c.b16 %v539, %v538
        %v543 = vpack.c.b16 %v541, %v540
        %v547 = vsel %vm493, %v522, 0
        %549 = vmatprep.subr.bf16.mxu0 0
        %550 = vmatpush1.bf16.msra.mxu0 0
        %551 = vmatprep.subr.bf16.mxu0 0
        %552 = vmatpush1.bf16.msra.mxu0 0
        %553 = vmatprep.subr.bf16.mxu0 0
        %554 = vmatpush1.bf16.msra.mxu0 0
        %555 = vmatprep.subr.bf16.mxu0 0
        %556 = vmatpush1.bf16.msra.mxu0 0
        %557 = vmatprep.subr.bf16.mxu0 0
        %558 = vmatpush1.bf16.msra.mxu0 0
        %559 = vmatprep.subr.bf16.mxu0 0
        %560 = vmatpush1.bf16.msra.mxu0 0
        %561 = vmatprep.subr.bf16.mxu0 0
        %562 = vmatpush1.bf16.msra.mxu0 %v543
        %563 = vmatprep.subr.bf16.mxu0 0
        %564 = vmatpush1.bf16.msra.mxu0 %v542
        %565 = vmatprep.subr.bf16.mxu0 0
        %566 = vmatpush2.bf16.msra.mxu0 0
        %567 = vmatprep.subr.bf16.mxu0 0
        %568 = vmatpush2.bf16.msra.mxu0 0
        %569 = vmatprep.subr.bf16.mxu0 0
        %570 = vmatpush2.bf16.msra.mxu0 0
        %571 = vmatprep.subr.bf16.mxu0 0
        %572 = vmatpush2.bf16.msra.mxu0 0
        %573 = vmatprep.subr.bf16.mxu0 0
        %574 = vmatpush2.bf16.msra.mxu0 0
        %575 = vmatprep.subr.bf16.mxu0 0
        %576 = vmatpush2.bf16.msra.mxu0 0
        %577 = vmatprep.subr.bf16.mxu0 0
        %578 = vmatpush2.bf16.msra.mxu0 0
        %579 = vmatprep.subr.bf16.mxu0 0
        %580 = vmatpush2.bf16.msra.mxu0 0
        %581 = vmatprep.mubr.bf16.mxu0 0
        %582 = vmatmul.mubr.bf16.gmra.mxu0 %v547
        %v583 = vpop.f32.mrf.mxu0
        %v584 = vadd.f32 %v532, %v583
        %v585 = vpop.f32.mrf.mxu0
        %v586 = vpop.f32.mrf.mxu0
        %v587 = vpop.f32.mrf.mxu0
        %588 = vdwg.mxu0
        %v589 = vpack.c.bf16 %v584, %v584
        %591 = vrot.lane.b32.xlu0 %v589, 96
        %v592 = vpop.permute.xlu0 %591
        %vm593 = vcmask 64512
        %v595 = vsel %vm593, %v589, 0
        %v598 = vsel %vm593, %v592, 0
        %600 = vmatprep.subr.bf16.mxu0 0
        %601 = vmatpush1.bf16.xpose.msra.mxu0 0
        %602 = vmatprep.subr.bf16.mxu0 0
        %603 = vmatpush1.bf16.xpose.msra.mxu0 0
        %604 = vmatprep.subr.bf16.mxu0 0
        %605 = vmatpush1.bf16.xpose.msra.mxu0 0
        %606 = vmatprep.subr.bf16.mxu0 0
        %607 = vmatpush1.bf16.xpose.msra.mxu0 0
        %608 = vmatprep.subr.bf16.mxu0 0
        %609 = vmatpush1.bf16.xpose.msra.mxu0 0
        %610 = vmatprep.subr.bf16.mxu0 0
        %611 = vmatpush1.bf16.xpose.msra.mxu0 0
        %612 = vmatprep.subr.bf16.mxu0 0
        %613 = vmatpush1.bf16.xpose.msra.mxu0 0
        %614 = vmatprep.subr.bf16.mxu0 0
        %615 = vmatpush1.bf16.xpose.msra.mxu0 %v598
        %616 = vmatprep.subr.bf16.mxu0 0
        %617 = vmatpush2.bf16.xpose.msra.mxu0 0
        %618 = vmatprep.subr.bf16.mxu0 0
        %619 = vmatpush2.bf16.xpose.msra.mxu0 0
        %620 = vmatprep.subr.bf16.mxu0 0
        %621 = vmatpush2.bf16.xpose.msra.mxu0 0
        %622 = vmatprep.subr.bf16.mxu0 0
        %623 = vmatpush2.bf16.xpose.msra.mxu0 0
        %624 = vmatprep.subr.bf16.mxu0 0
        %625 = vmatpush2.bf16.xpose.msra.mxu0 0
        %626 = vmatprep.subr.bf16.mxu0 0
        %627 = vmatpush2.bf16.xpose.msra.mxu0 0
        %628 = vmatprep.subr.bf16.mxu0 0
        %629 = vmatpush2.bf16.xpose.msra.mxu0 0
        %630 = vmatprep.subr.bf16.mxu0 0
        %631 = vmatpush2.bf16.xpose.msra.mxu0 0
        %632 = vmatprep.mubr.bf16.mxu0 0
        %633 = vmatmul.mubr.bf16.gmra.mxu0 %v595
        %v634 = vpop.f32.mrf.mxu0
        %v635 = vadd.f32 0.0, %v634
        %v636 = vpop.f32.mrf.mxu0
        %v637 = vpop.f32.mrf.mxu0
        %v638 = vpop.f32.mrf.mxu0
        %639 = vdwg.mxu0
        %v640 = vsel %vm593, %v635, -inf
        %641 = vmax.xlane.f32.xlu0 %v640
        %v642 = vpop.xlane.xlu0 %641
        %v643 = vsub.f32 %v635, %v642
        %v644 = vmul.f32 %v643, 1.442695
        %v645 = vpow.pop %v644
        %v646 = vsel %vm593, %v645, 0.0
        %647 = vadd.xlane.f32.xlu0 %v646
        %v648 = vpop.xlane.xlu0 %647
        %v649 = vpack.c.bf16 %v645, %v645
        %650 = vrot.lane.b32.xlu0 %v589, 64
        %v651 = vpop.permute.xlu0 %650
        %v653 = vsel %vm593, %v649, 0
        %vm655 = vcmask 1043456
        %v657 = vsel %vm655, %v651, 0
        %659 = vmatprep.subr.bf16.mxu0 0
        %660 = vmatpush1.bf16.msra.mxu0 0
        %661 = vmatprep.subr.bf16.mxu0 0
        %662 = vmatpush1.bf16.msra.mxu0 0
        %663 = vmatprep.subr.bf16.mxu0 0
        %664 = vmatpush1.bf16.msra.mxu0 0
        %665 = vmatprep.subr.bf16.mxu0 0
        %666 = vmatpush1.bf16.msra.mxu0 0
        %667 = vmatprep.subr.bf16.mxu0 0
        %668 = vmatpush1.bf16.msra.mxu0 0
        %669 = vmatprep.subr.bf16.mxu0 0
        %670 = vmatpush1.bf16.msra.mxu0 0
        %671 = vmatprep.subr.bf16.mxu0 0
        %672 = vmatpush1.bf16.msra.mxu0 0
        %673 = vmatprep.subr.bf16.mxu0 0
        %674 = vmatpush1.bf16.msra.mxu0 %v657
        %675 = vmatprep.subr.bf16.mxu0 0
        %676 = vmatpush2.bf16.msra.mxu0 0
        %677 = vmatprep.subr.bf16.mxu0 0
        %678 = vmatpush2.bf16.msra.mxu0 0
        %679 = vmatprep.subr.bf16.mxu0 0
        %680 = vmatpush2.bf16.msra.mxu0 0
        %681 = vmatprep.subr.bf16.mxu0 0
        %682 = vmatpush2.bf16.msra.mxu0 0
        %683 = vmatprep.subr.bf16.mxu0 0
        %684 = vmatpush2.bf16.msra.mxu0 0
        %685 = vmatprep.subr.bf16.mxu0 0
        %686 = vmatpush2.bf16.msra.mxu0 0
        %687 = vmatprep.subr.bf16.mxu0 0
        %688 = vmatpush2.bf16.msra.mxu0 0
        %689 = vmatprep.subr.bf16.mxu0 0
        %690 = vmatpush2.bf16.msra.mxu0 0
        %691 = vmatprep.mubr.bf16.mxu0 0
        %692 = vmatmul.mubr.bf16.gmra.mxu0 %v653
        %v693 = vpop.f32.mrf.mxu0
        %v694 = vadd.f32 0.0, %v693
        %v695 = vpop.f32.mrf.mxu0
        %v696 = vpop.f32.mrf.mxu0
        %v697 = vpop.f32.mrf.mxu0
        %698 = vdwg.mxu0
        %v699 = vrcp.pop %v648
        %v700 = vmul.f32 %v694, %v699
        %v701 = vpack.c.bf16 %v700, %v700
        %vm702 = vcmask 60416
        %703 = vst.msk [vmem:[#allocation2] sm:$0xf] %vm702, %v701
        %704 = vrot.lane.b32.xlu0 %v589, 120
        %v705 = vpop.permute.xlu0 %704
        %706 = vrot.lane.b32.xlu0 %v589, 88
        %v707 = vpop.permute.xlu0 %706
        %v709 = vsel %vm593, %v705, 0
        %v712 = vsel %vm593, %v707, 0
        %714 = vmatprep.subr.bf16.mxu0 0
        %715 = vmatpush1.bf16.xpose.msra.mxu0 0
        %716 = vmatprep.subr.bf16.mxu0 0
        %717 = vmatpush1.bf16.xpose.msra.mxu0 0
        %718 = vmatprep.subr.bf16.mxu0 0
        %719 = vmatpush1.bf16.xpose.msra.mxu0 0
        %720 = vmatprep.subr.bf16.mxu0 0
        %721 = vmatpush1.bf16.xpose.msra.mxu0 0
        %722 = vmatprep.subr.bf16.mxu0 0
        %723 = vmatpush1.bf16.xpose.msra.mxu0 0
        %724 = vmatprep.subr.bf16.mxu0 0
        %725 = vmatpush1.bf16.xpose.msra.mxu0 0
        %726 = vmatprep.subr.bf16.mxu0 0
        %727 = vmatpush1.bf16.xpose.msra.mxu0 0
        %728 = vmatprep.subr.bf16.mxu0 0
        %729 = vmatpush1.bf16.xpose.msra.mxu0 %v712
        %730 = vmatprep.subr.bf16.mxu0 0
        %731 = vmatpush2.bf16.xpose.msra.mxu0 0
        %732 = vmatprep.subr.bf16.mxu0 0
        %733 = vmatpush2.bf16.xpose.msra.mxu0 0
        %734 = vmatprep.subr.bf16.mxu0 0
        %735 = vmatpush2.bf16.xpose.msra.mxu0 0
        %736 = vmatprep.subr.bf16.mxu0 0
        %737 = vmatpush2.bf16.xpose.msra.mxu0 0
        %738 = vmatprep.subr.bf16.mxu0 0
        %739 = vmatpush2.bf16.xpose.msra.mxu0 0
        %740 = vmatprep.subr.bf16.mxu0 0
        %741 = vmatpush2.bf16.xpose.msra.mxu0 0
        %742 = vmatprep.subr.bf16.mxu0 0
        %743 = vmatpush2.bf16.xpose.msra.mxu0 0
        %744 = vmatprep.subr.bf16.mxu0 0
        %745 = vmatpush2.bf16.xpose.msra.mxu0 0
        %746 = vmatprep.mubr.bf16.mxu0 0
        %747 = vmatmul.mubr.bf16.gmra.mxu0 %v709
        %v748 = vpop.f32.mrf.mxu0
        %v749 = vadd.f32 0.0, %v748
        %v750 = vpop.f32.mrf.mxu0
        %v751 = vpop.f32.mrf.mxu0
        %v752 = vpop.f32.mrf.mxu0
        %753 = vdwg.mxu0
        %v754 = vsel %vm593, %v749, -inf
        %755 = vmax.xlane.f32.xlu0 %v754
        %v756 = vpop.xlane.xlu0 %755
        %v757 = vsub.f32 %v749, %v756
        %v758 = vmul.f32 %v757, 1.442695
        %v759 = vpow.pop %v758
        %v760 = vsel %vm593, %v759, 0.0
        %761 = vadd.xlane.f32.xlu0 %v760
        %v762 = vpop.xlane.xlu0 %761
        %v763 = vpack.c.bf16 %v759, %v759
        %764 = vrot.lane.b32.xlu0 %v589, 56
        %v765 = vpop.permute.xlu0 %764
        %v767 = vsel %vm593, %v763, 0
        %v770 = vsel %vm655, %v765, 0
        %772 = vmatprep.subr.bf16.mxu0 0
        %773 = vmatpush1.bf16.msra.mxu0 0
        %774 = vmatprep.subr.bf16.mxu0 0
        %775 = vmatpush1.bf16.msra.mxu0 0
        %776 = vmatprep.subr.bf16.mxu0 0
        %777 = vmatpush1.bf16.msra.mxu0 0
        %778 = vmatprep.subr.bf16.mxu0 0
        %779 = vmatpush1.bf16.msra.mxu0 0
        %780 = vmatprep.subr.bf16.mxu0 0
        %781 = vmatpush1.bf16.msra.mxu0 0
        %782 = vmatprep.subr.bf16.mxu0 0
        %783 = vmatpush1.bf16.msra.mxu0 0
        %784 = vmatprep.subr.bf16.mxu0 0
        %785 = vmatpush1.bf16.msra.mxu0 0
        %786 = vmatprep.subr.bf16.mxu0 0
        %787 = vmatpush1.bf16.msra.mxu0 %v770
        %788 = vmatprep.subr.bf16.mxu0 0
        %789 = vmatpush2.bf16.msra.mxu0 0
        %790 = vmatprep.subr.bf16.mxu0 0
        %791 = vmatpush2.bf16.msra.mxu0 0
        %792 = vmatprep.subr.bf16.mxu0 0
        %793 = vmatpush2.bf16.msra.mxu0 0
        %794 = vmatprep.subr.bf16.mxu0 0
        %795 = vmatpush2.bf16.msra.mxu0 0
        %796 = vmatprep.subr.bf16.mxu0 0
        %797 = vmatpush2.bf16.msra.mxu0 0
        %798 = vmatprep.subr.bf16.mxu0 0
        %799 = vmatpush2.bf16.msra.mxu0 0
        %800 = vmatprep.subr.bf16.mxu0 0
        %801 = vmatpush2.bf16.msra.mxu0 0
        %802 = vmatprep.subr.bf16.mxu0 0
        %803 = vmatpush2.bf16.msra.mxu0 0
        %804 = vmatprep.mubr.bf16.mxu0 0
        %805 = vmatmul.mubr.bf16.gmra.mxu0 %v767
        %v806 = vpop.f32.mrf.mxu0
        %v807 = vadd.f32 0.0, %v806
        %v808 = vpop.f32.mrf.mxu0
        %v809 = vpop.f32.mrf.mxu0
        %v810 = vpop.f32.mrf.mxu0
        %811 = vdwg.mxu0
        %v812 = vrcp.pop %v762
        %v813 = vmul.f32 %v807, %v812
        %v814 = vpack.c.bf16 %v813, %v813
        %v816 = vunpack.c.l.b16 %v814
        %v817 = vpack.c.b16 %v816, %v816
        %818 = vrot.lane.b32.xlu0 %v817, 8
        %v819 = vpop.permute.xlu0 %818
        %vm821 = vcmask 126016
        %822 = vst.msk [vmem:[#allocation2] sm:$0xf] %vm821, %v819
        %823 = vrot.lane.b32.xlu0 %v589, 112
        %v824 = vpop.permute.xlu0 %823
        %825 = vrot.lane.b32.xlu0 %v589, 80
        %v826 = vpop.permute.xlu0 %825
        %v828 = vsel %vm593, %v824, 0
        %v831 = vsel %vm593, %v826, 0
        %833 = vmatprep.subr.bf16.mxu0 0
        %834 = vmatpush1.bf16.xpose.msra.mxu0 0
        %835 = vmatprep.subr.bf16.mxu0 0
        %836 = vmatpush1.bf16.xpose.msra.mxu0 0
        %837 = vmatprep.subr.bf16.mxu0 0
        %838 = vmatpush1.bf16.xpose.msra.mxu0 0
        %839 = vmatprep.subr.bf16.mxu0 0
        %840 = vmatpush1.bf16.xpose.msra.mxu0 0
        %841 = vmatprep.subr.bf16.mxu0 0
        %842 = vmatpush1.bf16.xpose.msra.mxu0 0
        %843 = vmatprep.subr.bf16.mxu0 0
        %844 = vmatpush1.bf16.xpose.msra.mxu0 0
        %845 = vmatprep.subr.bf16.mxu0 0
        %846 = vmatpush1.bf16.xpose.msra.mxu0 0
        %847 = vmatprep.subr.bf16.mxu0 0
        %848 = vmatpush1.bf16.xpose.msra.mxu0 %v831
        %849 = vmatprep.subr.bf16.mxu0 0
        %850 = vmatpush2.bf16.xpose.msra.mxu0 0
        %851 = vmatprep.subr.bf16.mxu0 0
        %852 = vmatpush2.bf16.xpose.msra.mxu0 0
        %853 = vmatprep.subr.bf16.mxu0 0
        %854 = vmatpush2.bf16.xpose.msra.mxu0 0
        %855 = vmatprep.subr.bf16.mxu0 0
        %856 = vmatpush2.bf16.xpose.msra.mxu0 0
        %857 = vmatprep.subr.bf16.mxu0 0
        %858 = vmatpush2.bf16.xpose.msra.mxu0 0
        %859 = vmatprep.subr.bf16.mxu0 0
        %860 = vmatpush2.bf16.xpose.msra.mxu0 0
        %861 = vmatprep.subr.bf16.mxu0 0
        %862 = vmatpush2.bf16.xpose.msra.mxu0 0
        %863 = vmatprep.subr.bf16.mxu0 0
        %864 = vmatpush2.bf16.xpose.msra.mxu0 0
        %865 = vmatprep.mubr.bf16.mxu0 0
        %866 = vmatmul.mubr.bf16.gmra.mxu0 %v828
        %v867 = vpop.f32.mrf.mxu0
        %v868 = vadd.f32 0.0, %v867
        %v869 = vpop.f32.mrf.mxu0
        %v870 = vpop.f32.mrf.mxu0
        %v871 = vpop.f32.mrf.mxu0
        %872 = vdwg.mxu0
        %v873 = vsel %vm593, %v868, -inf
        %874 = vmax.xlane.f32.xlu0 %v873
        %v875 = vpop.xlane.xlu0 %874
        %v876 = vsub.f32 %v868, %v875
        %v877 = vmul.f32 %v876, 1.442695
        %v878 = vpow.pop %v877
        %v879 = vsel %vm593, %v878, 0.0
        %880 = vadd.xlane.f32.xlu0 %v879
        %v881 = vpop.xlane.xlu0 %880
        %v882 = vpack.c.bf16 %v878, %v878
        %883 = vrot.lane.b32.xlu0 %v589, 48
        %v884 = vpop.permute.xlu0 %883
        %v886 = vsel %vm593, %v882, 0
        %v889 = vsel %vm655, %v884, 0
        %891 = vmatprep.subr.bf16.mxu0 0
        %892 = vmatpush1.bf16.msra.mxu0 0
        %893 = vmatprep.subr.bf16.mxu0 0
        %894 = vmatpush1.bf16.msra.mxu0 0
        %895 = vmatprep.subr.bf16.mxu0 0
        %896 = vmatpush1.bf16.msra.mxu0 0
        %897 = vmatprep.subr.bf16.mxu0 0
        %898 = vmatpush1.bf16.msra.mxu0 0
        %899 = vmatprep.subr.bf16.mxu0 0
        %900 = vmatpush1.bf16.msra.mxu0 0
        %901 = vmatprep.subr.bf16.mxu0 0
        %902 = vmatpush1.bf16.msra.mxu0 0
        %903 = vmatprep.subr.bf16.mxu0 0
        %904 = vmatpush1.bf16.msra.mxu0 0
        %905 = vmatprep.subr.bf16.mxu0 0
        %906 = vmatpush1.bf16.msra.mxu0 %v889
        %907 = vmatprep.subr.bf16.mxu0 0
        %908 = vmatpush2.bf16.msra.mxu0 0
        %909 = vmatprep.subr.bf16.mxu0 0
        %910 = vmatpush2.bf16.msra.mxu0 0
        %911 = vmatprep.subr.bf16.mxu0 0
        %912 = vmatpush2.bf16.msra.mxu0 0
        %913 = vmatprep.subr.bf16.mxu0 0
        %914 = vmatpush2.bf16.msra.mxu0 0
        %915 = vmatprep.subr.bf16.mxu0 0
        %916 = vmatpush2.bf16.msra.mxu0 0
        %917 = vmatprep.subr.bf16.mxu0 0
        %918 = vmatpush2.bf16.msra.mxu0 0
        %919 = vmatprep.subr.bf16.mxu0 0
        %920 = vmatpush2.bf16.msra.mxu0 0
        %921 = vmatprep.subr.bf16.mxu0 0
        %922 = vmatpush2.bf16.msra.mxu0 0
        %923 = vmatprep.mubr.bf16.mxu0 0
        %924 = vmatmul.mubr.bf16.gmra.mxu0 %v886
        %v925 = vpop.f32.mrf.mxu0
        %v926 = vadd.f32 0.0, %v925
        %v927 = vpop.f32.mrf.mxu0
        %v928 = vpop.f32.mrf.mxu0
        %v929 = vpop.f32.mrf.mxu0
        %930 = vdwg.mxu0
        %v931 = vrcp.pop %v881
        %v932 = vmul.f32 %v926, %v931
        %v933 = vpack.c.bf16 %v932, %v932
        %v935 = vunpack.c.l.b16 %v933
        %v936 = vpack.c.b16 %v935, %v935
        %937 = vrot.lane.b32.xlu0 %v936, 16
        %v938 = vpop.permute.xlu0 %937
        %vm940 = vcmask 191616
        %941 = vst.msk [vmem:[#allocation2] sm:$0xf] %vm940, %v938
        %942 = vrot.lane.b32.xlu0 %v589, 104
        %v943 = vpop.permute.xlu0 %942
        %944 = vrot.lane.b32.xlu0 %v589, 72
        %v945 = vpop.permute.xlu0 %944
        %v947 = vsel %vm593, %v943, 0
        %v950 = vsel %vm593, %v945, 0
        %952 = vmatprep.subr.bf16.mxu0 0
        %953 = vmatpush1.bf16.xpose.msra.mxu0 0
        %954 = vmatprep.subr.bf16.mxu0 0
        %955 = vmatpush1.bf16.xpose.msra.mxu0 0
        %956 = vmatprep.subr.bf16.mxu0 0
        %957 = vmatpush1.bf16.xpose.msra.mxu0 0
        %958 = vmatprep.subr.bf16.mxu0 0
        %959 = vmatpush1.bf16.xpose.msra.mxu0 0
        %960 = vmatprep.subr.bf16.mxu0 0
        %961 = vmatpush1.bf16.xpose.msra.mxu0 0
        %962 = vmatprep.subr.bf16.mxu0 0
        %963 = vmatpush1.bf16.xpose.msra.mxu0 0
        %964 = vmatprep.subr.bf16.mxu0 0
        %965 = vmatpush1.bf16.xpose.msra.mxu0 0
        %966 = vmatprep.subr.bf16.mxu0 0
        %967 = vmatpush1.bf16.xpose.msra.mxu0 %v950
        %968 = vmatprep.subr.bf16.mxu0 0
        %969 = vmatpush2.bf16.xpose.msra.mxu0 0
        %970 = vmatprep.subr.bf16.mxu0 0
        %971 = vmatpush2.bf16.xpose.msra.mxu0 0
        %972 = vmatprep.subr.bf16.mxu0 0
        %973 = vmatpush2.bf16.xpose.msra.mxu0 0
        %974 = vmatprep.subr.bf16.mxu0 0
        %975 = vmatpush2.bf16.xpose.msra.mxu0 0
        %976 = vmatprep.subr.bf16.mxu0 0
        %977 = vmatpush2.bf16.xpose.msra.mxu0 0
        %978 = vmatprep.subr.bf16.mxu0 0
        %979 = vmatpush2.bf16.xpose.msra.mxu0 0
        %980 = vmatprep.subr.bf16.mxu0 0
        %981 = vmatpush2.bf16.xpose.msra.mxu0 0
        %982 = vmatprep.subr.bf16.mxu0 0
        %983 = vmatpush2.bf16.xpose.msra.mxu0 0
        %984 = vmatprep.mubr.bf16.mxu0 0
        %985 = vmatmul.mubr.bf16.gmra.mxu0 %v947
        %v986 = vpop.f32.mrf.mxu0
        %v987 = vadd.f32 0.0, %v986
        %v988 = vpop.f32.mrf.mxu0
        %v989 = vpop.f32.mrf.mxu0
        %v990 = vpop.f32.mrf.mxu0
        %991 = vdwg.mxu0
        %v992 = vsel %vm593, %v987, -inf
        %993 = vmax.xlane.f32.xlu0 %v992
        %v994 = vpop.xlane.xlu0 %993
        %v995 = vsub.f32 %v987, %v994
        %v996 = vmul.f32 %v995, 1.442695
        %v997 = vpow.pop %v996
        %v998 = vsel %vm593, %v997, 0.0
        %999 = vadd.xlane.f32.xlu0 %v998
        %v1000 = vpop.xlane.xlu0 %999
        %v1001 = vpack.c.bf16 %v997, %v997
        %1002 = vrot.lane.b32.xlu0 %v589, 40
        %v1003 = vpop.permute.xlu0 %1002
        %v1005 = vsel %vm593, %v1001, 0
        %v1008 = vsel %vm655, %v1003, 0
        %1010 = vmatprep.subr.bf16.mxu0 0
        %1011 = vmatpush1.bf16.msra.mxu0 0
        %1012 = vmatprep.subr.bf16.mxu0 0
        %1013 = vmatpush1.bf16.msra.mxu0 0
        %1014 = vmatprep.subr.bf16.mxu0 0
        %1015 = vmatpush1.bf16.msra.mxu0 0
        %1016 = vmatprep.subr.bf16.mxu0 0
        %1017 = vmatpush1.bf16.msra.mxu0 0
        %1018 = vmatprep.subr.bf16.mxu0 0
        %1019 = vmatpush1.bf16.msra.mxu0 0
        %1020 = vmatprep.subr.bf16.mxu0 0
        %1021 = vmatpush1.bf16.msra.mxu0 0
        %1022 = vmatprep.subr.bf16.mxu0 0
        %1023 = vmatpush1.bf16.msra.mxu0 0
        %1024 = vmatprep.subr.bf16.mxu0 0
        %1025 = vmatpush1.bf16.msra.mxu0 %v1008
        %1026 = vmatprep.subr.bf16.mxu0 0
        %1027 = vmatpush2.bf16.msra.mxu0 0
        %1028 = vmatprep.subr.bf16.mxu0 0
        %1029 = vmatpush2.bf16.msra.mxu0 0
        %1030 = vmatprep.subr.bf16.mxu0 0
        %1031 = vmatpush2.bf16.msra.mxu0 0
        %1032 = vmatprep.subr.bf16.mxu0 0
        %1033 = vmatpush2.bf16.msra.mxu0 0
        %1034 = vmatprep.subr.bf16.mxu0 0
        %1035 = vmatpush2.bf16.msra.mxu0 0
        %1036 = vmatprep.subr.bf16.mxu0 0
        %1037 = vmatpush2.bf16.msra.mxu0 0
        %1038 = vmatprep.subr.bf16.mxu0 0
        %1039 = vmatpush2.bf16.msra.mxu0 0
        %1040 = vmatprep.subr.bf16.mxu0 0
        %1041 = vmatpush2.bf16.msra.mxu0 0
        %1042 = vmatprep.mubr.bf16.mxu0 0
        %1043 = vmatmul.mubr.bf16.gmra.mxu0 %v1005
        %v1044 = vpop.f32.mrf.mxu0
        %v1045 = vadd.f32 0.0, %v1044
        %v1046 = vpop.f32.mrf.mxu0
        %v1047 = vpop.f32.mrf.mxu0
        %v1048 = vpop.f32.mrf.mxu0
        %1049 = vdwg.mxu0
        %v1050 = vrcp.pop %v1000
        %v1051 = vmul.f32 %v1045, %v1050
        %v1052 = vpack.c.bf16 %v1051, %v1051
        %v1054 = vunpack.c.l.b16 %v1052
        %v1055 = vpack.c.b16 %v1054, %v1054
        %1056 = vrot.lane.b32.xlu0 %v1055, 24
        %v1057 = vpop.permute.xlu0 %1056
        %vm1059 = vcmask 257216
        %1060 = vst.msk [vmem:[#allocation2] sm:$0xf] %vm1059, %v1057
        %v1061 = vld [vmem:[#allocation2] sm:$0xf]
        %v1062 = vld [vmem:[%s5] sm:$0xf]
        %v1063 = vld [vmem:[%s5 + $0x4] sm:$0xf]
        %v1064 = vld [vmem:[%s5 + $0x8] sm:$0xf]
        %v1065 = vld [vmem:[%s5 + $0xc] sm:$0xf]
        %v1066 = vld [vmem:[%s6] sm:$0x1]
        %v1068 = vlaneseq
        %v1069 = vshrl.u32 %v1068, 7
        %v1070 = vsub.s32 0, %v1069
        %v1071 = vrot.slane %v1066, %v1070
        %v1077 = vunpack.c.l.b16 %v1062
        %v1078 = vunpack.c.l.b16 %v1063
        %v1079 = vunpack.c.l.b16 %v1064
        %v1080 = vunpack.c.l.b16 %v1065
        %v1081 = vpack.c.b16 %v1078, %v1077
        %v1082 = vpack.c.b16 %v1080, %v1079
        %v1086 = vsel %vm493, %v1061, 0
        %1088 = vmatprep.subr.bf16.mxu0 0
        %1089 = vmatpush1.bf16.msra.mxu0 0
        %1090 = vmatprep.subr.bf16.mxu0 0
        %1091 = vmatpush1.bf16.msra.mxu0 0
        %1092 = vmatprep.subr.bf16.mxu0 0
        %1093 = vmatpush1.bf16.msra.mxu0 0
        %1094 = vmatprep.subr.bf16.mxu0 0
        %1095 = vmatpush1.bf16.msra.mxu0 0
        %1096 = vmatprep.subr.bf16.mxu0 0
        %1097 = vmatpush1.bf16.msra.mxu0 0
        %1098 = vmatprep.subr.bf16.mxu0 0
        %1099 = vmatpush1.bf16.msra.mxu0 0
        %1100 = vmatprep.subr.bf16.mxu0 0
        %1101 = vmatpush1.bf16.msra.mxu0 %v1082
        %1102 = vmatprep.subr.bf16.mxu0 0
        %1103 = vmatpush1.bf16.msra.mxu0 %v1081
        %1104 = vmatprep.subr.bf16.mxu0 0
        %1105 = vmatpush2.bf16.msra.mxu0 0
        %1106 = vmatprep.subr.bf16.mxu0 0
        %1107 = vmatpush2.bf16.msra.mxu0 0
        %1108 = vmatprep.subr.bf16.mxu0 0
        %1109 = vmatpush2.bf16.msra.mxu0 0
        %1110 = vmatprep.subr.bf16.mxu0 0
        %1111 = vmatpush2.bf16.msra.mxu0 0
        %1112 = vmatprep.subr.bf16.mxu0 0
        %1113 = vmatpush2.bf16.msra.mxu0 0
        %1114 = vmatprep.subr.bf16.mxu0 0
        %1115 = vmatpush2.bf16.msra.mxu0 0
        %1116 = vmatprep.subr.bf16.mxu0 0
        %1117 = vmatpush2.bf16.msra.mxu0 0
        %1118 = vmatprep.subr.bf16.mxu0 0
        %1119 = vmatpush2.bf16.msra.mxu0 0
        %1120 = vmatprep.mubr.bf16.mxu0 0
        %1121 = vmatmul.mubr.bf16.gmra.mxu0 %v1086
        %v1122 = vpop.f32.mrf.mxu0
        %v1123 = vadd.f32 %v1071, %v1122
        %v1124 = vpop.f32.mrf.mxu0
        %v1125 = vpop.f32.mrf.mxu0
        %v1126 = vpop.f32.mrf.mxu0
        %1127 = vdwg.mxu0
        %v1128 = vadd.f32 %v490, %v1123
        %v1129 = vld [vmem:[#allocation3] sm:$0x1]
        %v1130 = vld [vmem:[#allocation6] sm:$0x1]
        %v1131 = vsel %vm493, %v1128, 0.0
        %1132 = vadd.xlane.f32.xlu0 %v1131
        %v1133 = vpop.xlane.xlu0 %1132
        %v1134 = vmul.f32 %v1133, %v497
        %v1135 = vsub.f32 %v1128, %v1134
        %v1136 = vmul.f32 %v1135, %v1135
        %v1137 = vsel %vm493, %v1136, 0.0
        %1138 = vadd.xlane.f32.xlu0 %v1137
        %v1139 = vpop.xlane.xlu0 %1138
        %v1140 = vmul.f32 %v1139, %v497
        %v1141 = vadd.f32 %v1140, 1e-05
        %v1142 = vrsqrt.pop %v1141
        %v1143 = vmul.f32 %v1135, %v1142
        %v1145 = vlaneseq
        %v1146 = vshrl.u32 %v1145, 7
        %v1147 = vsub.s32 0, %v1146
        %v1148 = vrot.slane %v1129, %v1147
        %v1150 = vmul.f32 %v1143, %v1148
        %v1152 = vlaneseq
        %v1153 = vshrl.u32 %v1152, 7
        %v1154 = vsub.s32 0, %v1153
        %v1155 = vrot.slane %v1130, %v1154
        %v1157 = vadd.f32 %v1150, %v1155
        %v1158 = vpack.c.bf16 %v1157, %v1157
        %v1159 = vld [vmem:[#allocation8] sm:$0xf]
        %v1160 = vld [vmem:[#allocation8 + $0x4] sm:$0xf]
        %v1161 = vld [vmem:[#allocation8 + $0x8] sm:$0xf]
        %v1162 = vld [vmem:[#allocation8 + $0xc] sm:$0xf]
        %v1163 = vld [vmem:[#allocation9] sm:$0x1]
        %v1165 = vlaneseq
        %v1166 = vshrl.u32 %v1165, 7
        %v1167 = vsub.s32 0, %v1166
        %v1168 = vrot.slane %v1163, %v1167
        %v1174 = vunpack.c.l.b16 %v1159
        %v1175 = vunpack.c.l.b16 %v1160
        %v1176 = vunpack.c.l.b16 %v1161
        %v1177 = vunpack.c.l.b16 %v1162
        %v1178 = vpack.c.b16 %v1175, %v1174
        %v1179 = vpack.c.b16 %v1177, %v1176
        %v1183 = vsel %vm493, %v1158, 0
        %1185 = vmatprep.subr.bf16.mxu0 0
        %1186 = vmatpush1.bf16.msra.mxu0 0
        %1187 = vmatprep.subr.bf16.mxu0 0
        %1188 = vmatpush1.bf16.msra.mxu0 0
        %1189 = vmatprep.subr.bf16.mxu0 0
        %1190 = vmatpush1.bf16.msra.mxu0 0
        %1191 = vmatprep.subr.bf16.mxu0 0
        %1192 = vmatpush1.bf16.msra.mxu0 0
        %1193 = vmatprep.subr.bf16.mxu0 0
        %1194 = vmatpush1.bf16.msra.mxu0 0
        %1195 = vmatprep.subr.bf16.mxu0 0
        %1196 = vmatpush1.bf16.msra.mxu0 0
        %1197 = vmatprep.subr.bf16.mxu0 0
        %1198 = vmatpush1.bf16.msra.mxu0 %v1179
        %1199 = vmatprep.subr.bf16.mxu0 0
        %1200 = vmatpush1.bf16.msra.mxu0 %v1178
        %1201 = vmatprep.subr.bf16.mxu0 0
        %1202 = vmatpush2.bf16.msra.mxu0 0
        %1203 = vmatprep.subr.bf16.mxu0 0
        %1204 = vmatpush2.bf16.msra.mxu0 0
        %1205 = vmatprep.subr.bf16.mxu0 0
        %1206 = vmatpush2.bf16.msra.mxu0 0
        %1207 = vmatprep.subr.bf16.mxu0 0
        %1208 = vmatpush2.bf16.msra.mxu0 0
        %1209 = vmatprep.subr.bf16.mxu0 0
        %1210 = vmatpush2.bf16.msra.mxu0 0
        %1211 = vmatprep.subr.bf16.mxu0 0
        %1212 = vmatpush2.bf16.msra.mxu0 0
        %1213 = vmatprep.subr.bf16.mxu0 0
        %1214 = vmatpush2.bf16.msra.mxu0 0
        %1215 = vmatprep.subr.bf16.mxu0 0
        %1216 = vmatpush2.bf16.msra.mxu0 0
        %1217 = vmatprep.mubr.bf16.mxu0 0
        %1218 = vmatmul.mubr.bf16.gmra.mxu0 %v1183
        %v1219 = vpop.f32.mrf.mxu0
        %v1220 = vadd.f32 %v1168, %v1219
        %v1221 = vpop.f32.mrf.mxu0
        %v1222 = vpop.f32.mrf.mxu0
        %v1223 = vpop.f32.mrf.mxu0
        %1224 = vdwg.mxu0
        %v1225 = vmul.f32 %v1220, 0.5
        %v1226 = vmul.f32 %v1220, 0.044715
        %v1227 = vmul.f32 %v1226, %v1220
        %v1228 = vmul.f32 %v1227, %v1220
        %v1229 = vadd.f32 %v1220, %v1228
        %v1230 = vmul.f32 %v1229, 0.7978846
        %v1231 = vtanh.pop %v1230
        %v1232 = vadd.f32 %v1231, 1.0
        %v1233 = vmul.f32 %v1225, %v1232
        %v1234 = vpack.c.bf16 %v1233, %v1233
        %v1235 = vld [vmem:[%s11] sm:$0xf]
        %v1236 = vld [vmem:[%s11 + $0x4] sm:$0xf]
        %v1237 = vld [vmem:[%s11 + $0x8] sm:$0xf]
        %v1238 = vld [vmem:[%s11 + $0xc] sm:$0xf]
        %v1239 = vld [vmem:[%s11 + $0x10] sm:$0xf]
        %v1240 = vld [vmem:[%s11 + $0x14] sm:$0xf]
        %v1241 = vld [vmem:[%s11 + $0x18] sm:$0xf]
        %v1242 = vld [vmem:[%s11 + $0x1c] sm:$0xf]
        %v1243 = vld [vmem:[%s12] sm:$0x1]
        %v1245 = vlaneseq
        %v1246 = vshrl.u32 %v1245, 7
        %v1247 = vsub.s32 0, %v1246
        %v1248 = vrot.slane %v1243, %v1247
        %v1258 = vunpack.c.l.b16 %v1235
        %v1259 = vunpack.c.l.b16 %v1236
        %v1260 = vunpack.c.l.b16 %v1237
        %v1261 = vunpack.c.l.b16 %v1238
        %v1262 = vunpack.c.l.b16 %v1239
        %v1263 = vunpack.c.l.b16 %v1240
        %v1264 = vunpack.c.l.b16 %v1241
        %v1265 = vunpack.c.l.b16 %v1242
        %v1266 = vpack.c.b16 %v1259, %v1258
        %v1267 = vpack.c.b16 %v1261, %v1260
        %v1268 = vpack.c.b16 %v1263, %v1262
        %v1269 = vpack.c.b16 %v1265, %v1264
        %vm1274 = vcmask 523264
        %v1276 = vsel %vm1274, %v1234, 0
        %1278 = vmatprep.subr.bf16.mxu0 0
        %1279 = vmatpush1.bf16.msra.mxu0 0
        %1280 = vmatprep.subr.bf16.mxu0 0
        %1281 = vmatpush1.bf16.msra.mxu0 0
        %1282 = vmatprep.subr.bf16.mxu0 0
        %1283 = vmatpush1.bf16.msra.mxu0 0
        %1284 = vmatprep.subr.bf16.mxu0 0
        %1285 = vmatpush1.bf16.msra.mxu0 0
        %1286 = vmatprep.subr.bf16.mxu0 0
        %1287 = vmatpush1.bf16.msra.mxu0 %v1269
        %1288 = vmatprep.subr.bf16.mxu0 0
        %1289 = vmatpush1.bf16.msra.mxu0 %v1268
        %1290 = vmatprep.subr.bf16.mxu0 0
        %1291 = vmatpush1.bf16.msra.mxu0 %v1267
        %1292 = vmatprep.subr.bf16.mxu0 0
        %1293 = vmatpush1.bf16.msra.mxu0 %v1266
        %1294 = vmatprep.subr.bf16.mxu0 0
        %1295 = vmatpush2.bf16.msra.mxu0 0
        %1296 = vmatprep.subr.bf16.mxu0 0
        %1297 = vmatpush2.bf16.msra.mxu0 0
        %1298 = vmatprep.subr.bf16.mxu0 0
        %1299 = vmatpush2.bf16.msra.mxu0 0
        %1300 = vmatprep.subr.bf16.mxu0 0
        %1301 = vmatpush2.bf16.msra.mxu0 0
        %1302 = vmatprep.subr.bf16.mxu0 0
        %1303 = vmatpush2.bf16.msra.mxu0 0
        %1304 = vmatprep.subr.bf16.mxu0 0
        %1305 = vmatpush2.bf16.msra.mxu0 0
        %1306 = vmatprep.subr.bf16.mxu0 0
        %1307 = vmatpush2.bf16.msra.mxu0 0
        %1308 = vmatprep.subr.bf16.mxu0 0
        %1309 = vmatpush2.bf16.msra.mxu0 0
        %1310 = vmatprep.mubr.bf16.mxu0 0
        %1311 = vmatmul.mubr.bf16.gmra.mxu0 %v1276
        %v1312 = vpop.f32.mrf.mxu0
        %v1313 = vadd.f32 %v1248, %v1312
        %v1314 = vpop.f32.mrf.mxu0
        %v1315 = vpop.f32.mrf.mxu0
        %v1316 = vpop.f32.mrf.mxu0
        %1317 = vdwg.mxu0
        %v1318 = vadd.f32 %v1128, %v1313
        %1319 = vst.msk [vmem:[%s484] sm:$0xff] %vm493, %v1318
        %s1320 = sand.u32 %s316, 1
        %s1321 = scalar_lea.sflag [#allocation5], %s1320
        %s1322 = sand.u32 %s316, 1
        %s1323 = smul.addr %s1322, 8
        %s1324 = scalar_lea.vmem [#allocation11], %s1323
        // Predicated region
        $region89: #{tpu_custom_call.1} parent=71 // pred_check
          %p1325 = pneg %p326
        $region90: #{tpu_custom_call.1} parent=71 // pred_check_branch
          %1327 = sbr.rel (%p1325) target = $region92
        $region91: #{tpu_custom_call.1} parent=71 // pred_region
          %s1329 = ssub.s32 128, 128
          %1330 = vsyncadd %s1321, %s1329
          %s1331 = smul.addr %s30, 128
          %s1332 = scalar_lea.hbm %s13, %s1331
          %s1334 = sshll.u32 %s1324, 4
          %s1335 = int_to_ptr.vmem [resolvable:$true] %s1334
          %1337 = dma.vmem_to_hbm [thread:$0]  %s1335, 128, %s1332, %s1321
        $region92: #{tpu_custom_call.1} parent=71 // pred_fallthru
          _
      $region72: #{tpu_custom_call.1} parent=5 // pred_fallthru
        _
      %p1338 = scmp.le.s32.totalorder 2, %s25
      // Predicated region
      $region93: #{tpu_custom_call.1} parent=5 // pred_check
        %p1339 = pneg %p1338
      $region94: #{tpu_custom_call.1} parent=5 // pred_check_branch
        %1341 = sbr.rel (%p1339) target = $region96
      $region95: #{tpu_custom_call.1} parent=5 // pred_region
        %s1342 = ssub.s32 %s25, 2
        // Predicated region
        $region97: #{tpu_custom_call.1} parent=95 // pred_check
          %p1343 = pneg %p332
        $region98: #{tpu_custom_call.1} parent=95 // pred_check_branch
          %1345 = sbr.rel (%p1343) target = $region100
        $region99: #{tpu_custom_call.1} parent=95 // pred_region
          %s1346 = sand.u32 %s317, 1
          %s1347 = scalar_lea.sflag [#allocation5], %s1346
          %s1348 = sand.u32 %s317, 1
          %s1349 = smul.addr %s1348, 8
          %s1350 = scalar_lea.vmem [#allocation11], %s1349
          %1351 = dma.done %s1347, 128
        $region100: #{tpu_custom_call.1} parent=95 // pred_fallthru
          _
      $region96: #{tpu_custom_call.1} parent=5 // pred_fallthru
        _
    $region6: #{tpu_custom_call.1} parent=1 // loop_footer
      %s29 = sadd.s32 1, %s25
    $region7: #{tpu_custom_call.1} parent=1 // loop_footer_branch
      %24 = sbr.rel target = $region3
    $region8: #{tpu_custom_call.1} parent=1 // loop_exit
      _
    %1352 = vsyncpa [#allocation4], 1
    %s1353 = scalar_lea.sflag [#allocation4], 1
    %1354 = vsyncpa %s1353, 1
    %1355 = vsyncpa [#allocation7], 1
    %1356 = vsyncpa [#allocation10], 1
    %1357 = vsyncpa [#allocation5], 1
    %s1358 = scalar_lea.sflag [#allocation5], 1
    %1359 = vsyncpa %s1358, 1

</llo_original>
